<compile_context>
chip_gen: v6e
topology: v6e:2x2x1
jax: 0.10.0
libtpu: 0.0.40
codegen_flags: <defaults>
</compile_context>

<pallas_src>
import functools
import math

import jax
import jax.numpy as jnp
from jax.experimental import pallas as pl
from jax.experimental.pallas import tpu as pltpu

BN_EPS = 1e-3          # nn.BatchNorm2d(eps=0.001)
EXPANSION = 4          # IdentityBlock.expansion


def _derive_vmem_limit():
    """VMEM limit with headroom for the compiler's own windows/scratch/semaphores.

    ~48 MiB on v7x (64 MiB physical), ~112 MiB on v5e/v6e (128 MiB physical).
    """
    cap = 64 * 1024 * 1024
    try:
        cap = int(getattr(pltpu.get_tpu_info(), "vmem_capacity_bytes", cap))
    except Exception:
        pass
    return max(32 * 1024 * 1024, cap - 16 * 1024 * 1024)


_VMEM_LIMIT = _derive_vmem_limit()


def _cparams():
    return pltpu.CompilerParams(
        dimension_semantics=("parallel",),
        vmem_limit_bytes=_VMEM_LIMIT,
    )


# --------------------------------------------------------------------------- #
# Kernels
# --------------------------------------------------------------------------- #

def _partial_stats(z, *, m_total, tile_m, ragged):
    """(2, C) per-tile [sum; sum_of_squares], masking out-of-range rows if ragged."""
    if ragged:
        rows = (pl.program_id(0) * tile_m
                + jax.lax.broadcasted_iota(jnp.int32, (tile_m, 1), 0))
        z = jnp.where(rows < m_total, z, 0.0)
    return jnp.concatenate(
        [jnp.sum(z, axis=0, keepdims=True),
         jnp.sum(z * z, axis=0, keepdims=True)], axis=0)


def _conv1_kernel(x_ref, w1_ref, z1_ref, s_ref, *, m_total, tile_m, ragged):
    """1x1 conv (channel matmul, bf16 operands) + merged partial BN statistics.

    The conv bias is intentionally omitted: training-mode BatchNorm subtracts the
    batch mean right after, which cancels a constant per-channel bias exactly.
    """
    z = jnp.dot(x_ref[...], w1_ref[...], preferred_element_type=jnp.float32)
    s_ref[0] = _partial_stats(z, m_total=m_total, tile_m=tile_m, ragged=ragged)
    z1_ref[...] = z.astype(z1_ref.dtype)


def _conv2_kernel(z1_ref, w2_ref, sc_ref, sh_ref, z2_ref, s_ref, pad_ref, *, dila):
    """bn1 + ReLU + SamePad2d + dilated 3x3 conv for one image, fully in VMEM."""
    _, H, W, F = z1_ref.shape
    d = dila
    Hp, Wp = H + 2 * d, W + 2 * d

    # bn1 (folded affine) + relu in f32 (v5e has no bf16 VPU path).
    a = jnp.maximum(z1_ref[0].astype(jnp.float32) * sc_ref[...] + sh_ref[...], 0.0)

    # SamePad2d(3, 1, dilation=d): zero only the d-wide border; the interior is
    # fully overwritten below. Re-zeroed every step so correctness does not
    # depend on how a "parallel" grid axis is split across TensorCores.
    zrow = jnp.zeros((d, Wp, F), jnp.float32)
    pad_ref[0:d, :, :] = zrow
    pad_ref[d + H:Hp, :, :] = zrow
    zcol = jnp.zeros((H, d, F), jnp.float32)
    pad_ref[d:d + H, 0:d, :] = zcol
    pad_ref[d:d + H, d + W:Wp, :] = zcol
    pad_ref[d:d + H, d:d + W, :] = a

    # Dilated 3x3 conv as nine accumulated (H*W, F) @ (F, F) MXU matmuls reading
    # tap windows straight out of the padded scratch — no (H, W, 9F) im2col slab.
    z2 = None
    for di in range(3):
        for dj in range(3):
            tap = pad_ref[di * d:di * d + H, dj * d:dj * d + W, :]
            tap = tap.reshape(H * W, F).astype(jnp.bfloat16)
            part = jnp.dot(tap, w2_ref[di * 3 + dj],
                           preferred_element_type=jnp.float32)
            z2 = part if z2 is None else z2 + part

    s_ref[0] = jnp.concatenate(
        [jnp.sum(z2, axis=0, keepdims=True),
         jnp.sum(z2 * z2, axis=0, keepdims=True)], axis=0)
    z2_ref[0] = z2.astype(z2_ref.dtype)


def _conv3_kernel(z2_ref, w3_ref, sc_ref, sh_ref, z3_ref, s_ref,
                  *, m_total, tile_m, ragged):
    """bn2 + ReLU (f32) + 1x1 expansion conv + merged partial BN statistics."""
    a = jnp.maximum(z2_ref[...].astype(jnp.float32) * sc_ref[...] + sh_ref[...], 0.0)
    z3 = jnp.dot(a.astype(jnp.bfloat16), w3_ref[...],
                 preferred_element_type=jnp.float32)
    # Statistics from the f32 accumulator (pre-cast) -> exact despite bf16 z3.
    s_ref[0] = _partial_stats(z3, m_total=m_total, tile_m=tile_m, ragged=ragged)
    z3_ref[...] = z3.astype(z3_ref.dtype)


def _bn3_residual_kernel(z3_ref, x_ref, sc_ref, sh_ref, o_ref):
    """bn3 (folded affine) + residual add + ReLU; bf16 streams, f32 math."""
    y = z3_ref[...].astype(jnp.float32) * sc_ref[...] + sh_ref[...]
    o_ref[...] = jnp.maximum(y + x_ref[...].astype(jnp.float32), 0.0)


# --------------------------------------------------------------------------- #
# Wrapper helpers
# --------------------------------------------------------------------------- #

def _pick_tile_rows(m, c, vmem_limit):
    """Row tile for the channel-matmul / elementwise passes.

    Per-generation sizing: larger tiles on 128-MiB parts (v5e/v6e), smaller on
    v7x (64 MiB), capped so the widest pass (pass 4: bf16+bf16 in / f32 out,
    double-buffered ~= 16*C bytes per row) stays well inside the VMEM budget.
    """
    max_target = 2048 if vmem_limit >= 96 * 1024 * 1024 else 1024
    cap = (vmem_limit // 3) // (16 * c)
    target = max(8, min(max_target, (cap // 8) * 8))
    if m <= target:
        return m                     # whole slab (block equals the full dim)
    for tm in range(target, 7, -8):
        if m % tm == 0:
            return tm                # exact divisor -> no ragged last tile
    return target                    # ragged last tile; kernels mask BN stats


def _bn_affine(stats, gamma, beta, count):
    """Fold training-mode BN (batch stats, biased var) into a per-channel affine."""
    s = jnp.sum(stats[:, 0, :], axis=0, keepdims=True)    # (1, Cc)
    q = jnp.sum(stats[:, 1, :], axis=0, keepdims=True)    # (1, Cc)
    mean = s / count
    var = jnp.maximum(q / count - mean * mean, 0.0)        # E[y^2] - E[y]^2 (biased)
    scale = gamma * jax.lax.rsqrt(var + BN_EPS)
    shift = beta - mean * scale
    return scale.astype(jnp.float32), shift.astype(jnp.float32)


def init_params(key, inchannels, filters):
    """Deterministic synthetic parameters (shapes mirror the PyTorch module)."""
    outc = filters * EXPANSION
    assert outc == inchannels, "residual add requires inchannels == filters*4"
    ks = jax.random.split(key, 6)

    def u(k, shape, fan_in):
        s = 1.0 / math.sqrt(fan_in)
        return jax.random.uniform(k, shape, jnp.float32, -s, s)

    return {
        # conv1: (F, Cin, 1, 1) -> stored as (Cin, F)
        "w1": u(ks[0], (inchannels, filters), inchannels),
        "b1": u(ks[1], (1, filters), inchannels),          # unused in kernels (BN cancels it)
        # conv2: (F, F, 3, 3) -> stored HWIO over taps: (9 = kh*3+kw, Cin, Cout)
        "w2": u(ks[2], (9, filters, filters), 9 * filters),
        "b2": u(ks[3], (1, filters), 9 * filters),         # unused in kernels
        # conv3: (4F, F, 1, 1) -> stored as (F, 4F)
        "w3": u(ks[4], (filters, outc), filters),
        "b3": u(ks[5], (1, outc), filters),                # unused in kernels
        # BatchNorm affine params at nn.BatchNorm2d init values.
        "g1": jnp.ones((1, filters), jnp.float32),
        "beta1": jnp.zeros((1, filters), jnp.float32),
        "g2": jnp.ones((1, filters), jnp.float32),
        "beta2": jnp.zeros((1, filters), jnp.float32),
        "g3": jnp.ones((1, outc), jnp.float32),
        "beta3": jnp.zeros((1, outc), jnp.float32),
    }


# --------------------------------------------------------------------------- #
# Forward pass
# --------------------------------------------------------------------------- #

@functools.partial(jax.jit, static_argnames=("dila", "tile_m"))
def identity_block_forward(x_nchw, params, dila=1, tile_m=None):
    """Forward pass of IdentityBlock. Input/output are NCHW like PyTorch."""
    N, C, H, W = x_nchw.shape
    F = params["w1"].shape[1]
    M = N * H * W
    assert F * EXPANSION == C, "residual add requires inchannels == filters*4"
    assert W % 8 == 0, "in-VMEM im2col assumes W is a multiple of 8 (sublane re-tiling)"

    # NCHW -> NHWC rows; transpose + bf16 cast fuse into a single HBM pass in XLA.
    # TODO(synk): if the surrounding model can supply/consume NHWC directly,
    # drop this transpose and the inverse one at the end entirely.
    x2d = jnp.transpose(x_nchw, (0, 2, 3, 1)).astype(jnp.bfloat16).reshape(M, C)

    tm = tile_m if tile_m is not None else _pick_tile_rows(M, C, _VMEM_LIMIT)
    assert tm == M or tm % 8 == 0, "tile_m must be a multiple of 8 (or equal M)"
    nt = pl.cdiv(M, tm)
    ragged = (M % tm) != 0

    # Weights as bf16 MXU operands (f32 accumulation in the kernels).
    w1 = params["w1"].astype(jnp.bfloat16)                 # (C, F)
    w2 = params["w2"].astype(jnp.bfloat16)                 # (9, F, F) HWIO taps
    w3 = params["w3"].astype(jnp.bfloat16)                 # (F, C)

    # ---- pass 1: 1x1 conv + partial bn1 statistics --------------------------
    z1, st1 = pl.pallas_call(
        functools.partial(_conv1_kernel, m_total=M, tile_m=tm, ragged=ragged),
        grid=(nt,),
        in_specs=[pl.BlockSpec((tm, C), lambda i: (i, 0)),
                  pl.BlockSpec((C, F), lambda i: (0, 0))],
        out_specs=[pl.BlockSpec((tm, F), lambda i: (i, 0)),
                   pl.BlockSpec((1, 2, F), lambda i: (i, 0, 0))],
        out_shape=[jax.ShapeDtypeStruct((M, F), jnp.bfloat16),
                   jax.ShapeDtypeStruct((nt, 2, F), jnp.float32)],
        compiler_params=_cparams(),
    )(x2d, w1)
    sc1, sh1 = _bn_affine(st1, params["g1"], params["beta1"], M)

    # ---- pass 2: bn1+relu + SamePad2d + dilated 3x3 conv (per image) --------
    Hp, Wp = H + 2 * dila, W + 2 * dila
    pass2_vmem = (Hp * Wp * F * 4              # f32 pad scratch
                  + 2 * (H * W * F * 2) * 2    # z1-in + z2-out, double-buffered bf16
                  + 9 * F * F * 2 * 2          # w2 windows
                  + 2 * H * W * F * 4)         # f32 accumulator / relu temp headroom
    assert pass2_vmem < int(0.8 * _VMEM_LIMIT), (
        "pass-2 per-image working set exceeds the VMEM budget; "
        "split H into strips (TODO(synk)) or reduce the image size")

    z1_img = z1.reshape(N, H, W, F)
    z2, st2 = pl.pallas_call(
        functools.partial(_conv2_kernel, dila=dila),
        grid=(N,),
        in_specs=[pl.BlockSpec((1, H, W, F), lambda n: (n, 0, 0, 0)),
                  pl.BlockSpec((9, F, F), lambda n: (0, 0, 0)),
                  pl.BlockSpec((1, F), lambda n: (0, 0)),
                  pl.BlockSpec((1, F), lambda n: (0, 0))],
        out_specs=[pl.BlockSpec((1, H * W, F), lambda n: (n, 0, 0)),
                   pl.BlockSpec((1, 2, F), lambda n: (n, 0, 0))],
        out_shape=[jax.ShapeDtypeStruct((N, H * W, F), jnp.bfloat16),
                   jax.ShapeDtypeStruct((N, 2, F), jnp.float32)],
        scratch_shapes=[pltpu.VMEM((Hp, Wp, F), jnp.float32)],
        compiler_params=_cparams(),
    )(z1_img, w2, sc1, sh1)
    sc2, sh2 = _bn_affine(st2, params["g2"], params["beta2"], M)

    # ---- pass 3: bn2+relu + 1x1 expansion conv -------------------------------
    z2_2d = z2.reshape(M, F)
    z3, st3 = pl.pallas_call(
        functools.partial(_conv3_kernel, m_total=M, tile_m=tm, ragged=ragged),
        grid=(nt,),
        in_specs=[pl.BlockSpec((tm, F), lambda i: (i, 0)),
                  pl.BlockSpec((F, C), lambda i: (0, 0)),
                  pl.BlockSpec((1, F), lambda i: (0, 0)),
                  pl.BlockSpec((1, F), lambda i: (0, 0))],
        out_specs=[pl.BlockSpec((tm, C), lambda i: (i, 0)),
                   pl.BlockSpec((1, 2, C), lambda i: (i, 0, 0))],
        out_shape=[jax.ShapeDtypeStruct((M, C), jnp.bfloat16),
                   jax.ShapeDtypeStruct((nt, 2, C), jnp.float32)],
        compiler_params=_cparams(),
    )(z2_2d, w3, sc2, sh2)
    sc3, sh3 = _bn_affine(st3, params["g3"], params["beta3"], M)

    # ---- pass 4: bn3 + residual add + relu -----------------------------------
    out2d = pl.pallas_call(
        _bn3_residual_kernel,
        grid=(nt,),
        in_specs=[pl.BlockSpec((tm, C), lambda i: (i, 0)),
                  pl.BlockSpec((tm, C), lambda i: (i, 0)),
                  pl.BlockSpec((1, C), lambda i: (0, 0)),
                  pl.BlockSpec((1, C), lambda i: (0, 0))],
        out_specs=pl.BlockSpec((tm, C), lambda i: (i, 0)),
        out_shape=jax.ShapeDtypeStruct((M, C), jnp.float32),
        compiler_params=_cparams(),
    )(z3, x2d, sc3, sh3)

    return jnp.transpose(out2d.reshape(N, H, W, C), (0, 3, 1, 2))  # back to NCHW


# --------------------------------------------------------------------------- #
# Pure-JAX reference (faithful to the PyTorch module, incl. conv biases)
# --------------------------------------------------------------------------- #

def _reference_forward(x_nchw, params, dila=1):
    x = jnp.transpose(x_nchw, (0, 2, 3, 1)).astype(jnp.float32)     # NHWC
    F = params["w1"].shape[1]

    def bn(y, g, b):
        mean = jnp.mean(y, axis=(0, 1, 2), keepdims=True)
        var = jnp.mean((y - mean) ** 2, axis=(0, 1, 2), keepdims=True)
        return ((y - mean) * jax.lax.rsqrt(var + BN_EPS)
                * g.reshape(1, 1, 1, -1) + b.reshape(1, 1, 1, -1))

    y = jnp.einsum("nhwc,cf->nhwf", x, params["w1"]) + params["b1"].reshape(1, 1, 1, -1)
    y = jnp.maximum(bn(y, params["g1"], params["beta1"]), 0.0)
    y = jnp.pad(y, ((0, 0), (dila, dila), (dila, dila), (0, 0)))     # SamePad2d(3,1,dila)
    w2 = params["w2"].reshape(3, 3, F, F)                            # HWIO
    y = jax.lax.conv_general_dilated(
        y, w2, window_strides=(1, 1), padding="VALID",
        rhs_dilation=(dila, dila),
        dimension_numbers=("NHWC", "HWIO", "NHWC"))
    y = y + params["b2"].reshape(1, 1, 1, -1)
    y = jnp.maximum(bn(y, params["g2"], params["beta2"]), 0.0)
    y = jnp.einsum("nhwf,fc->nhwc", y, params["w3"]) + params["b3"].reshape(1, 1, 1, -1)
    y = bn(y, params["g3"], params["beta3"])
    y = jnp.maximum(y + x, 0.0)
    return jnp.transpose(y, (0, 3, 1, 2))


if __name__ == "__main__":
    # Small shapes consistent with the module: inchannels = filters * 4.
    N, H, W = 2, 16, 16
    filters = 4
    inchannels = filters * EXPANSION  # 16

    key = jax.random.PRNGKey(0)
    kx, kp = jax.random.split(key)
    x = jax.random.normal(kx, (N, inchannels, H, W), jnp.float32)   # NCHW input
    params = init_params(kp, inchannels, filters)

    # tile_m=128 exercises the tiled / pipelined path (grid of 4 row tiles).
    out = identity_block_forward(x, params, dila=1, tile_m=128)
    out = jax.block_until_ready(out)

    assert out.shape == (N, inchannels, H, W)
    assert bool(jnp.all(out >= 0.0))                                # final ReLU
    ref = _reference_forward(x, params, dila=1)
    max_err = float(jnp.max(jnp.abs(out - ref)))
    # bf16 MXU operands and bf16 HBM-resident intermediates -> small drift vs f32 ref.
    assert max_err < 0.3, f"max abs error vs reference: {max_err}"
    print("KERNEL_OK")
</pallas_src>

<mosaic_0001>
module attributes {stable_mosaic.version = 11 : i64} {
  func.func @_conv2_kernel(%arg0: i32, %arg1: memref<1x16x16x4xbf16, #tpu.memory_space<vmem>>, %arg2: memref<9x4x4xbf16, #tpu.memory_space<vmem>>, %arg3: memref<1x4xf32, #tpu.memory_space<vmem>>, %arg4: memref<1x4xf32, #tpu.memory_space<vmem>>, %arg5: memref<1x256x4xbf16, #tpu.memory_space<vmem>>, %arg6: memref<1x2x4xf32, #tpu.memory_space<vmem>>, %arg7: memref<18x18x4xf32, #tpu.memory_space<vmem>>) attributes {dimension_semantics = [#tpu.dimension_semantics<parallel>], iteration_bounds = array<i64: 2>, scalar_prefetch = 0 : i64, scratch_operands = 1 : i64, tpu.core_type = #tpu.core_type<tc>, window_params = [{transform_indices = @transform_0, window_bounds = array<i64: 1, 16, 16, 4>}, {pipeline_mode = #tpu.pipeline_mode<synchronous>, transform_indices = @transform_1, window_bounds = array<i64: 9, 4, 4>}, {pipeline_mode = #tpu.pipeline_mode<synchronous>, transform_indices = @transform_2, window_bounds = array<i64: 1, 4>}, {pipeline_mode = #tpu.pipeline_mode<synchronous>, transform_indices = @transform_3, window_bounds = array<i64: 1, 4>}, {transform_indices = @transform_4, window_bounds = array<i64: 1, 256, 4>}, {transform_indices = @transform_5, window_bounds = array<i64: 1, 2, 4>}]} {
    %c0 = arith.constant 0 : index
    %c0_0 = arith.constant 0 : index
    %c0_1 = arith.constant 0 : index
    %c0_2 = arith.constant 0 : index
    %0 = vector.load %arg1[%c0, %c0_0, %c0_1, %c0_2] : memref<1x16x16x4xbf16, #tpu.memory_space<vmem>>, vector<1x16x16x4xbf16>
    %1 = vector.shape_cast %0 : vector<1x16x16x4xbf16> to vector<16x16x4xbf16>
    %2 = arith.extf %1 : vector<16x16x4xbf16> to vector<16x16x4xf32>
    %c0_3 = arith.constant 0 : index
    %c0_4 = arith.constant 0 : index
    %3 = vector.load %arg3[%c0_3, %c0_4] : memref<1x4xf32, #tpu.memory_space<vmem>>, vector<1x4xf32>
    %4 = vector.shape_cast %3 : vector<1x4xf32> to vector<1x1x4xf32>
    %5 = vector.broadcast %4 : vector<1x1x4xf32> to vector<16x16x4xf32>
    %6 = arith.mulf %2, %5 : vector<16x16x4xf32>
    %c0_5 = arith.constant 0 : index
    %c0_6 = arith.constant 0 : index
    %7 = vector.load %arg4[%c0_5, %c0_6] : memref<1x4xf32, #tpu.memory_space<vmem>>, vector<1x4xf32>
    %8 = vector.shape_cast %7 : vector<1x4xf32> to vector<1x1x4xf32>
    %9 = vector.broadcast %8 : vector<1x1x4xf32> to vector<16x16x4xf32>
    %10 = arith.addf %6, %9 : vector<16x16x4xf32>
    %cst = arith.constant 0.000000e+00 : f32
    %11 = vector.broadcast %cst : f32 to vector<16x16x4xf32>
    %12 = arith.maximumf %10, %11 : vector<16x16x4xf32>
    %cst_7 = arith.constant 0.000000e+00 : f32
    %13 = vector.broadcast %cst_7 : f32 to vector<1x18x4xf32>
    %c0_8 = arith.constant 0 : index
    %c0_9 = arith.constant 0 : index
    %c0_10 = arith.constant 0 : index
    %14 = vector.load %arg7[%c0_8, %c0_9, %c0_10] : memref<18x18x4xf32, #tpu.memory_space<vmem>>, vector<1x18x4xf32>
    tpu.vector_store %arg7[%c0_8, %c0_9, %c0_10], %13 {strides = array<i32>} : memref<18x18x4xf32, #tpu.memory_space<vmem>>, vector<1x18x4xf32>,
    %c17 = arith.constant 17 : index
    %c0_11 = arith.constant 0 : index
    %c0_12 = arith.constant 0 : index
    %15 = vector.load %arg7[%c17, %c0_11, %c0_12] : memref<18x18x4xf32, #tpu.memory_space<vmem>>, vector<1x18x4xf32>
    tpu.vector_store %arg7[%c17, %c0_11, %c0_12], %13 {strides = array<i32>} : memref<18x18x4xf32, #tpu.memory_space<vmem>>, vector<1x18x4xf32>,
    %cst_13 = arith.constant 0.000000e+00 : f32
    %16 = vector.broadcast %cst_13 : f32 to vector<16x1x4xf32>
    %c1 = arith.constant 1 : index
    %c0_14 = arith.constant 0 : index
    %c0_15 = arith.constant 0 : index
    %17 = vector.load %arg7[%c1, %c0_14, %c0_15] : memref<18x18x4xf32, #tpu.memory_space<vmem>>, vector<16x1x4xf32>
    tpu.vector_store %arg7[%c1, %c0_14, %c0_15], %16 {strides = array<i32>} : memref<18x18x4xf32, #tpu.memory_space<vmem>>, vector<16x1x4xf32>,
    %c1_16 = arith.constant 1 : index
    %c17_17 = arith.constant 17 : index
    %c0_18 = arith.constant 0 : index
    %18 = vector.load %arg7[%c1_16, %c17_17, %c0_18] : memref<18x18x4xf32, #tpu.memory_space<vmem>>, vector<16x1x4xf32>
    tpu.vector_store %arg7[%c1_16, %c17_17, %c0_18], %16 {strides = array<i32>} : memref<18x18x4xf32, #tpu.memory_space<vmem>>, vector<16x1x4xf32>,
    %c1_19 = arith.constant 1 : index
    %c1_20 = arith.constant 1 : index
    %c0_21 = arith.constant 0 : index
    %19 = vector.load %arg7[%c1_19, %c1_20, %c0_21] : memref<18x18x4xf32, #tpu.memory_space<vmem>>, vector<16x16x4xf32>
    tpu.vector_store %arg7[%c1_19, %c1_20, %c0_21], %12 {strides = array<i32>} : memref<18x18x4xf32, #tpu.memory_space<vmem>>, vector<16x16x4xf32>,
    %c0_22 = arith.constant 0 : index
    %c0_23 = arith.constant 0 : index
    %c0_24 = arith.constant 0 : index
    %20 = vector.load %arg7[%c0_22, %c0_23, %c0_24] : memref<18x18x4xf32, #tpu.memory_space<vmem>>, vector<16x16x4xf32>
    %21 = vector.shape_cast %20 : vector<16x16x4xf32> to vector<256x4xf32>
    %22 = arith.truncf %21 : vector<256x4xf32> to vector<256x4xbf16>
    %c0_25 = arith.constant 0 : index
    %c0_26 = arith.constant 0 : index
    %c0_27 = arith.constant 0 : index
    %23 = vector.load %arg2[%c0_25, %c0_26, %c0_27] : memref<9x4x4xbf16, #tpu.memory_space<vmem>>, vector<1x4x4xbf16>
    %24 = vector.shape_cast %23 : vector<1x4x4xbf16> to vector<4x4xbf16>
    %cst_28 = arith.constant dense<0.000000e+00> : vector<256x4xf32>
    %25 = tpu.matmul %22, %24, %cst_28 {dimension_numbers = #tpu.dot_dimension_numbers<[1], [0], [0], [1], [0, 0, 1, 1], [], []>} : vector<256x4xbf16>, vector<4x4xbf16>, vector<256x4xf32> -> vector<256x4xf32>
    %c0_29 = arith.constant 0 : index
    %c1_30 = arith.constant 1 : index
    %c0_31 = arith.constant 0 : index
    %26 = vector.load %arg7[%c0_29, %c1_30, %c0_31] : memref<18x18x4xf32, #tpu.memory_space<vmem>>, vector<16x16x4xf32>
    %27 = vector.shape_cast %26 : vector<16x16x4xf32> to vector<256x4xf32>
    %28 = arith.truncf %27 : vector<256x4xf32> to vector<256x4xbf16>
    %c1_32 = arith.constant 1 : index
    %c0_33 = arith.constant 0 : index
    %c0_34 = arith.constant 0 : index
    %29 = vector.load %arg2[%c1_32, %c0_33, %c0_34] : memref<9x4x4xbf16, #tpu.memory_space<vmem>>, vector<1x4x4xbf16>
    %30 = vector.shape_cast %29 : vector<1x4x4xbf16> to vector<4x4xbf16>
    %cst_35 = arith.constant dense<0.000000e+00> : vector<256x4xf32>
    %31 = tpu.matmul %28, %30, %cst_35 {dimension_numbers = #tpu.dot_dimension_numbers<[1], [0], [0], [1], [0, 0, 1, 1], [], []>} : vector<256x4xbf16>, vector<4x4xbf16>, vector<256x4xf32> -> vector<256x4xf32>
    %32 = arith.addf %25, %31 : vector<256x4xf32>
    %c0_36 = arith.constant 0 : index
    %c2 = arith.constant 2 : index
    %c0_37 = arith.constant 0 : index
    %33 = vector.load %arg7[%c0_36, %c2, %c0_37] : memref<18x18x4xf32, #tpu.memory_space<vmem>>, vector<16x16x4xf32>
    %34 = vector.shape_cast %33 : vector<16x16x4xf32> to vector<256x4xf32>
    %35 = arith.truncf %34 : vector<256x4xf32> to vector<256x4xbf16>
    %c2_38 = arith.constant 2 : index
    %c0_39 = arith.constant 0 : index
    %c0_40 = arith.constant 0 : index
    %36 = vector.load %arg2[%c2_38, %c0_39, %c0_40] : memref<9x4x4xbf16, #tpu.memory_space<vmem>>, vector<1x4x4xbf16>
    %37 = vector.shape_cast %36 : vector<1x4x4xbf16> to vector<4x4xbf16>
    %cst_41 = arith.constant dense<0.000000e+00> : vector<256x4xf32>
    %38 = tpu.matmul %35, %37, %cst_41 {dimension_numbers = #tpu.dot_dimension_numbers<[1], [0], [0], [1], [0, 0, 1, 1], [], []>} : vector<256x4xbf16>, vector<4x4xbf16>, vector<256x4xf32> -> vector<256x4xf32>
    %39 = arith.addf %32, %38 : vector<256x4xf32>
    %c1_42 = arith.constant 1 : index
    %c0_43 = arith.constant 0 : index
    %c0_44 = arith.constant 0 : index
    %40 = vector.load %arg7[%c1_42, %c0_43, %c0_44] : memref<18x18x4xf32, #tpu.memory_space<vmem>>, vector<16x16x4xf32>
    %41 = vector.shape_cast %40 : vector<16x16x4xf32> to vector<256x4xf32>
    %42 = arith.truncf %41 : vector<256x4xf32> to vector<256x4xbf16>
    %c3 = arith.constant 3 : index
    %c0_45 = arith.constant 0 : index
    %c0_46 = arith.constant 0 : index
    %43 = vector.load %arg2[%c3, %c0_45, %c0_46] : memref<9x4x4xbf16, #tpu.memory_space<vmem>>, vector<1x4x4xbf16>
    %44 = vector.shape_cast %43 : vector<1x4x4xbf16> to vector<4x4xbf16>
    %cst_47 = arith.constant dense<0.000000e+00> : vector<256x4xf32>
    %45 = tpu.matmul %42, %44, %cst_47 {dimension_numbers = #tpu.dot_dimension_numbers<[1], [0], [0], [1], [0, 0, 1, 1], [], []>} : vector<256x4xbf16>, vector<4x4xbf16>, vector<256x4xf32> -> vector<256x4xf32>
    %46 = arith.addf %39, %45 : vector<256x4xf32>
    %c1_48 = arith.constant 1 : index
    %c1_49 = arith.constant 1 : index
    %c0_50 = arith.constant 0 : index
    %47 = vector.load %arg7[%c1_48, %c1_49, %c0_50] : memref<18x18x4xf32, #tpu.memory_space<vmem>>, vector<16x16x4xf32>
    %48 = vector.shape_cast %47 : vector<16x16x4xf32> to vector<256x4xf32>
    %49 = arith.truncf %48 : vector<256x4xf32> to vector<256x4xbf16>
    %c4 = arith.constant 4 : index
    %c0_51 = arith.constant 0 : index
    %c0_52 = arith.constant 0 : index
    %50 = vector.load %arg2[%c4, %c0_51, %c0_52] : memref<9x4x4xbf16, #tpu.memory_space<vmem>>, vector<1x4x4xbf16>
    %51 = vector.shape_cast %50 : vector<1x4x4xbf16> to vector<4x4xbf16>
    %cst_53 = arith.constant dense<0.000000e+00> : vector<256x4xf32>
    %52 = tpu.matmul %49, %51, %cst_53 {dimension_numbers = #tpu.dot_dimension_numbers<[1], [0], [0], [1], [0, 0, 1, 1], [], []>} : vector<256x4xbf16>, vector<4x4xbf16>, vector<256x4xf32> -> vector<256x4xf32>
    %53 = arith.addf %46, %52 : vector<256x4xf32>
    %c1_54 = arith.constant 1 : index
    %c2_55 = arith.constant 2 : index
    %c0_56 = arith.constant 0 : index
    %54 = vector.load %arg7[%c1_54, %c2_55, %c0_56] : memref<18x18x4xf32, #tpu.memory_space<vmem>>, vector<16x16x4xf32>
    %55 = vector.shape_cast %54 : vector<16x16x4xf32> to vector<256x4xf32>
    %56 = arith.truncf %55 : vector<256x4xf32> to vector<256x4xbf16>
    %c5 = arith.constant 5 : index
    %c0_57 = arith.constant 0 : index
    %c0_58 = arith.constant 0 : index
    %57 = vector.load %arg2[%c5, %c0_57, %c0_58] : memref<9x4x4xbf16, #tpu.memory_space<vmem>>, vector<1x4x4xbf16>
    %58 = vector.shape_cast %57 : vector<1x4x4xbf16> to vector<4x4xbf16>
    %cst_59 = arith.constant dense<0.000000e+00> : vector<256x4xf32>
    %59 = tpu.matmul %56, %58, %cst_59 {dimension_numbers = #tpu.dot_dimension_numbers<[1], [0], [0], [1], [0, 0, 1, 1], [], []>} : vector<256x4xbf16>, vector<4x4xbf16>, vector<256x4xf32> -> vector<256x4xf32>
    %60 = arith.addf %53, %59 : vector<256x4xf32>
    %c2_60 = arith.constant 2 : index
    %c0_61 = arith.constant 0 : index
    %c0_62 = arith.constant 0 : index
    %61 = vector.load %arg7[%c2_60, %c0_61, %c0_62] : memref<18x18x4xf32, #tpu.memory_space<vmem>>, vector<16x16x4xf32>
    %62 = vector.shape_cast %61 : vector<16x16x4xf32> to vector<256x4xf32>
    %63 = arith.truncf %62 : vector<256x4xf32> to vector<256x4xbf16>
    %c6 = arith.constant 6 : index
    %c0_63 = arith.constant 0 : index
    %c0_64 = arith.constant 0 : index
    %64 = vector.load %arg2[%c6, %c0_63, %c0_64] : memref<9x4x4xbf16, #tpu.memory_space<vmem>>, vector<1x4x4xbf16>
    %65 = vector.shape_cast %64 : vector<1x4x4xbf16> to vector<4x4xbf16>
    %cst_65 = arith.constant dense<0.000000e+00> : vector<256x4xf32>
    %66 = tpu.matmul %63, %65, %cst_65 {dimension_numbers = #tpu.dot_dimension_numbers<[1], [0], [0], [1], [0, 0, 1, 1], [], []>} : vector<256x4xbf16>, vector<4x4xbf16>, vector<256x4xf32> -> vector<256x4xf32>
    %67 = arith.addf %60, %66 : vector<256x4xf32>
    %c2_66 = arith.constant 2 : index
    %c1_67 = arith.constant 1 : index
    %c0_68 = arith.constant 0 : index
    %68 = vector.load %arg7[%c2_66, %c1_67, %c0_68] : memref<18x18x4xf32, #tpu.memory_space<vmem>>, vector<16x16x4xf32>
    %69 = vector.shape_cast %68 : vector<16x16x4xf32> to vector<256x4xf32>
    %70 = arith.truncf %69 : vector<256x4xf32> to vector<256x4xbf16>
    %c7 = arith.constant 7 : index
    %c0_69 = arith.constant 0 : index
    %c0_70 = arith.constant 0 : index
    %71 = vector.load %arg2[%c7, %c0_69, %c0_70] : memref<9x4x4xbf16, #tpu.memory_space<vmem>>, vector<1x4x4xbf16>
    %72 = vector.shape_cast %71 : vector<1x4x4xbf16> to vector<4x4xbf16>
    %cst_71 = arith.constant dense<0.000000e+00> : vector<256x4xf32>
    %73 = tpu.matmul %70, %72, %cst_71 {dimension_numbers = #tpu.dot_dimension_numbers<[1], [0], [0], [1], [0, 0, 1, 1], [], []>} : vector<256x4xbf16>, vector<4x4xbf16>, vector<256x4xf32> -> vector<256x4xf32>
    %74 = arith.addf %67, %73 : vector<256x4xf32>
    %c2_72 = arith.constant 2 : index
    %c2_73 = arith.constant 2 : index
    %c0_74 = arith.constant 0 : index
    %75 = vector.load %arg7[%c2_72, %c2_73, %c0_74] : memref<18x18x4xf32, #tpu.memory_space<vmem>>, vector<16x16x4xf32>
    %76 = vector.shape_cast %75 : vector<16x16x4xf32> to vector<256x4xf32>
    %77 = arith.truncf %76 : vector<256x4xf32> to vector<256x4xbf16>
    %c8 = arith.constant 8 : index
    %c0_75 = arith.constant 0 : index
    %c0_76 = arith.constant 0 : index
    %78 = vector.load %arg2[%c8, %c0_75, %c0_76] : memref<9x4x4xbf16, #tpu.memory_space<vmem>>, vector<1x4x4xbf16>
    %79 = vector.shape_cast %78 : vector<1x4x4xbf16> to vector<4x4xbf16>
    %cst_77 = arith.constant dense<0.000000e+00> : vector<256x4xf32>
    %80 = tpu.matmul %77, %79, %cst_77 {dimension_numbers = #tpu.dot_dimension_numbers<[1], [0], [0], [1], [0, 0, 1, 1], [], []>} : vector<256x4xbf16>, vector<4x4xbf16>, vector<256x4xf32> -> vector<256x4xf32>
    %81 = arith.addf %74, %80 : vector<256x4xf32>
    %cst_78 = arith.constant dense<0.000000e+00> : vector<4xf32>
    %82 = vector.multi_reduction <add>, %81, %cst_78 [0] : vector<256x4xf32> to vector<4xf32>
    %83 = vector.shape_cast %82 : vector<4xf32> to vector<1x4xf32>
    %84 = arith.mulf %81, %81 : vector<256x4xf32>
    %cst_79 = arith.constant dense<0.000000e+00> : vector<4xf32>
    %85 = vector.multi_reduction <add>, %84, %cst_79 [0] : vector<256x4xf32> to vector<4xf32>
    %86 = vector.shape_cast %85 : vector<4xf32> to vector<1x4xf32>
    %87 = tpu.concatenate %83, %86 in 0 : vector<1x4xf32>, vector<1x4xf32> -> vector<2x4xf32>
    %c0_80 = arith.constant 0 : index
    %c0_81 = arith.constant 0 : index
    %c0_82 = arith.constant 0 : index
    %88 = vector.load %arg6[%c0_80, %c0_81, %c0_82] : memref<1x2x4xf32, #tpu.memory_space<vmem>>, vector<1x2x4xf32>
    %89 = vector.shape_cast %88 : vector<1x2x4xf32> to vector<2x4xf32>
    %90 = vector.shape_cast %87 : vector<2x4xf32> to vector<1x2x4xf32>
    tpu.vector_store %arg6[%c0_80, %c0_81, %c0_82], %90 {strides = array<i32>} : memref<1x2x4xf32, #tpu.memory_space<vmem>>, vector<1x2x4xf32>,
    %91 = arith.truncf %81 : vector<256x4xf32> to vector<256x4xbf16>
    %c0_83 = arith.constant 0 : index
    %c0_84 = arith.constant 0 : index
    %c0_85 = arith.constant 0 : index
    %92 = vector.load %arg5[%c0_83, %c0_84, %c0_85] : memref<1x256x4xbf16, #tpu.memory_space<vmem>>, vector<1x256x4xbf16>
    %93 = vector.shape_cast %92 : vector<1x256x4xbf16> to vector<256x4xbf16>
    %94 = vector.shape_cast %91 : vector<256x4xbf16> to vector<1x256x4xbf16>
    tpu.vector_store %arg5[%c0_83, %c0_84, %c0_85], %94 {strides = array<i32>} : memref<1x256x4xbf16, #tpu.memory_space<vmem>>, vector<1x256x4xbf16>,
    return
  }
  func.func @transform_0(%arg0: i32) -> (i32, i32, i32, i32) {
    %c0_i32 = arith.constant 0 : i32
    %c0_i32_0 = arith.constant 0 : i32
    %c0_i32_1 = arith.constant 0 : i32
    %c0_i32_2 = arith.constant 0 : i32
    return %arg0, %c0_i32, %c0_i32_0, %c0_i32_1 : i32, i32, i32, i32
  }
  func.func @transform_1(%arg0: i32) -> (i32, i32, i32) {
    %c0_i32 = arith.constant 0 : i32
    %c0_i32_0 = arith.constant 0 : i32
    %c0_i32_1 = arith.constant 0 : i32
    %c0_i32_2 = arith.constant 0 : i32
    return %c0_i32, %c0_i32_0, %c0_i32_1 : i32, i32, i32
  }
  func.func @transform_2(%arg0: i32) -> (i32, i32) {
    %c0_i32 = arith.constant 0 : i32
    %c0_i32_0 = arith.constant 0 : i32
    %c0_i32_1 = arith.constant 0 : i32
    return %c0_i32, %c0_i32_0 : i32, i32
  }
  func.func @transform_3(%arg0: i32) -> (i32, i32) {
    %c0_i32 = arith.constant 0 : i32
    %c0_i32_0 = arith.constant 0 : i32
    %c0_i32_1 = arith.constant 0 : i32
    return %c0_i32, %c0_i32_0 : i32, i32
  }
  func.func @transform_4(%arg0: i32) -> (i32, i32, i32) {
    %c0_i32 = arith.constant 0 : i32
    %c0_i32_0 = arith.constant 0 : i32
    %c0_i32_1 = arith.constant 0 : i32
    return %arg0, %c0_i32, %c0_i32_0 : i32, i32, i32
  }
  func.func @transform_5(%arg0: i32) -> (i32, i32, i32) {
    %c0_i32 = arith.constant 0 : i32
    %c0_i32_0 = arith.constant 0 : i32
    %c0_i32_1 = arith.constant 0 : i32
    return %arg0, %c0_i32, %c0_i32_0 : i32, i32, i32
  }
}

module attributes {stable_mosaic.version = 11 : i64} {
  func.func @_conv1_kernel(%arg0: i32, %arg1: memref<128x16xbf16, #tpu.memory_space<vmem>>, %arg2: memref<16x4xbf16, #tpu.memory_space<vmem>>, %arg3: memref<128x4xbf16, #tpu.memory_space<vmem>>, %arg4: memref<1x2x4xf32, #tpu.memory_space<vmem>>) attributes {dimension_semantics = [#tpu.dimension_semantics<parallel>], iteration_bounds = array<i64: 4>, scalar_prefetch = 0 : i64, scratch_operands = 0 : i64, tpu.core_type = #tpu.core_type<tc>, window_params = [{transform_indices = @transform_0, window_bounds = array<i64: 128, 16>}, {pipeline_mode = #tpu.pipeline_mode<synchronous>, transform_indices = @transform_1, window_bounds = array<i64: 16, 4>}, {transform_indices = @transform_2, window_bounds = array<i64: 128, 4>}, {transform_indices = @transform_3, window_bounds = array<i64: 1, 2, 4>}]} {
    %c0 = arith.constant 0 : index
    %c0_0 = arith.constant 0 : index
    %0 = vector.load %arg1[%c0, %c0_0] : memref<128x16xbf16, #tpu.memory_space<vmem>>, vector<128x16xbf16>
    %c0_1 = arith.constant 0 : index
    %c0_2 = arith.constant 0 : index
    %1 = vector.load %arg2[%c0_1, %c0_2] : memref<16x4xbf16, #tpu.memory_space<vmem>>, vector<16x4xbf16>
    %cst = arith.constant dense<0.000000e+00> : vector<128x4xf32>
    %2 = tpu.matmul %0, %1, %cst {dimension_numbers = #tpu.dot_dimension_numbers<[1], [0], [0], [1], [0, 0, 1, 1], [], []>} : vector<128x16xbf16>, vector<16x4xbf16>, vector<128x4xf32> -> vector<128x4xf32>
    %cst_3 = arith.constant dense<0.000000e+00> : vector<4xf32>
    %3 = vector.multi_reduction <add>, %2, %cst_3 [0] : vector<128x4xf32> to vector<4xf32>
    %4 = vector.shape_cast %3 : vector<4xf32> to vector<1x4xf32>
    %5 = arith.mulf %2, %2 : vector<128x4xf32>
    %cst_4 = arith.constant dense<0.000000e+00> : vector<4xf32>
    %6 = vector.multi_reduction <add>, %5, %cst_4 [0] : vector<128x4xf32> to vector<4xf32>
    %7 = vector.shape_cast %6 : vector<4xf32> to vector<1x4xf32>
    %8 = tpu.concatenate %4, %7 in 0 : vector<1x4xf32>, vector<1x4xf32> -> vector<2x4xf32>
    %c0_5 = arith.constant 0 : index
    %c0_6 = arith.constant 0 : index
    %c0_7 = arith.constant 0 : index
    %9 = vector.load %arg4[%c0_5, %c0_6, %c0_7] : memref<1x2x4xf32, #tpu.memory_space<vmem>>, vector<1x2x4xf32>
    %10 = vector.shape_cast %9 : vector<1x2x4xf32> to vector<2x4xf32>
    %11 = vector.shape_cast %8 : vector<2x4xf32> to vector<1x2x4xf32>
    tpu.vector_store %arg4[%c0_5, %c0_6, %c0_7], %11 {strides = array<i32>} : memref<1x2x4xf32, #tpu.memory_space<vmem>>, vector<1x2x4xf32>,
    %12 = arith.truncf %2 : vector<128x4xf32> to vector<128x4xbf16>
    %c0_8 = arith.constant 0 : index
    %c0_9 = arith.constant 0 : index
    %13 = vector.load %arg3[%c0_8, %c0_9] : memref<128x4xbf16, #tpu.memory_space<vmem>>, vector<128x4xbf16>
    tpu.vector_store %arg3[%c0_8, %c0_9], %12 {strides = array<i32>} : memref<128x4xbf16, #tpu.memory_space<vmem>>, vector<128x4xbf16>,
    return
  }
  func.func @transform_0(%arg0: i32) -> (i32, i32) {
    %c0_i32 = arith.constant 0 : i32
    %c0_i32_0 = arith.constant 0 : i32
    return %arg0, %c0_i32 : i32, i32
  }
  func.func @transform_1(%arg0: i32) -> (i32, i32) {
    %c0_i32 = arith.constant 0 : i32
    %c0_i32_0 = arith.constant 0 : i32
    %c0_i32_1 = arith.constant 0 : i32
    return %c0_i32, %c0_i32_0 : i32, i32
  }
  func.func @transform_2(%arg0: i32) -> (i32, i32) {
    %c0_i32 = arith.constant 0 : i32
    %c0_i32_0 = arith.constant 0 : i32
    return %arg0, %c0_i32 : i32, i32
  }
  func.func @transform_3(%arg0: i32) -> (i32, i32, i32) {
    %c0_i32 = arith.constant 0 : i32
    %c0_i32_0 = arith.constant 0 : i32
    %c0_i32_1 = arith.constant 0 : i32
    return %arg0, %c0_i32, %c0_i32_0 : i32, i32, i32
  }
}

module attributes {stable_mosaic.version = 11 : i64} {
  func.func @_conv3_kernel(%arg0: i32, %arg1: memref<128x4xbf16, #tpu.memory_space<vmem>>, %arg2: memref<4x16xbf16, #tpu.memory_space<vmem>>, %arg3: memref<1x4xf32, #tpu.memory_space<vmem>>, %arg4: memref<1x4xf32, #tpu.memory_space<vmem>>, %arg5: memref<128x16xbf16, #tpu.memory_space<vmem>>, %arg6: memref<1x2x16xf32, #tpu.memory_space<vmem>>) attributes {dimension_semantics = [#tpu.dimension_semantics<parallel>], iteration_bounds = array<i64: 4>, scalar_prefetch = 0 : i64, scratch_operands = 0 : i64, tpu.core_type = #tpu.core_type<tc>, window_params = [{transform_indices = @transform_0, window_bounds = array<i64: 128, 4>}, {pipeline_mode = #tpu.pipeline_mode<synchronous>, transform_indices = @transform_1, window_bounds = array<i64: 4, 16>}, {pipeline_mode = #tpu.pipeline_mode<synchronous>, transform_indices = @transform_2, window_bounds = array<i64: 1, 4>}, {pipeline_mode = #tpu.pipeline_mode<synchronous>, transform_indices = @transform_3, window_bounds = array<i64: 1, 4>}, {transform_indices = @transform_4, window_bounds = array<i64: 128, 16>}, {transform_indices = @transform_5, window_bounds = array<i64: 1, 2, 16>}]} {
    %c0 = arith.constant 0 : index
    %c0_0 = arith.constant 0 : index
    %0 = vector.load %arg1[%c0, %c0_0] : memref<128x4xbf16, #tpu.memory_space<vmem>>, vector<128x4xbf16>
    %1 = arith.extf %0 : vector<128x4xbf16> to vector<128x4xf32>
    %c0_1 = arith.constant 0 : index
    %c0_2 = arith.constant 0 : index
    %2 = vector.load %arg3[%c0_1, %c0_2] : memref<1x4xf32, #tpu.memory_space<vmem>>, vector<1x4xf32>
    %3 = vector.broadcast %2 : vector<1x4xf32> to vector<128x4xf32>
    %4 = arith.mulf %1, %3 : vector<128x4xf32>
    %c0_3 = arith.constant 0 : index
    %c0_4 = arith.constant 0 : index
    %5 = vector.load %arg4[%c0_3, %c0_4] : memref<1x4xf32, #tpu.memory_space<vmem>>, vector<1x4xf32>
    %6 = vector.broadcast %5 : vector<1x4xf32> to vector<128x4xf32>
    %7 = arith.addf %4, %6 : vector<128x4xf32>
    %cst = arith.constant 0.000000e+00 : f32
    %8 = vector.broadcast %cst : f32 to vector<128x4xf32>
    %9 = arith.maximumf %7, %8 : vector<128x4xf32>
    %10 = arith.truncf %9 : vector<128x4xf32> to vector<128x4xbf16>
    %c0_5 = arith.constant 0 : index
    %c0_6 = arith.constant 0 : index
    %11 = vector.load %arg2[%c0_5, %c0_6] : memref<4x16xbf16, #tpu.memory_space<vmem>>, vector<4x16xbf16>
    %cst_7 = arith.constant dense<0.000000e+00> : vector<128x16xf32>
    %12 = tpu.matmul %10, %11, %cst_7 {dimension_numbers = #tpu.dot_dimension_numbers<[1], [0], [0], [1], [0, 0, 1, 1], [], []>} : vector<128x4xbf16>, vector<4x16xbf16>, vector<128x16xf32> -> vector<128x16xf32>
    %cst_8 = arith.constant dense<0.000000e+00> : vector<16xf32>
    %13 = vector.multi_reduction <add>, %12, %cst_8 [0] : vector<128x16xf32> to vector<16xf32>
    %14 = vector.shape_cast %13 : vector<16xf32> to vector<1x16xf32>
    %15 = arith.mulf %12, %12 : vector<128x16xf32>
    %cst_9 = arith.constant dense<0.000000e+00> : vector<16xf32>
    %16 = vector.multi_reduction <add>, %15, %cst_9 [0] : vector<128x16xf32> to vector<16xf32>
    %17 = vector.shape_cast %16 : vector<16xf32> to vector<1x16xf32>
    %18 = tpu.concatenate %14, %17 in 0 : vector<1x16xf32>, vector<1x16xf32> -> vector<2x16xf32>
    %c0_10 = arith.constant 0 : index
    %c0_11 = arith.constant 0 : index
    %c0_12 = arith.constant 0 : index
    %19 = vector.load %arg6[%c0_10, %c0_11, %c0_12] : memref<1x2x16xf32, #tpu.memory_space<vmem>>, vector<1x2x16xf32>
    %20 = vector.shape_cast %19 : vector<1x2x16xf32> to vector<2x16xf32>
    %21 = vector.shape_cast %18 : vector<2x16xf32> to vector<1x2x16xf32>
    tpu.vector_store %arg6[%c0_10, %c0_11, %c0_12], %21 {strides = array<i32>} : memref<1x2x16xf32, #tpu.memory_space<vmem>>, vector<1x2x16xf32>,
    %22 = arith.truncf %12 : vector<128x16xf32> to vector<128x16xbf16>
    %c0_13 = arith.constant 0 : index
    %c0_14 = arith.constant 0 : index
    %23 = vector.load %arg5[%c0_13, %c0_14] : memref<128x16xbf16, #tpu.memory_space<vmem>>, vector<128x16xbf16>
    tpu.vector_store %arg5[%c0_13, %c0_14], %22 {strides = array<i32>} : memref<128x16xbf16, #tpu.memory_space<vmem>>, vector<128x16xbf16>,
    return
  }
  func.func @transform_0(%arg0: i32) -> (i32, i32) {
    %c0_i32 = arith.constant 0 : i32
    %c0_i32_0 = arith.constant 0 : i32
    return %arg0, %c0_i32 : i32, i32
  }
  func.func @transform_1(%arg0: i32) -> (i32, i32) {
    %c0_i32 = arith.constant 0 : i32
    %c0_i32_0 = arith.constant 0 : i32
    %c0_i32_1 = arith.constant 0 : i32
    return %c0_i32, %c0_i32_0 : i32, i32
  }
  func.func @transform_2(%arg0: i32) -> (i32, i32) {
    %c0_i32 = arith.constant 0 : i32
    %c0_i32_0 = arith.constant 0 : i32
    %c0_i32_1 = arith.constant 0 : i32
    return %c0_i32, %c0_i32_0 : i32, i32
  }
  func.func @transform_3(%arg0: i32) -> (i32, i32) {
    %c0_i32 = arith.constant 0 : i32
    %c0_i32_0 = arith.constant 0 : i32
    %c0_i32_1 = arith.constant 0 : i32
    return %c0_i32, %c0_i32_0 : i32, i32
  }
  func.func @transform_4(%arg0: i32) -> (i32, i32) {
    %c0_i32 = arith.constant 0 : i32
    %c0_i32_0 = arith.constant 0 : i32
    return %arg0, %c0_i32 : i32, i32
  }
  func.func @transform_5(%arg0: i32) -> (i32, i32, i32) {
    %c0_i32 = arith.constant 0 : i32
    %c0_i32_0 = arith.constant 0 : i32
    %c0_i32_1 = arith.constant 0 : i32
    return %arg0, %c0_i32, %c0_i32_0 : i32, i32, i32
  }
}

module attributes {stable_mosaic.version = 11 : i64} {
  func.func @_bn3_residual_kernel(%arg0: i32, %arg1: memref<128x16xbf16, #tpu.memory_space<vmem>>, %arg2: memref<128x16xbf16, #tpu.memory_space<vmem>>, %arg3: memref<1x16xf32, #tpu.memory_space<vmem>>, %arg4: memref<1x16xf32, #tpu.memory_space<vmem>>, %arg5: memref<128x16xf32, #tpu.memory_space<vmem>>) attributes {dimension_semantics = [#tpu.dimension_semantics<parallel>], iteration_bounds = array<i64: 4>, scalar_prefetch = 0 : i64, scratch_operands = 0 : i64, tpu.core_type = #tpu.core_type<tc>, window_params = [{transform_indices = @transform_0, window_bounds = array<i64: 128, 16>}, {transform_indices = @transform_1, window_bounds = array<i64: 128, 16>}, {pipeline_mode = #tpu.pipeline_mode<synchronous>, transform_indices = @transform_2, window_bounds = array<i64: 1, 16>}, {pipeline_mode = #tpu.pipeline_mode<synchronous>, transform_indices = @transform_3, window_bounds = array<i64: 1, 16>}, {transform_indices = @transform_4, window_bounds = array<i64: 128, 16>}]} {
    %c0 = arith.constant 0 : index
    %c0_0 = arith.constant 0 : index
    %0 = vector.load %arg1[%c0, %c0_0] : memref<128x16xbf16, #tpu.memory_space<vmem>>, vector<128x16xbf16>
    %1 = arith.extf %0 : vector<128x16xbf16> to vector<128x16xf32>
    %c0_1 = arith.constant 0 : index
    %c0_2 = arith.constant 0 : index
    %2 = vector.load %arg3[%c0_1, %c0_2] : memref<1x16xf32, #tpu.memory_space<vmem>>, vector<1x16xf32>
    %3 = vector.broadcast %2 : vector<1x16xf32> to vector<128x16xf32>
    %4 = arith.mulf %1, %3 : vector<128x16xf32>
    %c0_3 = arith.constant 0 : index
    %c0_4 = arith.constant 0 : index
    %5 = vector.load %arg4[%c0_3, %c0_4] : memref<1x16xf32, #tpu.memory_space<vmem>>, vector<1x16xf32>
    %6 = vector.broadcast %5 : vector<1x16xf32> to vector<128x16xf32>
    %7 = arith.addf %4, %6 : vector<128x16xf32>
    %c0_5 = arith.constant 0 : index
    %c0_6 = arith.constant 0 : index
    %8 = vector.load %arg2[%c0_5, %c0_6] : memref<128x16xbf16, #tpu.memory_space<vmem>>, vector<128x16xbf16>
    %9 = arith.extf %8 : vector<128x16xbf16> to vector<128x16xf32>
    %10 = arith.addf %7, %9 : vector<128x16xf32>
    %cst = arith.constant 0.000000e+00 : f32
    %11 = vector.broadcast %cst : f32 to vector<128x16xf32>
    %12 = arith.maximumf %10, %11 : vector<128x16xf32>
    %c0_7 = arith.constant 0 : index
    %c0_8 = arith.constant 0 : index
    %13 = vector.load %arg5[%c0_7, %c0_8] : memref<128x16xf32, #tpu.memory_space<vmem>>, vector<128x16xf32>
    tpu.vector_store %arg5[%c0_7, %c0_8], %12 {strides = array<i32>} : memref<128x16xf32, #tpu.memory_space<vmem>>, vector<128x16xf32>,
    return
  }
  func.func @transform_0(%arg0: i32) -> (i32, i32) {
    %c0_i32 = arith.constant 0 : i32
    %c0_i32_0 = arith.constant 0 : i32
    return %arg0, %c0_i32 : i32, i32
  }
  func.func @transform_1(%arg0: i32) -> (i32, i32) {
    %c0_i32 = arith.constant 0 : i32
    %c0_i32_0 = arith.constant 0 : i32
    return %arg0, %c0_i32 : i32, i32
  }
  func.func @transform_2(%arg0: i32) -> (i32, i32) {
    %c0_i32 = arith.constant 0 : i32
    %c0_i32_0 = arith.constant 0 : i32
    %c0_i32_1 = arith.constant 0 : i32
    return %c0_i32, %c0_i32_0 : i32, i32
  }
  func.func @transform_3(%arg0: i32) -> (i32, i32) {
    %c0_i32 = arith.constant 0 : i32
    %c0_i32_0 = arith.constant 0 : i32
    %c0_i32_1 = arith.constant 0 : i32
    return %c0_i32, %c0_i32_0 : i32, i32
  }
  func.func @transform_4(%arg0: i32) -> (i32, i32) {
    %c0_i32 = arith.constant 0 : i32
    %c0_i32_0 = arith.constant 0 : i32
    return %arg0, %c0_i32 : i32, i32
  }
}

</mosaic_0001>

<llo_original>
// kernel: identity_block_forward.6
$region0: #{identity_block_forward.6}
  #allocation0 [shape = 'u32[]', space=smem, size = 0x4, offset = 0x4, fixed_abs, tag = 'smem constant byte address 0x4 - core index']
  #allocation1 [shape = 'u32[144,128]{1,0:T(1,128)}', space=vmem, size = 0x12000, scoped, tag = 'internal scratch']
  %s0 = inlined_call_operand.vmem [shape: bf16[512,4], index: 0, kind: input, shape index: {}]
  %s1 = inlined_call_operand.vmem [shape: bf16[4,16], index: 1, kind: input, shape index: {}]
  %s2 = inlined_call_operand.vmem [shape: f32[1,4], index: 2, kind: input, shape index: {}]
  %s3 = inlined_call_operand.vmem [shape: f32[1,4], index: 3, kind: input, shape index: {}]
  %s4 = inlined_call_operand.vmem [shape: bf16[512,16], index: 4, kind: output, shape index: {0}]
  %s5 = inlined_call_operand.vmem [shape: f32[4,2,16], index: 5, kind: output, shape index: {1}]
  %6 = xla_tuple %s4, %s5
  %s7 = sld [smem:[#allocation0]]
  $region57: #{identity_block_forward.6} parent=0
    _
  %s9 = ssub.s32 1, %s7
  %s10 = scalar_select 0, %s9, %s7
  loop: start=0, step=1, limit=6
  $region2: #{identity_block_forward.6} parent=0 // loop_pre_header
    _
  $region3: #{identity_block_forward.6} parent=0 // loop_header
    %s12 = sphi 0, %s16
    %p13 = scmp.ge.s32.totalorder %s12, 6
    %s22 = sphi 0, %s24
    %s25 = sphi 0, %s22
    %s26 = sphi 0, %s25
    %s42 = sphi 0, %s26
    %s46 = sphi 0, %s46
    %s48 = sphi 0, %s46
    %s49 = sphi 0, %s48
    %s63 = sphi 0, %s49
    %s67 = sphi 0, %s67
    %s69 = sphi 0, %s67
    %s70 = sphi 0, %s69
    %s84 = sphi 0, %s70
    %s88 = sphi 0, %s88
    %s90 = sphi 0, %s88
    %s91 = sphi 0, %s90
    %s105 = sphi 0, %s91
    %s111 = sphi 0, %s113
    %s114 = sphi 0, %s111
    %s115 = sphi 0, %s114
    %s131 = sphi 0, %s115
    %s137 = sphi 0, %s139
    %s140 = sphi 0, %s137
    %s141 = sphi 0, %s140
    %s157 = sphi 0, %s141
  $region4: #{identity_block_forward.6} parent=0 // loop_header_branch
    %15 = sbr.rel (%p13) target = $region8
  $region5: #{identity_block_forward.6} parent=0 // loop_body
    %s17 = ssub.s32 %s12, 1
    %s18 = ssub.s32 %s12, 2
    %s19 = sadd.s32 %s12, 1
    %s20 = ssub.s32 %s12, %s19
    %p21 = scmp.eq.s32.totalorder %s20, 0
    %s23 = sadd.s32 %s22, 1
    %s24 = scalar_select %p21, %s22, %s23
    %p27 = pneg %p21
    %p28 = scmp.eq.s32.totalorder %s12, 3
    %p29 = por %p27, %p28
    %p30 = scmp.ne.s32.totalorder %s22, %s25
    %p31 = scmp.eq.s32.totalorder %s12, 0
    %p32 = por %p30, %p31
    %p33 = scmp.ne.s32.totalorder %s22, %s25
    %p34 = scmp.eq.s32.totalorder %s17, 3
    %p35 = por %p33, %p34
    %p36 = scmp.ne.s32.totalorder %s25, %s26
    %p37 = scmp.eq.s32.totalorder %s17, 0
    %p38 = por %p36, %p37
    %p39 = scmp.ne.s32.totalorder %s25, %s26
    %p40 = scmp.eq.s32.totalorder %s18, 3
    %p41 = por %p39, %p40
    %p43 = scmp.ne.s32.totalorder %s26, %s42
    %p44 = scmp.eq.s32.totalorder %s18, 0
    %p45 = por %p43, %p44
    %s47 = sadd.s32 %s46, 1
    %p50 = scmp.eq.s32.totalorder %s12, 3
    %p51 = scmp.ne.s32.totalorder %s46, %s48
    %p52 = scmp.eq.s32.totalorder %s12, 0
    %p53 = por %p51, %p52
    %p54 = scmp.ne.s32.totalorder %s46, %s48
    %p55 = scmp.eq.s32.totalorder %s17, 3
    %p56 = por %p54, %p55
    %p57 = scmp.ne.s32.totalorder %s48, %s49
    %p58 = scmp.eq.s32.totalorder %s17, 0
    %p59 = por %p57, %p58
    %p60 = scmp.ne.s32.totalorder %s48, %s49
    %p61 = scmp.eq.s32.totalorder %s18, 3
    %p62 = por %p60, %p61
    %p64 = scmp.ne.s32.totalorder %s49, %s63
    %p65 = scmp.eq.s32.totalorder %s18, 0
    %p66 = por %p64, %p65
    %s68 = sadd.s32 %s67, 1
    %p71 = scmp.eq.s32.totalorder %s12, 3
    %p72 = scmp.ne.s32.totalorder %s67, %s69
    %p73 = scmp.eq.s32.totalorder %s12, 0
    %p74 = por %p72, %p73
    %p75 = scmp.ne.s32.totalorder %s67, %s69
    %p76 = scmp.eq.s32.totalorder %s17, 3
    %p77 = por %p75, %p76
    %p78 = scmp.ne.s32.totalorder %s69, %s70
    %p79 = scmp.eq.s32.totalorder %s17, 0
    %p80 = por %p78, %p79
    %p81 = scmp.ne.s32.totalorder %s69, %s70
    %p82 = scmp.eq.s32.totalorder %s18, 3
    %p83 = por %p81, %p82
    %p85 = scmp.ne.s32.totalorder %s70, %s84
    %p86 = scmp.eq.s32.totalorder %s18, 0
    %p87 = por %p85, %p86
    %s89 = sadd.s32 %s88, 1
    %p92 = scmp.eq.s32.totalorder %s12, 3
    %p93 = scmp.ne.s32.totalorder %s88, %s90
    %p94 = scmp.eq.s32.totalorder %s12, 0
    %p95 = por %p93, %p94
    %p96 = scmp.ne.s32.totalorder %s88, %s90
    %p97 = scmp.eq.s32.totalorder %s17, 3
    %p98 = por %p96, %p97
    %p99 = scmp.ne.s32.totalorder %s90, %s91
    %p100 = scmp.eq.s32.totalorder %s17, 0
    %p101 = por %p99, %p100
    %p102 = scmp.ne.s32.totalorder %s90, %s91
    %p103 = scmp.eq.s32.totalorder %s18, 3
    %p104 = por %p102, %p103
    %p106 = scmp.ne.s32.totalorder %s91, %s105
    %p107 = scmp.eq.s32.totalorder %s18, 0
    %p108 = por %p106, %p107
    %s109 = ssub.s32 %s12, %s19
    %p110 = scmp.eq.s32.totalorder %s109, 0
    %s112 = sadd.s32 %s111, 1
    %s113 = scalar_select %p110, %s111, %s112
    %p116 = pneg %p110
    %p117 = scmp.eq.s32.totalorder %s12, 3
    %p118 = por %p116, %p117
    %p119 = scmp.ne.s32.totalorder %s111, %s114
    %p120 = scmp.eq.s32.totalorder %s12, 0
    %p121 = por %p119, %p120
    %p122 = scmp.ne.s32.totalorder %s111, %s114
    %p123 = scmp.eq.s32.totalorder %s17, 3
    %p124 = por %p122, %p123
    %p125 = scmp.ne.s32.totalorder %s114, %s115
    %p126 = scmp.eq.s32.totalorder %s17, 0
    %p127 = por %p125, %p126
    %p128 = scmp.ne.s32.totalorder %s114, %s115
    %p129 = scmp.eq.s32.totalorder %s18, 3
    %p130 = por %p128, %p129
    %p132 = scmp.ne.s32.totalorder %s115, %s131
    %p133 = scmp.eq.s32.totalorder %s18, 0
    %p134 = por %p132, %p133
    %s135 = ssub.s32 %s12, %s19
    %p136 = scmp.eq.s32.totalorder %s135, 0
    %s138 = sadd.s32 %s137, 1
    %s139 = scalar_select %p136, %s137, %s138
    %p142 = pneg %p136
    %p143 = scmp.eq.s32.totalorder %s12, 3
    %p144 = por %p142, %p143
    %p145 = scmp.ne.s32.totalorder %s137, %s140
    %p146 = scmp.eq.s32.totalorder %s12, 0
    %p147 = por %p145, %p146
    %p148 = scmp.ne.s32.totalorder %s137, %s140
    %p149 = scmp.eq.s32.totalorder %s17, 3
    %p150 = por %p148, %p149
    %p151 = scmp.ne.s32.totalorder %s140, %s141
    %p152 = scmp.eq.s32.totalorder %s17, 0
    %p153 = por %p151, %p152
    %p154 = scmp.ne.s32.totalorder %s140, %s141
    %p155 = scmp.eq.s32.totalorder %s18, 3
    %p156 = por %p154, %p155
    %p158 = scmp.ne.s32.totalorder %s141, %s157
    %p159 = scmp.eq.s32.totalorder %s18, 0
    %p160 = por %p158, %p159
    %p161 = scmp.le.s32.totalorder 1, %s12
    %p162 = scmp.lt.s32.totalorder %s12, 5
    %p163 = pnand %p161, %p162
    %p164 = pneg %p163
    // Predicated region
    $region9: #{identity_block_forward.6} parent=5 // pred_check
      _
    $region10: #{identity_block_forward.6} parent=5 // pred_check_branch
      %166 = sbr.rel (%p163) target = $region12
    $region11: #{identity_block_forward.6} parent=5 // pred_region
      %s167 = ssub.s32 %s12, 1
      // Predicated region
      $region13: #{identity_block_forward.6} parent=11 // pred_check
        %p168 = pneg %p59
      $region14: #{identity_block_forward.6} parent=11 // pred_check_branch
        %170 = sbr.rel (%p168) target = $region16
      $region15: #{identity_block_forward.6} parent=11 // pred_region
        _
      $region16: #{identity_block_forward.6} parent=11 // pred_fallthru
        _
      // Predicated region
      $region17: #{identity_block_forward.6} parent=11 // pred_check
        %p171 = pneg %p80
      $region18: #{identity_block_forward.6} parent=11 // pred_check_branch
        %173 = sbr.rel (%p171) target = $region20
      $region19: #{identity_block_forward.6} parent=11 // pred_region
        _
      $region20: #{identity_block_forward.6} parent=11 // pred_fallthru
        _
      // Predicated region
      $region21: #{identity_block_forward.6} parent=11 // pred_check
        %p174 = pneg %p101
      $region22: #{identity_block_forward.6} parent=11 // pred_check_branch
        %176 = sbr.rel (%p174) target = $region24
      $region23: #{identity_block_forward.6} parent=11 // pred_region
        _
      $region24: #{identity_block_forward.6} parent=11 // pred_fallthru
        _
    $region12: #{identity_block_forward.6} parent=5 // pred_fallthru
      _
    %p177 = scmp.lt.s32.totalorder %s12, 4
    // Predicated region
    $region25: #{identity_block_forward.6} parent=5 // pred_check
      %p178 = pneg %p177
    $region26: #{identity_block_forward.6} parent=5 // pred_check_branch
      %180 = sbr.rel (%p178) target = $region28
    $region27: #{identity_block_forward.6} parent=5 // pred_region
      // Predicated region
      $region29: #{identity_block_forward.6} parent=27 // pred_check
        %p181 = pneg %p32
      $region30: #{identity_block_forward.6} parent=27 // pred_check_branch
        %183 = sbr.rel (%p181) target = $region32
      $region31: #{identity_block_forward.6} parent=27 // pred_region
        %s184 = smul.u32 16, %s12
        %p185 = scmp.lt.s32.totalorder %s184, 63
        %s186 = scalar_select %p185, %s184, 63
        %s187 = smul.addr %s186, 4
        %s188 = scalar_lea.vmem %s0, %s187
        %s189 = smul.u32 16, %s12
      $region32: #{identity_block_forward.6} parent=27 // pred_fallthru
        _
    $region28: #{identity_block_forward.6} parent=5 // pred_fallthru
      _
    %p190 = scmp.le.s32.totalorder 1, %s12
    %p191 = scmp.lt.s32.totalorder %s12, 5
    %p192 = pnand %p190, %p191
    %p193 = pneg %p192
    // Predicated region
    $region33: #{identity_block_forward.6} parent=5 // pred_check
      _
    $region34: #{identity_block_forward.6} parent=5 // pred_check_branch
      %195 = sbr.rel (%p192) target = $region36
    $region35: #{identity_block_forward.6} parent=5 // pred_region
      %s196 = ssub.s32 %s12, 1
      %s197 = smul.u32 16, %s17
      %p198 = scmp.lt.s32.totalorder %s197, 63
      %s199 = scalar_select %p198, %s197, 63
      %s200 = smul.addr %s199, 4
      %s201 = scalar_lea.vmem %s0, %s200
      %p202 = pneg %p38
      %p203 = pneg %p35
      %p204 = pneg %p59
      %p205 = pneg %p56
      %p206 = pneg %p80
      %p207 = pneg %p77
      %p208 = pneg %p101
      %p209 = pneg %p98
      %p210 = pneg %p127
      %p211 = pneg %p124
      %s212 = smul.u32 16, %s17
      %p213 = scmp.lt.s32.totalorder %s212, 63
      %s214 = scalar_select %p213, %s212, 63
      %s215 = smul.addr %s214, 4
      %s216 = scalar_lea.vmem %s4, %s215
      %p217 = pneg %p153
      %p218 = pneg %p150
      %p219 = scmp.lt.s32.totalorder %s17, 3
      %s220 = scalar_select %p219, %s17, 3
      %s221 = smul.addr %s220, 2
      %s222 = scalar_lea.vmem %s5, %s221
      %s223 = smul.u32 16, %s17
      %p224 = scmp.lt.s32.totalorder %s223, 63
      %s225 = scalar_select %p224, %s223, 63
      %s226 = smul.addr %s225, 4
      %s227 = scalar_lea.vmem %s0, %s226
      %s228 = smul.u32 16, %s17
      %s229 = smul.u32 16, %s17
      %p230 = scmp.lt.s32.totalorder %s229, 63
      %s231 = scalar_select %p230, %s229, 63
      %s232 = smul.addr %s231, 4
      %s233 = scalar_lea.vmem %s4, %s232
      %s234 = smul.u32 16, %s17
      %p235 = scmp.lt.s32.totalorder %s17, 3
      %s236 = scalar_select %p235, %s17, 3
      %s237 = smul.addr %s236, 2
      %s238 = scalar_lea.vmem %s5, %s237
      %v240 = vld [vmem:[%s227] sm:$0xf]
      %v241 = vld [vmem:[%s227 + $0x4] sm:$0xf]
      %v242 = vld [vmem:[%s227 + $0x8] sm:$0xf]
      %v243 = vld [vmem:[%s227 + $0xc] sm:$0xf]
      %v244 = vld [vmem:[%s227 + $0x10] sm:$0xf]
      %v245 = vld [vmem:[%s227 + $0x14] sm:$0xf]
      %v246 = vld [vmem:[%s227 + $0x18] sm:$0xf]
      %v247 = vld [vmem:[%s227 + $0x1c] sm:$0xf]
      %v248 = vld [vmem:[%s227 + $0x20] sm:$0xf]
      %v249 = vld [vmem:[%s227 + $0x24] sm:$0xf]
      %v250 = vld [vmem:[%s227 + $0x28] sm:$0xf]
      %v251 = vld [vmem:[%s227 + $0x2c] sm:$0xf]
      %v252 = vld [vmem:[%s227 + $0x30] sm:$0xf]
      %v253 = vld [vmem:[%s227 + $0x34] sm:$0xf]
      %v254 = vld [vmem:[%s227 + $0x38] sm:$0xf]
      %v255 = vld [vmem:[%s227 + $0x3c] sm:$0xf]
      %v256 = vunpack.c.l.bf16 %v240
      %v257 = vunpack.c.l.bf16 %v241
      %v258 = vunpack.c.l.bf16 %v242
      %v259 = vunpack.c.l.bf16 %v243
      %v260 = vunpack.c.l.bf16 %v244
      %v261 = vunpack.c.l.bf16 %v245
      %v262 = vunpack.c.l.bf16 %v246
      %v263 = vunpack.c.l.bf16 %v247
      %v264 = vunpack.c.l.bf16 %v248
      %v265 = vunpack.c.l.bf16 %v249
      %v266 = vunpack.c.l.bf16 %v250
      %v267 = vunpack.c.l.bf16 %v251
      %v268 = vunpack.c.l.bf16 %v252
      %v269 = vunpack.c.l.bf16 %v253
      %v270 = vunpack.c.l.bf16 %v254
      %v271 = vunpack.c.l.bf16 %v255
      %v272 = vld [vmem:[%s2] sm:$0x1]
      %v274 = vlaneseq
      %v275 = vshrl.u32 %v274, 7
      %v276 = vsub.s32 0, %v275
      %v277 = vrot.slane %v272, %v276
      %v279 = vmul.f32 %v256, %v277
      %v280 = vmul.f32 %v257, %v277
      %v281 = vmul.f32 %v258, %v277
      %v282 = vmul.f32 %v259, %v277
      %v283 = vmul.f32 %v260, %v277
      %v284 = vmul.f32 %v261, %v277
      %v285 = vmul.f32 %v262, %v277
      %v286 = vmul.f32 %v263, %v277
      %v287 = vmul.f32 %v264, %v277
      %v288 = vmul.f32 %v265, %v277
      %v289 = vmul.f32 %v266, %v277
      %v290 = vmul.f32 %v267, %v277
      %v291 = vmul.f32 %v268, %v277
      %v292 = vmul.f32 %v269, %v277
      %v293 = vmul.f32 %v270, %v277
      %v294 = vmul.f32 %v271, %v277
      %v295 = vld [vmem:[%s3] sm:$0x1]
      %v297 = vlaneseq
      %v298 = vshrl.u32 %v297, 7
      %v299 = vsub.s32 0, %v298
      %v300 = vrot.slane %v295, %v299
      %v302 = vadd.f32 %v279, %v300
      %v303 = vadd.f32 %v280, %v300
      %v304 = vadd.f32 %v281, %v300
      %v305 = vadd.f32 %v282, %v300
      %v306 = vadd.f32 %v283, %v300
      %v307 = vadd.f32 %v284, %v300
      %v308 = vadd.f32 %v285, %v300
      %v309 = vadd.f32 %v286, %v300
      %v310 = vadd.f32 %v287, %v300
      %v311 = vadd.f32 %v288, %v300
      %v312 = vadd.f32 %v289, %v300
      %v313 = vadd.f32 %v290, %v300
      %v314 = vadd.f32 %v291, %v300
      %v315 = vadd.f32 %v292, %v300
      %v316 = vadd.f32 %v293, %v300
      %v317 = vadd.f32 %v294, %v300
      %v318 = vmax.f32 %v302, 0.0
      %v319 = vmax.f32 %v303, 0.0
      %v320 = vmax.f32 %v304, 0.0
      %v321 = vmax.f32 %v305, 0.0
      %v322 = vmax.f32 %v306, 0.0
      %v323 = vmax.f32 %v307, 0.0
      %v324 = vmax.f32 %v308, 0.0
      %v325 = vmax.f32 %v309, 0.0
      %v326 = vmax.f32 %v310, 0.0
      %v327 = vmax.f32 %v311, 0.0
      %v328 = vmax.f32 %v312, 0.0
      %v329 = vmax.f32 %v313, 0.0
      %v330 = vmax.f32 %v314, 0.0
      %v331 = vmax.f32 %v315, 0.0
      %v332 = vmax.f32 %v316, 0.0
      %v333 = vmax.f32 %v317, 0.0
      %v334 = vpack.c.bf16 %v319, %v318
      %v335 = vpack.c.bf16 %v321, %v320
      %v336 = vpack.c.bf16 %v323, %v322
      %v337 = vpack.c.bf16 %v325, %v324
      %v338 = vpack.c.bf16 %v327, %v326
      %v339 = vpack.c.bf16 %v329, %v328
      %v340 = vpack.c.bf16 %v331, %v330
      %v341 = vpack.c.bf16 %v333, %v332
      %v342 = vld [vmem:[%s1] sm:$0x3]
      %vm343 = vcmask 31744
      %v345 = vsel %vm343, %v334, 0
      %v348 = vsel %vm343, %v335, 0
      %v351 = vsel %vm343, %v336, 0
      %v354 = vsel %vm343, %v337, 0
      %v357 = vsel %vm343, %v338, 0
      %v360 = vsel %vm343, %v339, 0
      %v363 = vsel %vm343, %v340, 0
      %v366 = vsel %vm343, %v341, 0
      %vm368 = vcmask 1041408
      %v370 = vsel %vm368, %v342, 0
      %372 = vmatprep.subr.bf16.mxu0 0
      %373 = vmatpush1.bf16.msra.mxu0 0
      %374 = vmatprep.subr.bf16.mxu0 0
      %375 = vmatpush1.bf16.msra.mxu0 0
      %376 = vmatprep.subr.bf16.mxu0 0
      %377 = vmatpush1.bf16.msra.mxu0 0
      %378 = vmatprep.subr.bf16.mxu0 0
      %379 = vmatpush1.bf16.msra.mxu0 0
      %380 = vmatprep.subr.bf16.mxu0 0
      %381 = vmatpush1.bf16.msra.mxu0 0
      %382 = vmatprep.subr.bf16.mxu0 0
      %383 = vmatpush1.bf16.msra.mxu0 0
      %384 = vmatprep.subr.bf16.mxu0 0
      %385 = vmatpush1.bf16.msra.mxu0 0
      %386 = vmatprep.subr.bf16.mxu0 0
      %387 = vmatpush1.bf16.msra.mxu0 %v370
      %388 = vmatprep.subr.bf16.mxu0 0
      %389 = vmatpush2.bf16.msra.mxu0 0
      %390 = vmatprep.subr.bf16.mxu0 0
      %391 = vmatpush2.bf16.msra.mxu0 0
      %392 = vmatprep.subr.bf16.mxu0 0
      %393 = vmatpush2.bf16.msra.mxu0 0
      %394 = vmatprep.subr.bf16.mxu0 0
      %395 = vmatpush2.bf16.msra.mxu0 0
      %396 = vmatprep.subr.bf16.mxu0 0
      %397 = vmatpush2.bf16.msra.mxu0 0
      %398 = vmatprep.subr.bf16.mxu0 0
      %399 = vmatpush2.bf16.msra.mxu0 0
      %400 = vmatprep.subr.bf16.mxu0 0
      %401 = vmatpush2.bf16.msra.mxu0 0
      %402 = vmatprep.subr.bf16.mxu0 0
      %403 = vmatpush2.bf16.msra.mxu0 0
      %404 = vmatprep.mubr.bf16.mxu0 0
      %405 = vmatmul.mubr.bf16.gmra.mxu0 %v345
      %v406 = vpop.f32.mrf.mxu0
      %v407 = vadd.f32 0.0, %v406
      %v408 = vpop.f32.mrf.mxu0
      %v409 = vpop.f32.mrf.mxu0
      %v410 = vadd.f32 0.0, %v409
      %v411 = vpop.f32.mrf.mxu0
      %412 = vmatprep.mubr.bf16.mxu0 0
      %413 = vmatmul.mubr.bf16.gmra.mxu0 %v348
      %v414 = vpop.f32.mrf.mxu0
      %v415 = vadd.f32 0.0, %v414
      %v416 = vpop.f32.mrf.mxu0
      %v417 = vpop.f32.mrf.mxu0
      %v418 = vadd.f32 0.0, %v417
      %v419 = vpop.f32.mrf.mxu0
      %420 = vmatprep.mubr.bf16.mxu0 0
      %421 = vmatmul.mubr.bf16.gmra.mxu0 %v351
      %v422 = vpop.f32.mrf.mxu0
      %v423 = vadd.f32 0.0, %v422
      %v424 = vpop.f32.mrf.mxu0
      %v425 = vpop.f32.mrf.mxu0
      %v426 = vadd.f32 0.0, %v425
      %v427 = vpop.f32.mrf.mxu0
      %428 = vmatprep.mubr.bf16.mxu0 0
      %429 = vmatmul.mubr.bf16.gmra.mxu0 %v354
      %v430 = vpop.f32.mrf.mxu0
      %v431 = vadd.f32 0.0, %v430
      %v432 = vpop.f32.mrf.mxu0
      %v433 = vpop.f32.mrf.mxu0
      %v434 = vadd.f32 0.0, %v433
      %v435 = vpop.f32.mrf.mxu0
      %436 = vmatprep.mubr.bf16.mxu0 0
      %437 = vmatmul.mubr.bf16.gmra.mxu0 %v357
      %v438 = vpop.f32.mrf.mxu0
      %v439 = vadd.f32 0.0, %v438
      %v440 = vpop.f32.mrf.mxu0
      %v441 = vpop.f32.mrf.mxu0
      %v442 = vadd.f32 0.0, %v441
      %v443 = vpop.f32.mrf.mxu0
      %444 = vmatprep.mubr.bf16.mxu0 0
      %445 = vmatmul.mubr.bf16.gmra.mxu0 %v360
      %v446 = vpop.f32.mrf.mxu0
      %v447 = vadd.f32 0.0, %v446
      %v448 = vpop.f32.mrf.mxu0
      %v449 = vpop.f32.mrf.mxu0
      %v450 = vadd.f32 0.0, %v449
      %v451 = vpop.f32.mrf.mxu0
      %452 = vmatprep.mubr.bf16.mxu0 0
      %453 = vmatmul.mubr.bf16.gmra.mxu0 %v363
      %v454 = vpop.f32.mrf.mxu0
      %v455 = vadd.f32 0.0, %v454
      %v456 = vpop.f32.mrf.mxu0
      %v457 = vpop.f32.mrf.mxu0
      %v458 = vadd.f32 0.0, %v457
      %v459 = vpop.f32.mrf.mxu0
      %460 = vmatprep.mubr.bf16.mxu0 0
      %461 = vmatmul.mubr.bf16.gmra.mxu0 %v366
      %v462 = vpop.f32.mrf.mxu0
      %v463 = vadd.f32 0.0, %v462
      %v464 = vpop.f32.mrf.mxu0
      %v465 = vpop.f32.mrf.mxu0
      %v466 = vadd.f32 0.0, %v465
      %v467 = vpop.f32.mrf.mxu0
      %468 = vdwg.mxu0
      %vm469 = vcmask 130048
      %v470 = vsel %vm469, %v407, 0.0
      %v471 = vsel %vm469, %v410, 0.0
      %v472 = vadd.f32 %v470, %v471
      %v473 = vsel %vm469, %v415, 0.0
      %v474 = vadd.f32 %v472, %v473
      %v475 = vsel %vm469, %v418, 0.0
      %v476 = vadd.f32 %v474, %v475
      %v477 = vsel %vm469, %v423, 0.0
      %v478 = vadd.f32 %v476, %v477
      %v479 = vsel %vm469, %v426, 0.0
      %v480 = vadd.f32 %v478, %v479
      %v481 = vsel %vm469, %v431, 0.0
      %v482 = vadd.f32 %v480, %v481
      %v483 = vsel %vm469, %v434, 0.0
      %v484 = vadd.f32 %v482, %v483
      %v485 = vsel %vm469, %v439, 0.0
      %v486 = vadd.f32 %v484, %v485
      %v487 = vsel %vm469, %v442, 0.0
      %v488 = vadd.f32 %v486, %v487
      %v489 = vsel %vm469, %v447, 0.0
      %v490 = vadd.f32 %v488, %v489
      %v491 = vsel %vm469, %v450, 0.0
      %v492 = vadd.f32 %v490, %v491
      %v493 = vsel %vm469, %v455, 0.0
      %v494 = vadd.f32 %v492, %v493
      %v495 = vsel %vm469, %v458, 0.0
      %v496 = vadd.f32 %v494, %v495
      %v497 = vsel %vm469, %v463, 0.0
      %v498 = vadd.f32 %v496, %v497
      %v499 = vsel %vm469, %v466, 0.0
      %v500 = vadd.f32 %v498, %v499
      %v501 = vrot.slane %v500, 4
      %v502 = vadd.f32 %v500, %v501
      %v503 = vrot.slane %v502, 2
      %v504 = vadd.f32 %v502, %v503
      %v505 = vrot.slane %v504, 1
      %v506 = vadd.f32 %v504, %v505
      %v507 = vmul.f32 %v407, %v407
      %v508 = vmul.f32 %v410, %v410
      %v509 = vmul.f32 %v415, %v415
      %v510 = vmul.f32 %v418, %v418
      %v511 = vmul.f32 %v423, %v423
      %v512 = vmul.f32 %v426, %v426
      %v513 = vmul.f32 %v431, %v431
      %v514 = vmul.f32 %v434, %v434
      %v515 = vmul.f32 %v439, %v439
      %v516 = vmul.f32 %v442, %v442
      %v517 = vmul.f32 %v447, %v447
      %v518 = vmul.f32 %v450, %v450
      %v519 = vmul.f32 %v455, %v455
      %v520 = vmul.f32 %v458, %v458
      %v521 = vmul.f32 %v463, %v463
      %v522 = vmul.f32 %v466, %v466
      %v523 = vsel %vm469, %v507, 0.0
      %v524 = vsel %vm469, %v508, 0.0
      %v525 = vadd.f32 %v523, %v524
      %v526 = vsel %vm469, %v509, 0.0
      %v527 = vadd.f32 %v525, %v526
      %v528 = vsel %vm469, %v510, 0.0
      %v529 = vadd.f32 %v527, %v528
      %v530 = vsel %vm469, %v511, 0.0
      %v531 = vadd.f32 %v529, %v530
      %v532 = vsel %vm469, %v512, 0.0
      %v533 = vadd.f32 %v531, %v532
      %v534 = vsel %vm469, %v513, 0.0
      %v535 = vadd.f32 %v533, %v534
      %v536 = vsel %vm469, %v514, 0.0
      %v537 = vadd.f32 %v535, %v536
      %v538 = vsel %vm469, %v515, 0.0
      %v539 = vadd.f32 %v537, %v538
      %v540 = vsel %vm469, %v516, 0.0
      %v541 = vadd.f32 %v539, %v540
      %v542 = vsel %vm469, %v517, 0.0
      %v543 = vadd.f32 %v541, %v542
      %v544 = vsel %vm469, %v518, 0.0
      %v545 = vadd.f32 %v543, %v544
      %v546 = vsel %vm469, %v519, 0.0
      %v547 = vadd.f32 %v545, %v546
      %v548 = vsel %vm469, %v520, 0.0
      %v549 = vadd.f32 %v547, %v548
      %v550 = vsel %vm469, %v521, 0.0
      %v551 = vadd.f32 %v549, %v550
      %v552 = vsel %vm469, %v522, 0.0
      %v553 = vadd.f32 %v551, %v552
      %v554 = vrot.slane %v553, 4
      %v555 = vadd.f32 %v553, %v554
      %v556 = vrot.slane %v555, 2
      %v557 = vadd.f32 %v555, %v556
      %v558 = vrot.slane %v557, 1
      %v559 = vadd.f32 %v557, %v558
      %vm560 = vcmask 1040384
      %v561 = vsel %vm560, %v506, %v559
      %vm562 = vcmask 123904
      %563 = vst.msk [vmem:[%s238] sm:$0x3] %vm562, %v561
      %v564 = vpack.c.bf16 %v410, %v407
      %v565 = vpack.c.bf16 %v418, %v415
      %v566 = vpack.c.bf16 %v426, %v423
      %v567 = vpack.c.bf16 %v434, %v431
      %v568 = vpack.c.bf16 %v442, %v439
      %v569 = vpack.c.bf16 %v450, %v447
      %v570 = vpack.c.bf16 %v458, %v455
      %v571 = vpack.c.bf16 %v466, %v463
      %v580 = vunpack.c.l.b16 %v564
      %v581 = vunpack.c.h.b16 %v564
      %v582 = vunpack.c.l.b16 %v565
      %v583 = vunpack.c.h.b16 %v565
      %v584 = vunpack.c.l.b16 %v566
      %v585 = vunpack.c.h.b16 %v566
      %v586 = vunpack.c.l.b16 %v567
      %v587 = vunpack.c.h.b16 %v567
      %v588 = vunpack.c.l.b16 %v568
      %v589 = vunpack.c.h.b16 %v568
      %v590 = vunpack.c.l.b16 %v569
      %v591 = vunpack.c.h.b16 %v569
      %v592 = vunpack.c.l.b16 %v570
      %v593 = vunpack.c.h.b16 %v570
      %v594 = vunpack.c.l.b16 %v571
      %v595 = vunpack.c.h.b16 %v571
      %v596 = vpack.c.b16 %v580, %v580
      %v597 = vpack.c.b16 %v581, %v581
      %v598 = vpack.c.b16 %v582, %v582
      %v599 = vpack.c.b16 %v583, %v583
      %v600 = vpack.c.b16 %v584, %v584
      %v601 = vpack.c.b16 %v585, %v585
      %v602 = vpack.c.b16 %v586, %v586
      %v603 = vpack.c.b16 %v587, %v587
      %v604 = vpack.c.b16 %v588, %v588
      %v605 = vpack.c.b16 %v589, %v589
      %v606 = vpack.c.b16 %v590, %v590
      %v607 = vpack.c.b16 %v591, %v591
      %v608 = vpack.c.b16 %v592, %v592
      %v609 = vpack.c.b16 %v593, %v593
      %v610 = vpack.c.b16 %v594, %v594
      %v611 = vpack.c.b16 %v595, %v595
      %vm628 = vcmask 125952
      %629 = vst.msk [vmem:[%s233] sm:$0xf] %vm628, %v596
      %630 = vst.msk [vmem:[%s233 + $0x4] sm:$0xf] %vm628, %v597
      %631 = vst.msk [vmem:[%s233 + $0x8] sm:$0xf] %vm628, %v598
      %632 = vst.msk [vmem:[%s233 + $0xc] sm:$0xf] %vm628, %v599
      %633 = vst.msk [vmem:[%s233 + $0x10] sm:$0xf] %vm628, %v600
      %634 = vst.msk [vmem:[%s233 + $0x14] sm:$0xf] %vm628, %v601
      %635 = vst.msk [vmem:[%s233 + $0x18] sm:$0xf] %vm628, %v602
      %636 = vst.msk [vmem:[%s233 + $0x1c] sm:$0xf] %vm628, %v603
      %637 = vst.msk [vmem:[%s233 + $0x20] sm:$0xf] %vm628, %v604
      %638 = vst.msk [vmem:[%s233 + $0x24] sm:$0xf] %vm628, %v605
      %639 = vst.msk [vmem:[%s233 + $0x28] sm:$0xf] %vm628, %v606
      %640 = vst.msk [vmem:[%s233 + $0x2c] sm:$0xf] %vm628, %v607
      %641 = vst.msk [vmem:[%s233 + $0x30] sm:$0xf] %vm628, %v608
      %642 = vst.msk [vmem:[%s233 + $0x34] sm:$0xf] %vm628, %v609
      %643 = vst.msk [vmem:[%s233 + $0x38] sm:$0xf] %vm628, %v610
      %644 = vst.msk [vmem:[%s233 + $0x3c] sm:$0xf] %vm628, %v611
      %s645 = smul.u32 16, %s17
      %p646 = scmp.lt.s32.totalorder %s645, 63
      %s647 = scalar_select %p646, %s645, 63
      %s648 = smul.addr %s647, 4
      %s649 = scalar_lea.vmem %s4, %s648
      %p650 = scmp.lt.s32.totalorder %s17, 3
      %s651 = scalar_select %p650, %s17, 3
      %s652 = smul.addr %s651, 2
      %s653 = scalar_lea.vmem %s5, %s652
      // Predicated region
      $region37: #{identity_block_forward.6} parent=35 // pred_check
        %p654 = pneg %p124
      $region38: #{identity_block_forward.6} parent=35 // pred_check_branch
        %656 = sbr.rel (%p654) target = $region40
      $region39: #{identity_block_forward.6} parent=35 // pred_region
        %s657 = smul.u32 16, %s17
      $region40: #{identity_block_forward.6} parent=35 // pred_fallthru
        _
      // Predicated region
      $region41: #{identity_block_forward.6} parent=35 // pred_check
        %p658 = pneg %p150
      $region42: #{identity_block_forward.6} parent=35 // pred_check_branch
        %660 = sbr.rel (%p658) target = $region44
      $region43: #{identity_block_forward.6} parent=35 // pred_region
        _
      $region44: #{identity_block_forward.6} parent=35 // pred_fallthru
        _
    $region36: #{identity_block_forward.6} parent=5 // pred_fallthru
      _
    %p661 = scmp.le.s32.totalorder 2, %s12
    // Predicated region
    $region45: #{identity_block_forward.6} parent=5 // pred_check
      %p662 = pneg %p661
    $region46: #{identity_block_forward.6} parent=5 // pred_check_branch
      %664 = sbr.rel (%p662) target = $region48
    $region47: #{identity_block_forward.6} parent=5 // pred_region
      %s665 = ssub.s32 %s12, 2
      // Predicated region
      $region49: #{identity_block_forward.6} parent=47 // pred_check
        %p666 = pneg %p130
      $region50: #{identity_block_forward.6} parent=47 // pred_check_branch
        %668 = sbr.rel (%p666) target = $region52
      $region51: #{identity_block_forward.6} parent=47 // pred_region
        %s669 = smul.u32 16, %s18
        %p670 = scmp.lt.s32.totalorder %s669, 63
        %s671 = scalar_select %p670, %s669, 63
        %s672 = smul.addr %s671, 4
        %s673 = scalar_lea.vmem %s4, %s672
      $region52: #{identity_block_forward.6} parent=47 // pred_fallthru
        _
      // Predicated region
      $region53: #{identity_block_forward.6} parent=47 // pred_check
        %p674 = pneg %p156
      $region54: #{identity_block_forward.6} parent=47 // pred_check_branch
        %676 = sbr.rel (%p674) target = $region56
      $region55: #{identity_block_forward.6} parent=47 // pred_region
        %p677 = scmp.lt.s32.totalorder %s18, 3
        %s678 = scalar_select %p677, %s18, 3
        %s679 = smul.addr %s678, 2
        %s680 = scalar_lea.vmem %s5, %s679
      $region56: #{identity_block_forward.6} parent=47 // pred_fallthru
        _
    $region48: #{identity_block_forward.6} parent=5 // pred_fallthru
      _
  $region6: #{identity_block_forward.6} parent=0 // loop_footer
    %s16 = sadd.s32 1, %s12
  $region7: #{identity_block_forward.6} parent=0 // loop_footer_branch
    %11 = sbr.rel target = $region3
  $region8: #{identity_block_forward.6} parent=0 // loop_exit
    _

// kernel: identity_block_forward.4
$region0: #{identity_block_forward.4}
  #allocation0 [shape = 'u32[]', space=smem, size = 0x4, offset = 0x4, fixed_abs, tag = 'smem constant byte address 0x4 - core index']
  #allocation1 [shape = 'u32[144,128]{1,0:T(1,128)}', space=vmem, size = 0x12000, scoped, tag = 'internal scratch']
  %s0 = inlined_call_operand.vmem [shape: bf16[512,16], index: 0, kind: input, shape index: {}]
  %s1 = inlined_call_operand.vmem [shape: bf16[16,4], index: 1, kind: input, shape index: {}]
  %s2 = inlined_call_operand.vmem [shape: bf16[512,4], index: 2, kind: output, shape index: {0}]
  %s3 = inlined_call_operand.vmem [shape: f32[4,2,4], index: 3, kind: output, shape index: {1}]
  %4 = xla_tuple %s2, %s3
  %s5 = sld [smem:[#allocation0]]
  $region49: #{identity_block_forward.4} parent=0
    _
  %s7 = ssub.s32 1, %s5
  %s8 = scalar_select 0, %s7, %s5
  loop: start=0, step=1, limit=6
  $region2: #{identity_block_forward.4} parent=0 // loop_pre_header
    _
  $region3: #{identity_block_forward.4} parent=0 // loop_header
    %s10 = sphi 0, %s14
    %p11 = scmp.ge.s32.totalorder %s10, 6
    %s20 = sphi 0, %s22
    %s23 = sphi 0, %s20
    %s24 = sphi 0, %s23
    %s40 = sphi 0, %s24
    %s44 = sphi 0, %s44
    %s46 = sphi 0, %s44
    %s47 = sphi 0, %s46
    %s61 = sphi 0, %s47
    %s67 = sphi 0, %s69
    %s70 = sphi 0, %s67
    %s71 = sphi 0, %s70
    %s87 = sphi 0, %s71
    %s93 = sphi 0, %s95
    %s96 = sphi 0, %s93
    %s97 = sphi 0, %s96
    %s113 = sphi 0, %s97
  $region4: #{identity_block_forward.4} parent=0 // loop_header_branch
    %13 = sbr.rel (%p11) target = $region8
  $region5: #{identity_block_forward.4} parent=0 // loop_body
    %s15 = ssub.s32 %s10, 1
    %s16 = ssub.s32 %s10, 2
    %s17 = sadd.s32 %s10, 1
    %s18 = ssub.s32 %s10, %s17
    %p19 = scmp.eq.s32.totalorder %s18, 0
    %s21 = sadd.s32 %s20, 1
    %s22 = scalar_select %p19, %s20, %s21
    %p25 = pneg %p19
    %p26 = scmp.eq.s32.totalorder %s10, 3
    %p27 = por %p25, %p26
    %p28 = scmp.ne.s32.totalorder %s20, %s23
    %p29 = scmp.eq.s32.totalorder %s10, 0
    %p30 = por %p28, %p29
    %p31 = scmp.ne.s32.totalorder %s20, %s23
    %p32 = scmp.eq.s32.totalorder %s15, 3
    %p33 = por %p31, %p32
    %p34 = scmp.ne.s32.totalorder %s23, %s24
    %p35 = scmp.eq.s32.totalorder %s15, 0
    %p36 = por %p34, %p35
    %p37 = scmp.ne.s32.totalorder %s23, %s24
    %p38 = scmp.eq.s32.totalorder %s16, 3
    %p39 = por %p37, %p38
    %p41 = scmp.ne.s32.totalorder %s24, %s40
    %p42 = scmp.eq.s32.totalorder %s16, 0
    %p43 = por %p41, %p42
    %s45 = sadd.s32 %s44, 1
    %p48 = scmp.eq.s32.totalorder %s10, 3
    %p49 = scmp.ne.s32.totalorder %s44, %s46
    %p50 = scmp.eq.s32.totalorder %s10, 0
    %p51 = por %p49, %p50
    %p52 = scmp.ne.s32.totalorder %s44, %s46
    %p53 = scmp.eq.s32.totalorder %s15, 3
    %p54 = por %p52, %p53
    %p55 = scmp.ne.s32.totalorder %s46, %s47
    %p56 = scmp.eq.s32.totalorder %s15, 0
    %p57 = por %p55, %p56
    %p58 = scmp.ne.s32.totalorder %s46, %s47
    %p59 = scmp.eq.s32.totalorder %s16, 3
    %p60 = por %p58, %p59
    %p62 = scmp.ne.s32.totalorder %s47, %s61
    %p63 = scmp.eq.s32.totalorder %s16, 0
    %p64 = por %p62, %p63
    %s65 = ssub.s32 %s10, %s17
    %p66 = scmp.eq.s32.totalorder %s65, 0
    %s68 = sadd.s32 %s67, 1
    %s69 = scalar_select %p66, %s67, %s68
    %p72 = pneg %p66
    %p73 = scmp.eq.s32.totalorder %s10, 3
    %p74 = por %p72, %p73
    %p75 = scmp.ne.s32.totalorder %s67, %s70
    %p76 = scmp.eq.s32.totalorder %s10, 0
    %p77 = por %p75, %p76
    %p78 = scmp.ne.s32.totalorder %s67, %s70
    %p79 = scmp.eq.s32.totalorder %s15, 3
    %p80 = por %p78, %p79
    %p81 = scmp.ne.s32.totalorder %s70, %s71
    %p82 = scmp.eq.s32.totalorder %s15, 0
    %p83 = por %p81, %p82
    %p84 = scmp.ne.s32.totalorder %s70, %s71
    %p85 = scmp.eq.s32.totalorder %s16, 3
    %p86 = por %p84, %p85
    %p88 = scmp.ne.s32.totalorder %s71, %s87
    %p89 = scmp.eq.s32.totalorder %s16, 0
    %p90 = por %p88, %p89
    %s91 = ssub.s32 %s10, %s17
    %p92 = scmp.eq.s32.totalorder %s91, 0
    %s94 = sadd.s32 %s93, 1
    %s95 = scalar_select %p92, %s93, %s94
    %p98 = pneg %p92
    %p99 = scmp.eq.s32.totalorder %s10, 3
    %p100 = por %p98, %p99
    %p101 = scmp.ne.s32.totalorder %s93, %s96
    %p102 = scmp.eq.s32.totalorder %s10, 0
    %p103 = por %p101, %p102
    %p104 = scmp.ne.s32.totalorder %s93, %s96
    %p105 = scmp.eq.s32.totalorder %s15, 3
    %p106 = por %p104, %p105
    %p107 = scmp.ne.s32.totalorder %s96, %s97
    %p108 = scmp.eq.s32.totalorder %s15, 0
    %p109 = por %p107, %p108
    %p110 = scmp.ne.s32.totalorder %s96, %s97
    %p111 = scmp.eq.s32.totalorder %s16, 3
    %p112 = por %p110, %p111
    %p114 = scmp.ne.s32.totalorder %s97, %s113
    %p115 = scmp.eq.s32.totalorder %s16, 0
    %p116 = por %p114, %p115
    %p117 = scmp.le.s32.totalorder 1, %s10
    %p118 = scmp.lt.s32.totalorder %s10, 5
    %p119 = pnand %p117, %p118
    %p120 = pneg %p119
    // Predicated region
    $region9: #{identity_block_forward.4} parent=5 // pred_check
      _
    $region10: #{identity_block_forward.4} parent=5 // pred_check_branch
      %122 = sbr.rel (%p119) target = $region12
    $region11: #{identity_block_forward.4} parent=5 // pred_region
      %s123 = ssub.s32 %s10, 1
      // Predicated region
      $region13: #{identity_block_forward.4} parent=11 // pred_check
        %p124 = pneg %p57
      $region14: #{identity_block_forward.4} parent=11 // pred_check_branch
        %126 = sbr.rel (%p124) target = $region16
      $region15: #{identity_block_forward.4} parent=11 // pred_region
        _
      $region16: #{identity_block_forward.4} parent=11 // pred_fallthru
        _
    $region12: #{identity_block_forward.4} parent=5 // pred_fallthru
      _
    %p127 = scmp.lt.s32.totalorder %s10, 4
    // Predicated region
    $region17: #{identity_block_forward.4} parent=5 // pred_check
      %p128 = pneg %p127
    $region18: #{identity_block_forward.4} parent=5 // pred_check_branch
      %130 = sbr.rel (%p128) target = $region20
    $region19: #{identity_block_forward.4} parent=5 // pred_region
      // Predicated region
      $region21: #{identity_block_forward.4} parent=19 // pred_check
        %p131 = pneg %p30
      $region22: #{identity_block_forward.4} parent=19 // pred_check_branch
        %133 = sbr.rel (%p131) target = $region24
      $region23: #{identity_block_forward.4} parent=19 // pred_region
        %s134 = smul.u32 16, %s10
        %p135 = scmp.lt.s32.totalorder %s134, 63
        %s136 = scalar_select %p135, %s134, 63
        %s137 = smul.addr %s136, 4
        %s138 = scalar_lea.vmem %s0, %s137
        %s139 = smul.u32 16, %s10
      $region24: #{identity_block_forward.4} parent=19 // pred_fallthru
        _
    $region20: #{identity_block_forward.4} parent=5 // pred_fallthru
      _
    %p140 = scmp.le.s32.totalorder 1, %s10
    %p141 = scmp.lt.s32.totalorder %s10, 5
    %p142 = pnand %p140, %p141
    %p143 = pneg %p142
    // Predicated region
    $region25: #{identity_block_forward.4} parent=5 // pred_check
      _
    $region26: #{identity_block_forward.4} parent=5 // pred_check_branch
      %145 = sbr.rel (%p142) target = $region28
    $region27: #{identity_block_forward.4} parent=5 // pred_region
      %s146 = ssub.s32 %s10, 1
      %s147 = smul.u32 16, %s15
      %p148 = scmp.lt.s32.totalorder %s147, 63
      %s149 = scalar_select %p148, %s147, 63
      %s150 = smul.addr %s149, 4
      %s151 = scalar_lea.vmem %s0, %s150
      %p152 = pneg %p36
      %p153 = pneg %p33
      %p154 = pneg %p57
      %p155 = pneg %p54
      %p156 = pneg %p83
      %p157 = pneg %p80
      %s158 = smul.u32 16, %s15
      %p159 = scmp.lt.s32.totalorder %s158, 63
      %s160 = scalar_select %p159, %s158, 63
      %s161 = smul.addr %s160, 4
      %s162 = scalar_lea.vmem %s2, %s161
      %p163 = pneg %p109
      %p164 = pneg %p106
      %p165 = scmp.lt.s32.totalorder %s15, 3
      %s166 = scalar_select %p165, %s15, 3
      %s167 = smul.addr %s166, 2
      %s168 = scalar_lea.vmem %s3, %s167
      %s169 = smul.u32 16, %s15
      %p170 = scmp.lt.s32.totalorder %s169, 63
      %s171 = scalar_select %p170, %s169, 63
      %s172 = smul.addr %s171, 4
      %s173 = scalar_lea.vmem %s0, %s172
      %s174 = smul.u32 16, %s15
      %s175 = smul.u32 16, %s15
      %p176 = scmp.lt.s32.totalorder %s175, 63
      %s177 = scalar_select %p176, %s175, 63
      %s178 = smul.addr %s177, 4
      %s179 = scalar_lea.vmem %s2, %s178
      %s180 = smul.u32 16, %s15
      %p181 = scmp.lt.s32.totalorder %s15, 3
      %s182 = scalar_select %p181, %s15, 3
      %s183 = smul.addr %s182, 2
      %s184 = scalar_lea.vmem %s3, %s183
      %v186 = vld [vmem:[%s173] sm:$0xf]
      %v187 = vld [vmem:[%s173 + $0x4] sm:$0xf]
      %v188 = vld [vmem:[%s173 + $0x8] sm:$0xf]
      %v189 = vld [vmem:[%s173 + $0xc] sm:$0xf]
      %v190 = vld [vmem:[%s173 + $0x10] sm:$0xf]
      %v191 = vld [vmem:[%s173 + $0x14] sm:$0xf]
      %v192 = vld [vmem:[%s173 + $0x18] sm:$0xf]
      %v193 = vld [vmem:[%s173 + $0x1c] sm:$0xf]
      %v194 = vld [vmem:[%s173 + $0x20] sm:$0xf]
      %v195 = vld [vmem:[%s173 + $0x24] sm:$0xf]
      %v196 = vld [vmem:[%s173 + $0x28] sm:$0xf]
      %v197 = vld [vmem:[%s173 + $0x2c] sm:$0xf]
      %v198 = vld [vmem:[%s173 + $0x30] sm:$0xf]
      %v199 = vld [vmem:[%s173 + $0x34] sm:$0xf]
      %v200 = vld [vmem:[%s173 + $0x38] sm:$0xf]
      %v201 = vld [vmem:[%s173 + $0x3c] sm:$0xf]
      %v202 = vld [vmem:[%s1] sm:$0xf]
      %v203 = vld [vmem:[%s1 + $0x4] sm:$0xf]
      %v220 = vunpack.c.l.b16 %v186
      %v221 = vunpack.c.l.b16 %v187
      %v222 = vunpack.c.l.b16 %v188
      %v223 = vunpack.c.l.b16 %v189
      %v224 = vunpack.c.l.b16 %v190
      %v225 = vunpack.c.l.b16 %v191
      %v226 = vunpack.c.l.b16 %v192
      %v227 = vunpack.c.l.b16 %v193
      %v228 = vunpack.c.l.b16 %v194
      %v229 = vunpack.c.l.b16 %v195
      %v230 = vunpack.c.l.b16 %v196
      %v231 = vunpack.c.l.b16 %v197
      %v232 = vunpack.c.l.b16 %v198
      %v233 = vunpack.c.l.b16 %v199
      %v234 = vunpack.c.l.b16 %v200
      %v235 = vunpack.c.l.b16 %v201
      %v236 = vpack.c.b16 %v221, %v220
      %v237 = vpack.c.b16 %v223, %v222
      %v238 = vpack.c.b16 %v225, %v224
      %v239 = vpack.c.b16 %v227, %v226
      %v240 = vpack.c.b16 %v229, %v228
      %v241 = vpack.c.b16 %v231, %v230
      %v242 = vpack.c.b16 %v233, %v232
      %v243 = vpack.c.b16 %v235, %v234
      %v246 = vunpack.c.l.b16 %v202
      %v247 = vunpack.c.l.b16 %v203
      %v248 = vpack.c.b16 %v247, %v246
      %vm250 = vcmask 130048
      %v252 = vsel %vm250, %v236, 0
      %v255 = vsel %vm250, %v237, 0
      %v258 = vsel %vm250, %v238, 0
      %v261 = vsel %vm250, %v239, 0
      %v264 = vsel %vm250, %v240, 0
      %v267 = vsel %vm250, %v241, 0
      %v270 = vsel %vm250, %v242, 0
      %v273 = vsel %vm250, %v243, 0
      %275 = vmatprep.subr.bf16.mxu0 0
      %276 = vmatpush1.bf16.msra.mxu0 0
      %277 = vmatprep.subr.bf16.mxu0 0
      %278 = vmatpush1.bf16.msra.mxu0 0
      %279 = vmatprep.subr.bf16.mxu0 0
      %280 = vmatpush1.bf16.msra.mxu0 0
      %281 = vmatprep.subr.bf16.mxu0 0
      %282 = vmatpush1.bf16.msra.mxu0 0
      %283 = vmatprep.subr.bf16.mxu0 0
      %284 = vmatpush1.bf16.msra.mxu0 0
      %285 = vmatprep.subr.bf16.mxu0 0
      %286 = vmatpush1.bf16.msra.mxu0 0
      %287 = vmatprep.subr.bf16.mxu0 0
      %288 = vmatpush1.bf16.msra.mxu0 0
      %289 = vmatprep.subr.bf16.mxu0 0
      %290 = vmatpush1.bf16.msra.mxu0 %v248
      %291 = vmatprep.subr.bf16.mxu0 0
      %292 = vmatpush2.bf16.msra.mxu0 0
      %293 = vmatprep.subr.bf16.mxu0 0
      %294 = vmatpush2.bf16.msra.mxu0 0
      %295 = vmatprep.subr.bf16.mxu0 0
      %296 = vmatpush2.bf16.msra.mxu0 0
      %297 = vmatprep.subr.bf16.mxu0 0
      %298 = vmatpush2.bf16.msra.mxu0 0
      %299 = vmatprep.subr.bf16.mxu0 0
      %300 = vmatpush2.bf16.msra.mxu0 0
      %301 = vmatprep.subr.bf16.mxu0 0
      %302 = vmatpush2.bf16.msra.mxu0 0
      %303 = vmatprep.subr.bf16.mxu0 0
      %304 = vmatpush2.bf16.msra.mxu0 0
      %305 = vmatprep.subr.bf16.mxu0 0
      %306 = vmatpush2.bf16.msra.mxu0 0
      %307 = vmatprep.mubr.bf16.mxu0 0
      %308 = vmatmul.mubr.bf16.gmra.mxu0 %v252
      %v309 = vpop.f32.mrf.mxu0
      %v310 = vadd.f32 0.0, %v309
      %v311 = vpop.f32.mrf.mxu0
      %v312 = vpop.f32.mrf.mxu0
      %v313 = vadd.f32 0.0, %v312
      %v314 = vpop.f32.mrf.mxu0
      %315 = vmatprep.mubr.bf16.mxu0 0
      %316 = vmatmul.mubr.bf16.gmra.mxu0 %v255
      %v317 = vpop.f32.mrf.mxu0
      %v318 = vadd.f32 0.0, %v317
      %v319 = vpop.f32.mrf.mxu0
      %v320 = vpop.f32.mrf.mxu0
      %v321 = vadd.f32 0.0, %v320
      %v322 = vpop.f32.mrf.mxu0
      %323 = vmatprep.mubr.bf16.mxu0 0
      %324 = vmatmul.mubr.bf16.gmra.mxu0 %v258
      %v325 = vpop.f32.mrf.mxu0
      %v326 = vadd.f32 0.0, %v325
      %v327 = vpop.f32.mrf.mxu0
      %v328 = vpop.f32.mrf.mxu0
      %v329 = vadd.f32 0.0, %v328
      %v330 = vpop.f32.mrf.mxu0
      %331 = vmatprep.mubr.bf16.mxu0 0
      %332 = vmatmul.mubr.bf16.gmra.mxu0 %v261
      %v333 = vpop.f32.mrf.mxu0
      %v334 = vadd.f32 0.0, %v333
      %v335 = vpop.f32.mrf.mxu0
      %v336 = vpop.f32.mrf.mxu0
      %v337 = vadd.f32 0.0, %v336
      %v338 = vpop.f32.mrf.mxu0
      %339 = vmatprep.mubr.bf16.mxu0 0
      %340 = vmatmul.mubr.bf16.gmra.mxu0 %v264
      %v341 = vpop.f32.mrf.mxu0
      %v342 = vadd.f32 0.0, %v341
      %v343 = vpop.f32.mrf.mxu0
      %v344 = vpop.f32.mrf.mxu0
      %v345 = vadd.f32 0.0, %v344
      %v346 = vpop.f32.mrf.mxu0
      %347 = vmatprep.mubr.bf16.mxu0 0
      %348 = vmatmul.mubr.bf16.gmra.mxu0 %v267
      %v349 = vpop.f32.mrf.mxu0
      %v350 = vadd.f32 0.0, %v349
      %v351 = vpop.f32.mrf.mxu0
      %v352 = vpop.f32.mrf.mxu0
      %v353 = vadd.f32 0.0, %v352
      %v354 = vpop.f32.mrf.mxu0
      %355 = vmatprep.mubr.bf16.mxu0 0
      %356 = vmatmul.mubr.bf16.gmra.mxu0 %v270
      %v357 = vpop.f32.mrf.mxu0
      %v358 = vadd.f32 0.0, %v357
      %v359 = vpop.f32.mrf.mxu0
      %v360 = vpop.f32.mrf.mxu0
      %v361 = vadd.f32 0.0, %v360
      %v362 = vpop.f32.mrf.mxu0
      %363 = vmatprep.mubr.bf16.mxu0 0
      %364 = vmatmul.mubr.bf16.gmra.mxu0 %v273
      %v365 = vpop.f32.mrf.mxu0
      %v366 = vadd.f32 0.0, %v365
      %v367 = vpop.f32.mrf.mxu0
      %v368 = vpop.f32.mrf.mxu0
      %v369 = vadd.f32 0.0, %v368
      %v370 = vpop.f32.mrf.mxu0
      %371 = vdwg.mxu0
      %vm372 = vcmask 31744
      %v373 = vsel %vm372, %v310, 0.0
      %v374 = vsel %vm372, %v313, 0.0
      %v375 = vadd.f32 %v373, %v374
      %v376 = vsel %vm372, %v318, 0.0
      %v377 = vadd.f32 %v375, %v376
      %v378 = vsel %vm372, %v321, 0.0
      %v379 = vadd.f32 %v377, %v378
      %v380 = vsel %vm372, %v326, 0.0
      %v381 = vadd.f32 %v379, %v380
      %v382 = vsel %vm372, %v329, 0.0
      %v383 = vadd.f32 %v381, %v382
      %v384 = vsel %vm372, %v334, 0.0
      %v385 = vadd.f32 %v383, %v384
      %v386 = vsel %vm372, %v337, 0.0
      %v387 = vadd.f32 %v385, %v386
      %v388 = vsel %vm372, %v342, 0.0
      %v389 = vadd.f32 %v387, %v388
      %v390 = vsel %vm372, %v345, 0.0
      %v391 = vadd.f32 %v389, %v390
      %v392 = vsel %vm372, %v350, 0.0
      %v393 = vadd.f32 %v391, %v392
      %v394 = vsel %vm372, %v353, 0.0
      %v395 = vadd.f32 %v393, %v394
      %v396 = vsel %vm372, %v358, 0.0
      %v397 = vadd.f32 %v395, %v396
      %v398 = vsel %vm372, %v361, 0.0
      %v399 = vadd.f32 %v397, %v398
      %v400 = vsel %vm372, %v366, 0.0
      %v401 = vadd.f32 %v399, %v400
      %v402 = vsel %vm372, %v369, 0.0
      %v403 = vadd.f32 %v401, %v402
      %v404 = vrot.slane %v403, 4
      %v405 = vadd.f32 %v403, %v404
      %v406 = vrot.slane %v405, 2
      %v407 = vadd.f32 %v405, %v406
      %v408 = vrot.slane %v407, 1
      %v409 = vadd.f32 %v407, %v408
      %v410 = vmul.f32 %v310, %v310
      %v411 = vmul.f32 %v313, %v313
      %v412 = vmul.f32 %v318, %v318
      %v413 = vmul.f32 %v321, %v321
      %v414 = vmul.f32 %v326, %v326
      %v415 = vmul.f32 %v329, %v329
      %v416 = vmul.f32 %v334, %v334
      %v417 = vmul.f32 %v337, %v337
      %v418 = vmul.f32 %v342, %v342
      %v419 = vmul.f32 %v345, %v345
      %v420 = vmul.f32 %v350, %v350
      %v421 = vmul.f32 %v353, %v353
      %v422 = vmul.f32 %v358, %v358
      %v423 = vmul.f32 %v361, %v361
      %v424 = vmul.f32 %v366, %v366
      %v425 = vmul.f32 %v369, %v369
      %v426 = vsel %vm372, %v410, 0.0
      %v427 = vsel %vm372, %v411, 0.0
      %v428 = vadd.f32 %v426, %v427
      %v429 = vsel %vm372, %v412, 0.0
      %v430 = vadd.f32 %v428, %v429
      %v431 = vsel %vm372, %v413, 0.0
      %v432 = vadd.f32 %v430, %v431
      %v433 = vsel %vm372, %v414, 0.0
      %v434 = vadd.f32 %v432, %v433
      %v435 = vsel %vm372, %v415, 0.0
      %v436 = vadd.f32 %v434, %v435
      %v437 = vsel %vm372, %v416, 0.0
      %v438 = vadd.f32 %v436, %v437
      %v439 = vsel %vm372, %v417, 0.0
      %v440 = vadd.f32 %v438, %v439
      %v441 = vsel %vm372, %v418, 0.0
      %v442 = vadd.f32 %v440, %v441
      %v443 = vsel %vm372, %v419, 0.0
      %v444 = vadd.f32 %v442, %v443
      %v445 = vsel %vm372, %v420, 0.0
      %v446 = vadd.f32 %v444, %v445
      %v447 = vsel %vm372, %v421, 0.0
      %v448 = vadd.f32 %v446, %v447
      %v449 = vsel %vm372, %v422, 0.0
      %v450 = vadd.f32 %v448, %v449
      %v451 = vsel %vm372, %v423, 0.0
      %v452 = vadd.f32 %v450, %v451
      %v453 = vsel %vm372, %v424, 0.0
      %v454 = vadd.f32 %v452, %v453
      %v455 = vsel %vm372, %v425, 0.0
      %v456 = vadd.f32 %v454, %v455
      %v457 = vrot.slane %v456, 4
      %v458 = vadd.f32 %v456, %v457
      %v459 = vrot.slane %v458, 2
      %v460 = vadd.f32 %v458, %v459
      %v461 = vrot.slane %v460, 1
      %v462 = vadd.f32 %v460, %v461
      %vm463 = vcmask 1040384
      %v464 = vsel %vm463, %v409, %v462
      %vm465 = vcmask 25600
      %466 = vst.msk [vmem:[%s184] sm:$0x3] %vm465, %v464
      %v467 = vpack.c.bf16 %v313, %v310
      %v468 = vpack.c.bf16 %v321, %v318
      %v469 = vpack.c.bf16 %v329, %v326
      %v470 = vpack.c.bf16 %v337, %v334
      %v471 = vpack.c.bf16 %v345, %v342
      %v472 = vpack.c.bf16 %v353, %v350
      %v473 = vpack.c.bf16 %v361, %v358
      %v474 = vpack.c.bf16 %v369, %v366
      %v483 = vunpack.c.l.b16 %v467
      %v484 = vunpack.c.h.b16 %v467
      %v485 = vunpack.c.l.b16 %v468
      %v486 = vunpack.c.h.b16 %v468
      %v487 = vunpack.c.l.b16 %v469
      %v488 = vunpack.c.h.b16 %v469
      %v489 = vunpack.c.l.b16 %v470
      %v490 = vunpack.c.h.b16 %v470
      %v491 = vunpack.c.l.b16 %v471
      %v492 = vunpack.c.h.b16 %v471
      %v493 = vunpack.c.l.b16 %v472
      %v494 = vunpack.c.h.b16 %v472
      %v495 = vunpack.c.l.b16 %v473
      %v496 = vunpack.c.h.b16 %v473
      %v497 = vunpack.c.l.b16 %v474
      %v498 = vunpack.c.h.b16 %v474
      %v499 = vpack.c.b16 %v483, %v483
      %v500 = vpack.c.b16 %v484, %v484
      %v501 = vpack.c.b16 %v485, %v485
      %v502 = vpack.c.b16 %v486, %v486
      %v503 = vpack.c.b16 %v487, %v487
      %v504 = vpack.c.b16 %v488, %v488
      %v505 = vpack.c.b16 %v489, %v489
      %v506 = vpack.c.b16 %v490, %v490
      %v507 = vpack.c.b16 %v491, %v491
      %v508 = vpack.c.b16 %v492, %v492
      %v509 = vpack.c.b16 %v493, %v493
      %v510 = vpack.c.b16 %v494, %v494
      %v511 = vpack.c.b16 %v495, %v495
      %v512 = vpack.c.b16 %v496, %v496
      %v513 = vpack.c.b16 %v497, %v497
      %v514 = vpack.c.b16 %v498, %v498
      %vm531 = vcmask 27648
      %532 = vst.msk [vmem:[%s179] sm:$0xf] %vm531, %v499
      %533 = vst.msk [vmem:[%s179 + $0x4] sm:$0xf] %vm531, %v500
      %534 = vst.msk [vmem:[%s179 + $0x8] sm:$0xf] %vm531, %v501
      %535 = vst.msk [vmem:[%s179 + $0xc] sm:$0xf] %vm531, %v502
      %536 = vst.msk [vmem:[%s179 + $0x10] sm:$0xf] %vm531, %v503
      %537 = vst.msk [vmem:[%s179 + $0x14] sm:$0xf] %vm531, %v504
      %538 = vst.msk [vmem:[%s179 + $0x18] sm:$0xf] %vm531, %v505
      %539 = vst.msk [vmem:[%s179 + $0x1c] sm:$0xf] %vm531, %v506
      %540 = vst.msk [vmem:[%s179 + $0x20] sm:$0xf] %vm531, %v507
      %541 = vst.msk [vmem:[%s179 + $0x24] sm:$0xf] %vm531, %v508
      %542 = vst.msk [vmem:[%s179 + $0x28] sm:$0xf] %vm531, %v509
      %543 = vst.msk [vmem:[%s179 + $0x2c] sm:$0xf] %vm531, %v510
      %544 = vst.msk [vmem:[%s179 + $0x30] sm:$0xf] %vm531, %v511
      %545 = vst.msk [vmem:[%s179 + $0x34] sm:$0xf] %vm531, %v512
      %546 = vst.msk [vmem:[%s179 + $0x38] sm:$0xf] %vm531, %v513
      %547 = vst.msk [vmem:[%s179 + $0x3c] sm:$0xf] %vm531, %v514
      %s548 = smul.u32 16, %s15
      %p549 = scmp.lt.s32.totalorder %s548, 63
      %s550 = scalar_select %p549, %s548, 63
      %s551 = smul.addr %s550, 4
      %s552 = scalar_lea.vmem %s2, %s551
      %p553 = scmp.lt.s32.totalorder %s15, 3
      %s554 = scalar_select %p553, %s15, 3
      %s555 = smul.addr %s554, 2
      %s556 = scalar_lea.vmem %s3, %s555
      // Predicated region
      $region29: #{identity_block_forward.4} parent=27 // pred_check
        %p557 = pneg %p80
      $region30: #{identity_block_forward.4} parent=27 // pred_check_branch
        %559 = sbr.rel (%p557) target = $region32
      $region31: #{identity_block_forward.4} parent=27 // pred_region
        %s560 = smul.u32 16, %s15
      $region32: #{identity_block_forward.4} parent=27 // pred_fallthru
        _
      // Predicated region
      $region33: #{identity_block_forward.4} parent=27 // pred_check
        %p561 = pneg %p106
      $region34: #{identity_block_forward.4} parent=27 // pred_check_branch
        %563 = sbr.rel (%p561) target = $region36
      $region35: #{identity_block_forward.4} parent=27 // pred_region
        _
      $region36: #{identity_block_forward.4} parent=27 // pred_fallthru
        _
    $region28: #{identity_block_forward.4} parent=5 // pred_fallthru
      _
    %p564 = scmp.le.s32.totalorder 2, %s10
    // Predicated region
    $region37: #{identity_block_forward.4} parent=5 // pred_check
      %p565 = pneg %p564
    $region38: #{identity_block_forward.4} parent=5 // pred_check_branch
      %567 = sbr.rel (%p565) target = $region40
    $region39: #{identity_block_forward.4} parent=5 // pred_region
      %s568 = ssub.s32 %s10, 2
      // Predicated region
      $region41: #{identity_block_forward.4} parent=39 // pred_check
        %p569 = pneg %p86
      $region42: #{identity_block_forward.4} parent=39 // pred_check_branch
        %571 = sbr.rel (%p569) target = $region44
      $region43: #{identity_block_forward.4} parent=39 // pred_region
        %s572 = smul.u32 16, %s16
        %p573 = scmp.lt.s32.totalorder %s572, 63
        %s574 = scalar_select %p573, %s572, 63
        %s575 = smul.addr %s574, 4
        %s576 = scalar_lea.vmem %s2, %s575
      $region44: #{identity_block_forward.4} parent=39 // pred_fallthru
        _
      // Predicated region
      $region45: #{identity_block_forward.4} parent=39 // pred_check
        %p577 = pneg %p112
      $region46: #{identity_block_forward.4} parent=39 // pred_check_branch
        %579 = sbr.rel (%p577) target = $region48
      $region47: #{identity_block_forward.4} parent=39 // pred_region
        %p580 = scmp.lt.s32.totalorder %s16, 3
        %s581 = scalar_select %p580, %s16, 3
        %s582 = smul.addr %s581, 2
        %s583 = scalar_lea.vmem %s3, %s582
      $region48: #{identity_block_forward.4} parent=39 // pred_fallthru
        _
    $region40: #{identity_block_forward.4} parent=5 // pred_fallthru
      _
  $region6: #{identity_block_forward.4} parent=0 // loop_footer
    %s14 = sadd.s32 1, %s10
  $region7: #{identity_block_forward.4} parent=0 // loop_footer_branch
    %9 = sbr.rel target = $region3
  $region8: #{identity_block_forward.4} parent=0 // loop_exit
    _

// kernel: identity_block_forward.7
$region0: #{identity_block_forward.7}
  #allocation0 [shape = 'u32[]', space=smem, size = 0x4, offset = 0x4, fixed_abs, tag = 'smem constant byte address 0x4 - core index']
  #allocation1 [shape = 'u32[144,128]{1,0:T(1,128)}', space=vmem, size = 0x12000, scoped, tag = 'internal scratch']
  %s0 = inlined_call_operand.vmem [shape: bf16[512,16], index: 0, kind: input, shape index: {}]
  %s1 = inlined_call_operand.vmem [shape: bf16[512,16], index: 1, kind: input, shape index: {}]
  %s2 = inlined_call_operand.vmem [shape: f32[1,16], index: 2, kind: input, shape index: {}]
  %s3 = inlined_call_operand.vmem [shape: f32[1,16], index: 3, kind: input, shape index: {}]
  %s4 = inlined_call_operand.vmem [shape: f32[512,16], index: 4, kind: output, shape index: {}]
  %s5 = sld [smem:[#allocation0]]
  $region49: #{identity_block_forward.7} parent=0
    _
  %s7 = ssub.s32 1, %s5
  %s8 = scalar_select 0, %s7, %s5
  loop: start=0, step=1, limit=6
  $region2: #{identity_block_forward.7} parent=0 // loop_pre_header
    _
  $region3: #{identity_block_forward.7} parent=0 // loop_header
    %s10 = sphi 0, %s14
    %p11 = scmp.ge.s32.totalorder %s10, 6
    %s20 = sphi 0, %s22
    %s23 = sphi 0, %s20
    %s24 = sphi 0, %s23
    %s40 = sphi 0, %s24
    %s46 = sphi 0, %s48
    %s49 = sphi 0, %s46
    %s50 = sphi 0, %s49
    %s66 = sphi 0, %s50
    %s70 = sphi 0, %s70
    %s72 = sphi 0, %s70
    %s73 = sphi 0, %s72
    %s87 = sphi 0, %s73
    %s91 = sphi 0, %s91
    %s93 = sphi 0, %s91
    %s94 = sphi 0, %s93
    %s108 = sphi 0, %s94
    %s114 = sphi 0, %s116
    %s117 = sphi 0, %s114
    %s118 = sphi 0, %s117
    %s134 = sphi 0, %s118
  $region4: #{identity_block_forward.7} parent=0 // loop_header_branch
    %13 = sbr.rel (%p11) target = $region8
  $region5: #{identity_block_forward.7} parent=0 // loop_body
    %s15 = ssub.s32 %s10, 1
    %s16 = ssub.s32 %s10, 2
    %s17 = sadd.s32 %s10, 1
    %s18 = ssub.s32 %s10, %s17
    %p19 = scmp.eq.s32.totalorder %s18, 0
    %s21 = sadd.s32 %s20, 1
    %s22 = scalar_select %p19, %s20, %s21
    %p25 = pneg %p19
    %p26 = scmp.eq.s32.totalorder %s10, 3
    %p27 = por %p25, %p26
    %p28 = scmp.ne.s32.totalorder %s20, %s23
    %p29 = scmp.eq.s32.totalorder %s10, 0
    %p30 = por %p28, %p29
    %p31 = scmp.ne.s32.totalorder %s20, %s23
    %p32 = scmp.eq.s32.totalorder %s15, 3
    %p33 = por %p31, %p32
    %p34 = scmp.ne.s32.totalorder %s23, %s24
    %p35 = scmp.eq.s32.totalorder %s15, 0
    %p36 = por %p34, %p35
    %p37 = scmp.ne.s32.totalorder %s23, %s24
    %p38 = scmp.eq.s32.totalorder %s16, 3
    %p39 = por %p37, %p38
    %p41 = scmp.ne.s32.totalorder %s24, %s40
    %p42 = scmp.eq.s32.totalorder %s16, 0
    %p43 = por %p41, %p42
    %s44 = ssub.s32 %s10, %s17
    %p45 = scmp.eq.s32.totalorder %s44, 0
    %s47 = sadd.s32 %s46, 1
    %s48 = scalar_select %p45, %s46, %s47
    %p51 = pneg %p45
    %p52 = scmp.eq.s32.totalorder %s10, 3
    %p53 = por %p51, %p52
    %p54 = scmp.ne.s32.totalorder %s46, %s49
    %p55 = scmp.eq.s32.totalorder %s10, 0
    %p56 = por %p54, %p55
    %p57 = scmp.ne.s32.totalorder %s46, %s49
    %p58 = scmp.eq.s32.totalorder %s15, 3
    %p59 = por %p57, %p58
    %p60 = scmp.ne.s32.totalorder %s49, %s50
    %p61 = scmp.eq.s32.totalorder %s15, 0
    %p62 = por %p60, %p61
    %p63 = scmp.ne.s32.totalorder %s49, %s50
    %p64 = scmp.eq.s32.totalorder %s16, 3
    %p65 = por %p63, %p64
    %p67 = scmp.ne.s32.totalorder %s50, %s66
    %p68 = scmp.eq.s32.totalorder %s16, 0
    %p69 = por %p67, %p68
    %s71 = sadd.s32 %s70, 1
    %p74 = scmp.eq.s32.totalorder %s10, 3
    %p75 = scmp.ne.s32.totalorder %s70, %s72
    %p76 = scmp.eq.s32.totalorder %s10, 0
    %p77 = por %p75, %p76
    %p78 = scmp.ne.s32.totalorder %s70, %s72
    %p79 = scmp.eq.s32.totalorder %s15, 3
    %p80 = por %p78, %p79
    %p81 = scmp.ne.s32.totalorder %s72, %s73
    %p82 = scmp.eq.s32.totalorder %s15, 0
    %p83 = por %p81, %p82
    %p84 = scmp.ne.s32.totalorder %s72, %s73
    %p85 = scmp.eq.s32.totalorder %s16, 3
    %p86 = por %p84, %p85
    %p88 = scmp.ne.s32.totalorder %s73, %s87
    %p89 = scmp.eq.s32.totalorder %s16, 0
    %p90 = por %p88, %p89
    %s92 = sadd.s32 %s91, 1
    %p95 = scmp.eq.s32.totalorder %s10, 3
    %p96 = scmp.ne.s32.totalorder %s91, %s93
    %p97 = scmp.eq.s32.totalorder %s10, 0
    %p98 = por %p96, %p97
    %p99 = scmp.ne.s32.totalorder %s91, %s93
    %p100 = scmp.eq.s32.totalorder %s15, 3
    %p101 = por %p99, %p100
    %p102 = scmp.ne.s32.totalorder %s93, %s94
    %p103 = scmp.eq.s32.totalorder %s15, 0
    %p104 = por %p102, %p103
    %p105 = scmp.ne.s32.totalorder %s93, %s94
    %p106 = scmp.eq.s32.totalorder %s16, 3
    %p107 = por %p105, %p106
    %p109 = scmp.ne.s32.totalorder %s94, %s108
    %p110 = scmp.eq.s32.totalorder %s16, 0
    %p111 = por %p109, %p110
    %s112 = ssub.s32 %s10, %s17
    %p113 = scmp.eq.s32.totalorder %s112, 0
    %s115 = sadd.s32 %s114, 1
    %s116 = scalar_select %p113, %s114, %s115
    %p119 = pneg %p113
    %p120 = scmp.eq.s32.totalorder %s10, 3
    %p121 = por %p119, %p120
    %p122 = scmp.ne.s32.totalorder %s114, %s117
    %p123 = scmp.eq.s32.totalorder %s10, 0
    %p124 = por %p122, %p123
    %p125 = scmp.ne.s32.totalorder %s114, %s117
    %p126 = scmp.eq.s32.totalorder %s15, 3
    %p127 = por %p125, %p126
    %p128 = scmp.ne.s32.totalorder %s117, %s118
    %p129 = scmp.eq.s32.totalorder %s15, 0
    %p130 = por %p128, %p129
    %p131 = scmp.ne.s32.totalorder %s117, %s118
    %p132 = scmp.eq.s32.totalorder %s16, 3
    %p133 = por %p131, %p132
    %p135 = scmp.ne.s32.totalorder %s118, %s134
    %p136 = scmp.eq.s32.totalorder %s16, 0
    %p137 = por %p135, %p136
    %p138 = scmp.le.s32.totalorder 1, %s10
    %p139 = scmp.lt.s32.totalorder %s10, 5
    %p140 = pnand %p138, %p139
    %p141 = pneg %p140
    // Predicated region
    $region9: #{identity_block_forward.7} parent=5 // pred_check
      _
    $region10: #{identity_block_forward.7} parent=5 // pred_check_branch
      %143 = sbr.rel (%p140) target = $region12
    $region11: #{identity_block_forward.7} parent=5 // pred_region
      %s144 = ssub.s32 %s10, 1
      // Predicated region
      $region13: #{identity_block_forward.7} parent=11 // pred_check
        %p145 = pneg %p83
      $region14: #{identity_block_forward.7} parent=11 // pred_check_branch
        %147 = sbr.rel (%p145) target = $region16
      $region15: #{identity_block_forward.7} parent=11 // pred_region
        _
      $region16: #{identity_block_forward.7} parent=11 // pred_fallthru
        _
      // Predicated region
      $region17: #{identity_block_forward.7} parent=11 // pred_check
        %p148 = pneg %p104
      $region18: #{identity_block_forward.7} parent=11 // pred_check_branch
        %150 = sbr.rel (%p148) target = $region20
      $region19: #{identity_block_forward.7} parent=11 // pred_region
        _
      $region20: #{identity_block_forward.7} parent=11 // pred_fallthru
        _
    $region12: #{identity_block_forward.7} parent=5 // pred_fallthru
      _
    %p151 = scmp.lt.s32.totalorder %s10, 4
    // Predicated region
    $region21: #{identity_block_forward.7} parent=5 // pred_check
      %p152 = pneg %p151
    $region22: #{identity_block_forward.7} parent=5 // pred_check_branch
      %154 = sbr.rel (%p152) target = $region24
    $region23: #{identity_block_forward.7} parent=5 // pred_region
      // Predicated region
      $region25: #{identity_block_forward.7} parent=23 // pred_check
        %p155 = pneg %p30
      $region26: #{identity_block_forward.7} parent=23 // pred_check_branch
        %157 = sbr.rel (%p155) target = $region28
      $region27: #{identity_block_forward.7} parent=23 // pred_region
        %s158 = smul.u32 16, %s10
        %p159 = scmp.lt.s32.totalorder %s158, 63
        %s160 = scalar_select %p159, %s158, 63
        %s161 = smul.addr %s160, 4
        %s162 = scalar_lea.vmem %s0, %s161
        %s163 = smul.u32 16, %s10
      $region28: #{identity_block_forward.7} parent=23 // pred_fallthru
        _
      // Predicated region
      $region29: #{identity_block_forward.7} parent=23 // pred_check
        %p164 = pneg %p56
      $region30: #{identity_block_forward.7} parent=23 // pred_check_branch
        %166 = sbr.rel (%p164) target = $region32
      $region31: #{identity_block_forward.7} parent=23 // pred_region
        %s167 = smul.u32 16, %s10
        %p168 = scmp.lt.s32.totalorder %s167, 63
        %s169 = scalar_select %p168, %s167, 63
        %s170 = smul.addr %s169, 4
        %s171 = scalar_lea.vmem %s1, %s170
        %s172 = smul.u32 16, %s10
      $region32: #{identity_block_forward.7} parent=23 // pred_fallthru
        _
    $region24: #{identity_block_forward.7} parent=5 // pred_fallthru
      _
    %p173 = scmp.le.s32.totalorder 1, %s10
    %p174 = scmp.lt.s32.totalorder %s10, 5
    %p175 = pnand %p173, %p174
    %p176 = pneg %p175
    // Predicated region
    $region33: #{identity_block_forward.7} parent=5 // pred_check
      _
    $region34: #{identity_block_forward.7} parent=5 // pred_check_branch
      %178 = sbr.rel (%p175) target = $region36
    $region35: #{identity_block_forward.7} parent=5 // pred_region
      %s179 = ssub.s32 %s10, 1
      %s180 = smul.u32 16, %s15
      %p181 = scmp.lt.s32.totalorder %s180, 63
      %s182 = scalar_select %p181, %s180, 63
      %s183 = smul.addr %s182, 4
      %s184 = scalar_lea.vmem %s0, %s183
      %p185 = pneg %p36
      %p186 = pneg %p33
      %s187 = smul.u32 16, %s15
      %p188 = scmp.lt.s32.totalorder %s187, 63
      %s189 = scalar_select %p188, %s187, 63
      %s190 = smul.addr %s189, 4
      %s191 = scalar_lea.vmem %s1, %s190
      %p192 = pneg %p62
      %p193 = pneg %p59
      %p194 = pneg %p83
      %p195 = pneg %p80
      %p196 = pneg %p104
      %p197 = pneg %p101
      %p198 = pneg %p130
      %p199 = pneg %p127
      %s200 = smul.u32 16, %s15
      %p201 = scmp.lt.s32.totalorder %s200, 63
      %s202 = scalar_select %p201, %s200, 63
      %s203 = smul.addr %s202, 8
      %s204 = scalar_lea.vmem %s4, %s203
      %s205 = smul.u32 16, %s15
      %p206 = scmp.lt.s32.totalorder %s205, 63
      %s207 = scalar_select %p206, %s205, 63
      %s208 = smul.addr %s207, 4
      %s209 = scalar_lea.vmem %s0, %s208
      %s210 = smul.u32 16, %s15
      %s211 = smul.u32 16, %s15
      %p212 = scmp.lt.s32.totalorder %s211, 63
      %s213 = scalar_select %p212, %s211, 63
      %s214 = smul.addr %s213, 4
      %s215 = scalar_lea.vmem %s1, %s214
      %s216 = smul.u32 16, %s15
      %s217 = smul.u32 16, %s15
      %p218 = scmp.lt.s32.totalorder %s217, 63
      %s219 = scalar_select %p218, %s217, 63
      %s220 = smul.addr %s219, 8
      %s221 = scalar_lea.vmem %s4, %s220
      %s222 = smul.u32 16, %s15
      %v223 = vld [vmem:[%s209] sm:$0xf]
      %v224 = vld [vmem:[%s209 + $0x4] sm:$0xf]
      %v225 = vld [vmem:[%s209 + $0x8] sm:$0xf]
      %v226 = vld [vmem:[%s209 + $0xc] sm:$0xf]
      %v227 = vld [vmem:[%s209 + $0x10] sm:$0xf]
      %v228 = vld [vmem:[%s209 + $0x14] sm:$0xf]
      %v229 = vld [vmem:[%s209 + $0x18] sm:$0xf]
      %v230 = vld [vmem:[%s209 + $0x1c] sm:$0xf]
      %v231 = vld [vmem:[%s209 + $0x20] sm:$0xf]
      %v232 = vld [vmem:[%s209 + $0x24] sm:$0xf]
      %v233 = vld [vmem:[%s209 + $0x28] sm:$0xf]
      %v234 = vld [vmem:[%s209 + $0x2c] sm:$0xf]
      %v235 = vld [vmem:[%s209 + $0x30] sm:$0xf]
      %v236 = vld [vmem:[%s209 + $0x34] sm:$0xf]
      %v237 = vld [vmem:[%s209 + $0x38] sm:$0xf]
      %v238 = vld [vmem:[%s209 + $0x3c] sm:$0xf]
      %v239 = vunpack.c.l.bf16 %v223
      %v240 = vunpack.c.l.bf16 %v224
      %v241 = vunpack.c.l.bf16 %v225
      %v242 = vunpack.c.l.bf16 %v226
      %v243 = vunpack.c.l.bf16 %v227
      %v244 = vunpack.c.l.bf16 %v228
      %v245 = vunpack.c.l.bf16 %v229
      %v246 = vunpack.c.l.bf16 %v230
      %v247 = vunpack.c.l.bf16 %v231
      %v248 = vunpack.c.l.bf16 %v232
      %v249 = vunpack.c.l.bf16 %v233
      %v250 = vunpack.c.l.bf16 %v234
      %v251 = vunpack.c.l.bf16 %v235
      %v252 = vunpack.c.l.bf16 %v236
      %v253 = vunpack.c.l.bf16 %v237
      %v254 = vunpack.c.l.bf16 %v238
      %v255 = vld [vmem:[%s2] sm:$0x1]
      %v257 = vlaneseq
      %v258 = vshrl.u32 %v257, 7
      %v259 = vsub.s32 0, %v258
      %v260 = vrot.slane %v255, %v259
      %v262 = vmul.f32 %v239, %v260
      %v263 = vmul.f32 %v240, %v260
      %v264 = vmul.f32 %v241, %v260
      %v265 = vmul.f32 %v242, %v260
      %v266 = vmul.f32 %v243, %v260
      %v267 = vmul.f32 %v244, %v260
      %v268 = vmul.f32 %v245, %v260
      %v269 = vmul.f32 %v246, %v260
      %v270 = vmul.f32 %v247, %v260
      %v271 = vmul.f32 %v248, %v260
      %v272 = vmul.f32 %v249, %v260
      %v273 = vmul.f32 %v250, %v260
      %v274 = vmul.f32 %v251, %v260
      %v275 = vmul.f32 %v252, %v260
      %v276 = vmul.f32 %v253, %v260
      %v277 = vmul.f32 %v254, %v260
      %v278 = vld [vmem:[%s3] sm:$0x1]
      %v280 = vlaneseq
      %v281 = vshrl.u32 %v280, 7
      %v282 = vsub.s32 0, %v281
      %v283 = vrot.slane %v278, %v282
      %v285 = vadd.f32 %v262, %v283
      %v286 = vadd.f32 %v263, %v283
      %v287 = vadd.f32 %v264, %v283
      %v288 = vadd.f32 %v265, %v283
      %v289 = vadd.f32 %v266, %v283
      %v290 = vadd.f32 %v267, %v283
      %v291 = vadd.f32 %v268, %v283
      %v292 = vadd.f32 %v269, %v283
      %v293 = vadd.f32 %v270, %v283
      %v294 = vadd.f32 %v271, %v283
      %v295 = vadd.f32 %v272, %v283
      %v296 = vadd.f32 %v273, %v283
      %v297 = vadd.f32 %v274, %v283
      %v298 = vadd.f32 %v275, %v283
      %v299 = vadd.f32 %v276, %v283
      %v300 = vadd.f32 %v277, %v283
      %v301 = vld [vmem:[%s215] sm:$0xf]
      %v302 = vld [vmem:[%s215 + $0x4] sm:$0xf]
      %v303 = vld [vmem:[%s215 + $0x8] sm:$0xf]
      %v304 = vld [vmem:[%s215 + $0xc] sm:$0xf]
      %v305 = vld [vmem:[%s215 + $0x10] sm:$0xf]
      %v306 = vld [vmem:[%s215 + $0x14] sm:$0xf]
      %v307 = vld [vmem:[%s215 + $0x18] sm:$0xf]
      %v308 = vld [vmem:[%s215 + $0x1c] sm:$0xf]
      %v309 = vld [vmem:[%s215 + $0x20] sm:$0xf]
      %v310 = vld [vmem:[%s215 + $0x24] sm:$0xf]
      %v311 = vld [vmem:[%s215 + $0x28] sm:$0xf]
      %v312 = vld [vmem:[%s215 + $0x2c] sm:$0xf]
      %v313 = vld [vmem:[%s215 + $0x30] sm:$0xf]
      %v314 = vld [vmem:[%s215 + $0x34] sm:$0xf]
      %v315 = vld [vmem:[%s215 + $0x38] sm:$0xf]
      %v316 = vld [vmem:[%s215 + $0x3c] sm:$0xf]
      %v317 = vunpack.c.l.bf16 %v301
      %v318 = vunpack.c.l.bf16 %v302
      %v319 = vunpack.c.l.bf16 %v303
      %v320 = vunpack.c.l.bf16 %v304
      %v321 = vunpack.c.l.bf16 %v305
      %v322 = vunpack.c.l.bf16 %v306
      %v323 = vunpack.c.l.bf16 %v307
      %v324 = vunpack.c.l.bf16 %v308
      %v325 = vunpack.c.l.bf16 %v309
      %v326 = vunpack.c.l.bf16 %v310
      %v327 = vunpack.c.l.bf16 %v311
      %v328 = vunpack.c.l.bf16 %v312
      %v329 = vunpack.c.l.bf16 %v313
      %v330 = vunpack.c.l.bf16 %v314
      %v331 = vunpack.c.l.bf16 %v315
      %v332 = vunpack.c.l.bf16 %v316
      %v333 = vadd.f32 %v285, %v317
      %v334 = vadd.f32 %v286, %v318
      %v335 = vadd.f32 %v287, %v319
      %v336 = vadd.f32 %v288, %v320
      %v337 = vadd.f32 %v289, %v321
      %v338 = vadd.f32 %v290, %v322
      %v339 = vadd.f32 %v291, %v323
      %v340 = vadd.f32 %v292, %v324
      %v341 = vadd.f32 %v293, %v325
      %v342 = vadd.f32 %v294, %v326
      %v343 = vadd.f32 %v295, %v327
      %v344 = vadd.f32 %v296, %v328
      %v345 = vadd.f32 %v297, %v329
      %v346 = vadd.f32 %v298, %v330
      %v347 = vadd.f32 %v299, %v331
      %v348 = vadd.f32 %v300, %v332
      %v349 = vmax.f32 %v333, 0.0
      %v350 = vmax.f32 %v334, 0.0
      %v351 = vmax.f32 %v335, 0.0
      %v352 = vmax.f32 %v336, 0.0
      %v353 = vmax.f32 %v337, 0.0
      %v354 = vmax.f32 %v338, 0.0
      %v355 = vmax.f32 %v339, 0.0
      %v356 = vmax.f32 %v340, 0.0
      %v357 = vmax.f32 %v341, 0.0
      %v358 = vmax.f32 %v342, 0.0
      %v359 = vmax.f32 %v343, 0.0
      %v360 = vmax.f32 %v344, 0.0
      %v361 = vmax.f32 %v345, 0.0
      %v362 = vmax.f32 %v346, 0.0
      %v363 = vmax.f32 %v347, 0.0
      %v364 = vmax.f32 %v348, 0.0
      %vm365 = vcmask 130048
      %366 = vst.msk [vmem:[%s221] sm:$0xff] %vm365, %v349
      %367 = vst.msk [vmem:[%s221 + $0x8] sm:$0xff] %vm365, %v350
      %368 = vst.msk [vmem:[%s221 + $0x10] sm:$0xff] %vm365, %v351
      %369 = vst.msk [vmem:[%s221 + $0x18] sm:$0xff] %vm365, %v352
      %370 = vst.msk [vmem:[%s221 + $0x20] sm:$0xff] %vm365, %v353
      %371 = vst.msk [vmem:[%s221 + $0x28] sm:$0xff] %vm365, %v354
      %372 = vst.msk [vmem:[%s221 + $0x30] sm:$0xff] %vm365, %v355
      %373 = vst.msk [vmem:[%s221 + $0x38] sm:$0xff] %vm365, %v356
      %374 = vst.msk [vmem:[%s221 + $0x40] sm:$0xff] %vm365, %v357
      %375 = vst.msk [vmem:[%s221 + $0x48] sm:$0xff] %vm365, %v358
      %376 = vst.msk [vmem:[%s221 + $0x50] sm:$0xff] %vm365, %v359
      %377 = vst.msk [vmem:[%s221 + $0x58] sm:$0xff] %vm365, %v360
      %378 = vst.msk [vmem:[%s221 + $0x60] sm:$0xff] %vm365, %v361
      %379 = vst.msk [vmem:[%s221 + $0x68] sm:$0xff] %vm365, %v362
      %380 = vst.msk [vmem:[%s221 + $0x70] sm:$0xff] %vm365, %v363
      %381 = vst.msk [vmem:[%s221 + $0x78] sm:$0xff] %vm365, %v364
      %s382 = smul.u32 16, %s15
      %p383 = scmp.lt.s32.totalorder %s382, 63
      %s384 = scalar_select %p383, %s382, 63
      %s385 = smul.addr %s384, 8
      %s386 = scalar_lea.vmem %s4, %s385
      // Predicated region
      $region37: #{identity_block_forward.7} parent=35 // pred_check
        %p387 = pneg %p127
      $region38: #{identity_block_forward.7} parent=35 // pred_check_branch
        %389 = sbr.rel (%p387) target = $region40
      $region39: #{identity_block_forward.7} parent=35 // pred_region
        %s390 = smul.u32 16, %s15
      $region40: #{identity_block_forward.7} parent=35 // pred_fallthru
        _
    $region36: #{identity_block_forward.7} parent=5 // pred_fallthru
      _
    %p391 = scmp.le.s32.totalorder 2, %s10
    // Predicated region
    $region41: #{identity_block_forward.7} parent=5 // pred_check
      %p392 = pneg %p391
    $region42: #{identity_block_forward.7} parent=5 // pred_check_branch
      %394 = sbr.rel (%p392) target = $region44
    $region43: #{identity_block_forward.7} parent=5 // pred_region
      %s395 = ssub.s32 %s10, 2
      // Predicated region
      $region45: #{identity_block_forward.7} parent=43 // pred_check
        %p396 = pneg %p133
      $region46: #{identity_block_forward.7} parent=43 // pred_check_branch
        %398 = sbr.rel (%p396) target = $region48
      $region47: #{identity_block_forward.7} parent=43 // pred_region
        %s399 = smul.u32 16, %s16
        %p400 = scmp.lt.s32.totalorder %s399, 63
        %s401 = scalar_select %p400, %s399, 63
        %s402 = smul.addr %s401, 8
        %s403 = scalar_lea.vmem %s4, %s402
      $region48: #{identity_block_forward.7} parent=43 // pred_fallthru
        _
    $region44: #{identity_block_forward.7} parent=5 // pred_fallthru
      _
  $region6: #{identity_block_forward.7} parent=0 // loop_footer
    %s14 = sadd.s32 1, %s10
  $region7: #{identity_block_forward.7} parent=0 // loop_footer_branch
    %9 = sbr.rel target = $region3
  $region8: #{identity_block_forward.7} parent=0 // loop_exit
    _

// kernel: identity_block_forward.5
$region0: #{identity_block_forward.5}
  #allocation0 [shape = 'u32[]', space=smem, size = 0x4, offset = 0x4, fixed_abs, tag = 'smem constant byte address 0x4 - core index']
  #allocation1 [shape = 'u32[144,128]{1,0:T(1,128)}', space=vmem, size = 0x12000, scoped, tag = 'internal scratch']
  #allocation2 [shape = 'f32[18,18,4]{2,1,0:T(8,128)}', space=vmem, size = 0x36000, scoped, tag = 'scratch operand']
  %s0 = inlined_call_operand.vmem [shape: bf16[2,16,16,4], index: 0, kind: input, shape index: {}]
  %s1 = inlined_call_operand.vmem [shape: bf16[9,4,4], index: 1, kind: input, shape index: {}]
  %s2 = inlined_call_operand.vmem [shape: f32[1,4], index: 2, kind: input, shape index: {}]
  %s3 = inlined_call_operand.vmem [shape: f32[1,4], index: 3, kind: input, shape index: {}]
  %s4 = inlined_call_operand.vmem [shape: bf16[2,256,4], index: 4, kind: output, shape index: {0}]
  %s5 = inlined_call_operand.vmem [shape: f32[2,2,4], index: 5, kind: output, shape index: {1}]
  %6 = xla_tuple %s4, %s5
  %s7 = sld [smem:[#allocation0]]
  $region57: #{identity_block_forward.5} parent=0
    _
  %s9 = ssub.s32 1, %s7
  %s10 = scalar_select 0, %s9, %s7
  loop: start=0, step=1, limit=4
  $region2: #{identity_block_forward.5} parent=0 // loop_pre_header
    _
  $region3: #{identity_block_forward.5} parent=0 // loop_header
    %s12 = sphi 0, %s16
    %p13 = scmp.ge.s32.totalorder %s12, 4
    %s22 = sphi 0, %s24
    %s25 = sphi 0, %s22
    %s26 = sphi 0, %s25
    %s42 = sphi 0, %s26
    %s46 = sphi 0, %s46
    %s48 = sphi 0, %s46
    %s49 = sphi 0, %s48
    %s63 = sphi 0, %s49
    %s67 = sphi 0, %s67
    %s69 = sphi 0, %s67
    %s70 = sphi 0, %s69
    %s84 = sphi 0, %s70
    %s88 = sphi 0, %s88
    %s90 = sphi 0, %s88
    %s91 = sphi 0, %s90
    %s105 = sphi 0, %s91
    %s111 = sphi 0, %s113
    %s114 = sphi 0, %s111
    %s115 = sphi 0, %s114
    %s131 = sphi 0, %s115
    %s137 = sphi 0, %s139
    %s140 = sphi 0, %s137
    %s141 = sphi 0, %s140
    %s157 = sphi 0, %s141
  $region4: #{identity_block_forward.5} parent=0 // loop_header_branch
    %15 = sbr.rel (%p13) target = $region8
  $region5: #{identity_block_forward.5} parent=0 // loop_body
    %s17 = ssub.s32 %s12, 1
    %s18 = ssub.s32 %s12, 2
    %s19 = sadd.s32 %s12, 1
    %s20 = ssub.s32 %s12, %s19
    %p21 = scmp.eq.s32.totalorder %s20, 0
    %s23 = sadd.s32 %s22, 1
    %s24 = scalar_select %p21, %s22, %s23
    %p27 = pneg %p21
    %p28 = scmp.eq.s32.totalorder %s12, 1
    %p29 = por %p27, %p28
    %p30 = scmp.ne.s32.totalorder %s22, %s25
    %p31 = scmp.eq.s32.totalorder %s12, 0
    %p32 = por %p30, %p31
    %p33 = scmp.ne.s32.totalorder %s22, %s25
    %p34 = scmp.eq.s32.totalorder %s17, 1
    %p35 = por %p33, %p34
    %p36 = scmp.ne.s32.totalorder %s25, %s26
    %p37 = scmp.eq.s32.totalorder %s17, 0
    %p38 = por %p36, %p37
    %p39 = scmp.ne.s32.totalorder %s25, %s26
    %p40 = scmp.eq.s32.totalorder %s18, 1
    %p41 = por %p39, %p40
    %p43 = scmp.ne.s32.totalorder %s26, %s42
    %p44 = scmp.eq.s32.totalorder %s18, 0
    %p45 = por %p43, %p44
    %s47 = sadd.s32 %s46, 1
    %p50 = scmp.eq.s32.totalorder %s12, 1
    %p51 = scmp.ne.s32.totalorder %s46, %s48
    %p52 = scmp.eq.s32.totalorder %s12, 0
    %p53 = por %p51, %p52
    %p54 = scmp.ne.s32.totalorder %s46, %s48
    %p55 = scmp.eq.s32.totalorder %s17, 1
    %p56 = por %p54, %p55
    %p57 = scmp.ne.s32.totalorder %s48, %s49
    %p58 = scmp.eq.s32.totalorder %s17, 0
    %p59 = por %p57, %p58
    %p60 = scmp.ne.s32.totalorder %s48, %s49
    %p61 = scmp.eq.s32.totalorder %s18, 1
    %p62 = por %p60, %p61
    %p64 = scmp.ne.s32.totalorder %s49, %s63
    %p65 = scmp.eq.s32.totalorder %s18, 0
    %p66 = por %p64, %p65
    %s68 = sadd.s32 %s67, 1
    %p71 = scmp.eq.s32.totalorder %s12, 1
    %p72 = scmp.ne.s32.totalorder %s67, %s69
    %p73 = scmp.eq.s32.totalorder %s12, 0
    %p74 = por %p72, %p73
    %p75 = scmp.ne.s32.totalorder %s67, %s69
    %p76 = scmp.eq.s32.totalorder %s17, 1
    %p77 = por %p75, %p76
    %p78 = scmp.ne.s32.totalorder %s69, %s70
    %p79 = scmp.eq.s32.totalorder %s17, 0
    %p80 = por %p78, %p79
    %p81 = scmp.ne.s32.totalorder %s69, %s70
    %p82 = scmp.eq.s32.totalorder %s18, 1
    %p83 = por %p81, %p82
    %p85 = scmp.ne.s32.totalorder %s70, %s84
    %p86 = scmp.eq.s32.totalorder %s18, 0
    %p87 = por %p85, %p86
    %s89 = sadd.s32 %s88, 1
    %p92 = scmp.eq.s32.totalorder %s12, 1
    %p93 = scmp.ne.s32.totalorder %s88, %s90
    %p94 = scmp.eq.s32.totalorder %s12, 0
    %p95 = por %p93, %p94
    %p96 = scmp.ne.s32.totalorder %s88, %s90
    %p97 = scmp.eq.s32.totalorder %s17, 1
    %p98 = por %p96, %p97
    %p99 = scmp.ne.s32.totalorder %s90, %s91
    %p100 = scmp.eq.s32.totalorder %s17, 0
    %p101 = por %p99, %p100
    %p102 = scmp.ne.s32.totalorder %s90, %s91
    %p103 = scmp.eq.s32.totalorder %s18, 1
    %p104 = por %p102, %p103
    %p106 = scmp.ne.s32.totalorder %s91, %s105
    %p107 = scmp.eq.s32.totalorder %s18, 0
    %p108 = por %p106, %p107
    %s109 = ssub.s32 %s12, %s19
    %p110 = scmp.eq.s32.totalorder %s109, 0
    %s112 = sadd.s32 %s111, 1
    %s113 = scalar_select %p110, %s111, %s112
    %p116 = pneg %p110
    %p117 = scmp.eq.s32.totalorder %s12, 1
    %p118 = por %p116, %p117
    %p119 = scmp.ne.s32.totalorder %s111, %s114
    %p120 = scmp.eq.s32.totalorder %s12, 0
    %p121 = por %p119, %p120
    %p122 = scmp.ne.s32.totalorder %s111, %s114
    %p123 = scmp.eq.s32.totalorder %s17, 1
    %p124 = por %p122, %p123
    %p125 = scmp.ne.s32.totalorder %s114, %s115
    %p126 = scmp.eq.s32.totalorder %s17, 0
    %p127 = por %p125, %p126
    %p128 = scmp.ne.s32.totalorder %s114, %s115
    %p129 = scmp.eq.s32.totalorder %s18, 1
    %p130 = por %p128, %p129
    %p132 = scmp.ne.s32.totalorder %s115, %s131
    %p133 = scmp.eq.s32.totalorder %s18, 0
    %p134 = por %p132, %p133
    %s135 = ssub.s32 %s12, %s19
    %p136 = scmp.eq.s32.totalorder %s135, 0
    %s138 = sadd.s32 %s137, 1
    %s139 = scalar_select %p136, %s137, %s138
    %p142 = pneg %p136
    %p143 = scmp.eq.s32.totalorder %s12, 1
    %p144 = por %p142, %p143
    %p145 = scmp.ne.s32.totalorder %s137, %s140
    %p146 = scmp.eq.s32.totalorder %s12, 0
    %p147 = por %p145, %p146
    %p148 = scmp.ne.s32.totalorder %s137, %s140
    %p149 = scmp.eq.s32.totalorder %s17, 1
    %p150 = por %p148, %p149
    %p151 = scmp.ne.s32.totalorder %s140, %s141
    %p152 = scmp.eq.s32.totalorder %s17, 0
    %p153 = por %p151, %p152
    %p154 = scmp.ne.s32.totalorder %s140, %s141
    %p155 = scmp.eq.s32.totalorder %s18, 1
    %p156 = por %p154, %p155
    %p158 = scmp.ne.s32.totalorder %s141, %s157
    %p159 = scmp.eq.s32.totalorder %s18, 0
    %p160 = por %p158, %p159
    %p161 = scmp.le.s32.totalorder 1, %s12
    %p162 = scmp.lt.s32.totalorder %s12, 3
    %p163 = pnand %p161, %p162
    %p164 = pneg %p163
    // Predicated region
    $region9: #{identity_block_forward.5} parent=5 // pred_check
      _
    $region10: #{identity_block_forward.5} parent=5 // pred_check_branch
      %166 = sbr.rel (%p163) target = $region12
    $region11: #{identity_block_forward.5} parent=5 // pred_region
      %s167 = ssub.s32 %s12, 1
      // Predicated region
      $region13: #{identity_block_forward.5} parent=11 // pred_check
        %p168 = pneg %p59
      $region14: #{identity_block_forward.5} parent=11 // pred_check_branch
        %170 = sbr.rel (%p168) target = $region16
      $region15: #{identity_block_forward.5} parent=11 // pred_region
        _
      $region16: #{identity_block_forward.5} parent=11 // pred_fallthru
        _
      // Predicated region
      $region17: #{identity_block_forward.5} parent=11 // pred_check
        %p171 = pneg %p80
      $region18: #{identity_block_forward.5} parent=11 // pred_check_branch
        %173 = sbr.rel (%p171) target = $region20
      $region19: #{identity_block_forward.5} parent=11 // pred_region
        _
      $region20: #{identity_block_forward.5} parent=11 // pred_fallthru
        _
      // Predicated region
      $region21: #{identity_block_forward.5} parent=11 // pred_check
        %p174 = pneg %p101
      $region22: #{identity_block_forward.5} parent=11 // pred_check_branch
        %176 = sbr.rel (%p174) target = $region24
      $region23: #{identity_block_forward.5} parent=11 // pred_region
        _
      $region24: #{identity_block_forward.5} parent=11 // pred_fallthru
        _
    $region12: #{identity_block_forward.5} parent=5 // pred_fallthru
      _
    %p177 = scmp.lt.s32.totalorder %s12, 2
    // Predicated region
    $region25: #{identity_block_forward.5} parent=5 // pred_check
      %p178 = pneg %p177
    $region26: #{identity_block_forward.5} parent=5 // pred_check_branch
      %180 = sbr.rel (%p178) target = $region28
    $region27: #{identity_block_forward.5} parent=5 // pred_region
      // Predicated region
      $region29: #{identity_block_forward.5} parent=27 // pred_check
        %p181 = pneg %p32
      $region30: #{identity_block_forward.5} parent=27 // pred_check_branch
        %183 = sbr.rel (%p181) target = $region32
      $region31: #{identity_block_forward.5} parent=27 // pred_region
        %p184 = scmp.lt.s32.totalorder %s12, 1
        %s185 = scalar_select %p184, %s12, 1
        %s186 = smul.addr %s185, 32
        %s187 = smul.addr %s186, 4
        %s188 = scalar_lea.vmem %s0, %s187
      $region32: #{identity_block_forward.5} parent=27 // pred_fallthru
        _
    $region28: #{identity_block_forward.5} parent=5 // pred_fallthru
      _
    %p189 = scmp.le.s32.totalorder 1, %s12
    %p190 = scmp.lt.s32.totalorder %s12, 3
    %p191 = pnand %p189, %p190
    %p192 = pneg %p191
    // Predicated region
    $region33: #{identity_block_forward.5} parent=5 // pred_check
      _
    $region34: #{identity_block_forward.5} parent=5 // pred_check_branch
      %194 = sbr.rel (%p191) target = $region36
    $region35: #{identity_block_forward.5} parent=5 // pred_region
      %s195 = ssub.s32 %s12, 1
      %p196 = scmp.lt.s32.totalorder %s17, 1
      %s197 = scalar_select %p196, %s17, 1
      %s198 = smul.addr %s197, 32
      %s199 = smul.addr %s198, 4
      %s200 = scalar_lea.vmem %s0, %s199
      %p201 = pneg %p38
      %p202 = pneg %p35
      %p203 = pneg %p59
      %p204 = pneg %p56
      %p205 = pneg %p80
      %p206 = pneg %p77
      %p207 = pneg %p101
      %p208 = pneg %p98
      %p209 = pneg %p127
      %p210 = pneg %p124
      %p211 = scmp.lt.s32.totalorder %s17, 1
      %s212 = scalar_select %p211, %s17, 1
      %s213 = smul.addr %s212, 32
      %s214 = smul.addr %s213, 4
      %s215 = scalar_lea.vmem %s4, %s214
      %p216 = pneg %p153
      %p217 = pneg %p150
      %p218 = scmp.lt.s32.totalorder %s17, 1
      %s219 = scalar_select %p218, %s17, 1
      %s220 = smul.addr %s219, 2
      %s221 = scalar_lea.vmem %s5, %s220
      %p222 = scmp.lt.s32.totalorder %s17, 1
      %s223 = scalar_select %p222, %s17, 1
      %s224 = smul.addr %s223, 32
      %s225 = smul.addr %s224, 4
      %s226 = scalar_lea.vmem %s0, %s225
      %p227 = scmp.lt.s32.totalorder %s17, 1
      %s228 = scalar_select %p227, %s17, 1
      %s229 = smul.addr %s228, 32
      %s230 = smul.addr %s229, 4
      %s231 = scalar_lea.vmem %s4, %s230
      %p232 = scmp.lt.s32.totalorder %s17, 1
      %s233 = scalar_select %p232, %s17, 1
      %s234 = smul.addr %s233, 2
      %s235 = scalar_lea.vmem %s5, %s234
      %v237 = vld [vmem:[%s226] sm:$0xf]
      %v238 = vld [vmem:[%s226 + $0x4] sm:$0xf]
      %v239 = vld [vmem:[%s226 + $0x8] sm:$0xf]
      %v240 = vld [vmem:[%s226 + $0xc] sm:$0xf]
      %v241 = vld [vmem:[%s226 + $0x10] sm:$0xf]
      %v242 = vld [vmem:[%s226 + $0x14] sm:$0xf]
      %v243 = vld [vmem:[%s226 + $0x18] sm:$0xf]
      %v244 = vld [vmem:[%s226 + $0x1c] sm:$0xf]
      %v245 = vld [vmem:[%s226 + $0x20] sm:$0xf]
      %v246 = vld [vmem:[%s226 + $0x24] sm:$0xf]
      %v247 = vld [vmem:[%s226 + $0x28] sm:$0xf]
      %v248 = vld [vmem:[%s226 + $0x2c] sm:$0xf]
      %v249 = vld [vmem:[%s226 + $0x30] sm:$0xf]
      %v250 = vld [vmem:[%s226 + $0x34] sm:$0xf]
      %v251 = vld [vmem:[%s226 + $0x38] sm:$0xf]
      %v252 = vld [vmem:[%s226 + $0x3c] sm:$0xf]
      %v253 = vld [vmem:[%s226 + $0x40] sm:$0xf]
      %v254 = vld [vmem:[%s226 + $0x44] sm:$0xf]
      %v255 = vld [vmem:[%s226 + $0x48] sm:$0xf]
      %v256 = vld [vmem:[%s226 + $0x4c] sm:$0xf]
      %v257 = vld [vmem:[%s226 + $0x50] sm:$0xf]
      %v258 = vld [vmem:[%s226 + $0x54] sm:$0xf]
      %v259 = vld [vmem:[%s226 + $0x58] sm:$0xf]
      %v260 = vld [vmem:[%s226 + $0x5c] sm:$0xf]
      %v261 = vld [vmem:[%s226 + $0x60] sm:$0xf]
      %v262 = vld [vmem:[%s226 + $0x64] sm:$0xf]
      %v263 = vld [vmem:[%s226 + $0x68] sm:$0xf]
      %v264 = vld [vmem:[%s226 + $0x6c] sm:$0xf]
      %v265 = vld [vmem:[%s226 + $0x70] sm:$0xf]
      %v266 = vld [vmem:[%s226 + $0x74] sm:$0xf]
      %v267 = vld [vmem:[%s226 + $0x78] sm:$0xf]
      %v268 = vld [vmem:[%s226 + $0x7c] sm:$0xf]
      %v269 = vunpack.c.l.bf16 %v237
      %v270 = vunpack.c.l.bf16 %v238
      %v271 = vunpack.c.l.bf16 %v239
      %v272 = vunpack.c.l.bf16 %v240
      %v273 = vunpack.c.l.bf16 %v241
      %v274 = vunpack.c.l.bf16 %v242
      %v275 = vunpack.c.l.bf16 %v243
      %v276 = vunpack.c.l.bf16 %v244
      %v277 = vunpack.c.l.bf16 %v245
      %v278 = vunpack.c.l.bf16 %v246
      %v279 = vunpack.c.l.bf16 %v247
      %v280 = vunpack.c.l.bf16 %v248
      %v281 = vunpack.c.l.bf16 %v249
      %v282 = vunpack.c.l.bf16 %v250
      %v283 = vunpack.c.l.bf16 %v251
      %v284 = vunpack.c.l.bf16 %v252
      %v285 = vunpack.c.l.bf16 %v253
      %v286 = vunpack.c.l.bf16 %v254
      %v287 = vunpack.c.l.bf16 %v255
      %v288 = vunpack.c.l.bf16 %v256
      %v289 = vunpack.c.l.bf16 %v257
      %v290 = vunpack.c.l.bf16 %v258
      %v291 = vunpack.c.l.bf16 %v259
      %v292 = vunpack.c.l.bf16 %v260
      %v293 = vunpack.c.l.bf16 %v261
      %v294 = vunpack.c.l.bf16 %v262
      %v295 = vunpack.c.l.bf16 %v263
      %v296 = vunpack.c.l.bf16 %v264
      %v297 = vunpack.c.l.bf16 %v265
      %v298 = vunpack.c.l.bf16 %v266
      %v299 = vunpack.c.l.bf16 %v267
      %v300 = vunpack.c.l.bf16 %v268
      %v301 = vld [vmem:[%s2] sm:$0x1]
      %v303 = vlaneseq
      %v304 = vshrl.u32 %v303, 7
      %v305 = vsub.s32 0, %v304
      %v306 = vrot.slane %v301, %v305
      %v308 = vmul.f32 %v269, %v306
      %v309 = vmul.f32 %v270, %v306
      %v310 = vmul.f32 %v271, %v306
      %v311 = vmul.f32 %v272, %v306
      %v312 = vmul.f32 %v273, %v306
      %v313 = vmul.f32 %v274, %v306
      %v314 = vmul.f32 %v275, %v306
      %v315 = vmul.f32 %v276, %v306
      %v316 = vmul.f32 %v277, %v306
      %v317 = vmul.f32 %v278, %v306
      %v318 = vmul.f32 %v279, %v306
      %v319 = vmul.f32 %v280, %v306
      %v320 = vmul.f32 %v281, %v306
      %v321 = vmul.f32 %v282, %v306
      %v322 = vmul.f32 %v283, %v306
      %v323 = vmul.f32 %v284, %v306
      %v324 = vmul.f32 %v285, %v306
      %v325 = vmul.f32 %v286, %v306
      %v326 = vmul.f32 %v287, %v306
      %v327 = vmul.f32 %v288, %v306
      %v328 = vmul.f32 %v289, %v306
      %v329 = vmul.f32 %v290, %v306
      %v330 = vmul.f32 %v291, %v306
      %v331 = vmul.f32 %v292, %v306
      %v332 = vmul.f32 %v293, %v306
      %v333 = vmul.f32 %v294, %v306
      %v334 = vmul.f32 %v295, %v306
      %v335 = vmul.f32 %v296, %v306
      %v336 = vmul.f32 %v297, %v306
      %v337 = vmul.f32 %v298, %v306
      %v338 = vmul.f32 %v299, %v306
      %v339 = vmul.f32 %v300, %v306
      %v340 = vld [vmem:[%s3] sm:$0x1]
      %v342 = vlaneseq
      %v343 = vshrl.u32 %v342, 7
      %v344 = vsub.s32 0, %v343
      %v345 = vrot.slane %v340, %v344
      %v347 = vadd.f32 %v308, %v345
      %v348 = vadd.f32 %v309, %v345
      %v349 = vadd.f32 %v310, %v345
      %v350 = vadd.f32 %v311, %v345
      %v351 = vadd.f32 %v312, %v345
      %v352 = vadd.f32 %v313, %v345
      %v353 = vadd.f32 %v314, %v345
      %v354 = vadd.f32 %v315, %v345
      %v355 = vadd.f32 %v316, %v345
      %v356 = vadd.f32 %v317, %v345
      %v357 = vadd.f32 %v318, %v345
      %v358 = vadd.f32 %v319, %v345
      %v359 = vadd.f32 %v320, %v345
      %v360 = vadd.f32 %v321, %v345
      %v361 = vadd.f32 %v322, %v345
      %v362 = vadd.f32 %v323, %v345
      %v363 = vadd.f32 %v324, %v345
      %v364 = vadd.f32 %v325, %v345
      %v365 = vadd.f32 %v326, %v345
      %v366 = vadd.f32 %v327, %v345
      %v367 = vadd.f32 %v328, %v345
      %v368 = vadd.f32 %v329, %v345
      %v369 = vadd.f32 %v330, %v345
      %v370 = vadd.f32 %v331, %v345
      %v371 = vadd.f32 %v332, %v345
      %v372 = vadd.f32 %v333, %v345
      %v373 = vadd.f32 %v334, %v345
      %v374 = vadd.f32 %v335, %v345
      %v375 = vadd.f32 %v336, %v345
      %v376 = vadd.f32 %v337, %v345
      %v377 = vadd.f32 %v338, %v345
      %v378 = vadd.f32 %v339, %v345
      %v379 = vmax.f32 %v347, 0.0
      %v380 = vmax.f32 %v348, 0.0
      %v381 = vmax.f32 %v349, 0.0
      %v382 = vmax.f32 %v350, 0.0
      %v383 = vmax.f32 %v351, 0.0
      %v384 = vmax.f32 %v352, 0.0
      %v385 = vmax.f32 %v353, 0.0
      %v386 = vmax.f32 %v354, 0.0
      %v387 = vmax.f32 %v355, 0.0
      %v388 = vmax.f32 %v356, 0.0
      %v389 = vmax.f32 %v357, 0.0
      %v390 = vmax.f32 %v358, 0.0
      %v391 = vmax.f32 %v359, 0.0
      %v392 = vmax.f32 %v360, 0.0
      %v393 = vmax.f32 %v361, 0.0
      %v394 = vmax.f32 %v362, 0.0
      %v395 = vmax.f32 %v363, 0.0
      %v396 = vmax.f32 %v364, 0.0
      %v397 = vmax.f32 %v365, 0.0
      %v398 = vmax.f32 %v366, 0.0
      %v399 = vmax.f32 %v367, 0.0
      %v400 = vmax.f32 %v368, 0.0
      %v401 = vmax.f32 %v369, 0.0
      %v402 = vmax.f32 %v370, 0.0
      %v403 = vmax.f32 %v371, 0.0
      %v404 = vmax.f32 %v372, 0.0
      %v405 = vmax.f32 %v373, 0.0
      %v406 = vmax.f32 %v374, 0.0
      %v407 = vmax.f32 %v375, 0.0
      %v408 = vmax.f32 %v376, 0.0
      %v409 = vmax.f32 %v377, 0.0
      %v410 = vmax.f32 %v378, 0.0
      %vm411 = vcmask 31744
      %412 = vst.msk [vmem:[#allocation2] sm:$0xff] %vm411, 0.0
      %413 = vst.msk [vmem:[#allocation2 + $0x8] sm:$0xff] %vm411, 0.0
      %vm414 = vcmask 25600
      %415 = vst.msk [vmem:[#allocation2 + $0x10] sm:$0x3] %vm414, 0.0
      %s416 = scalar_lea.vmem [#allocation2], 408
      %417 = vst.msk [vmem:[%s416] sm:$0xff] %vm411, 0.0
      %418 = vst.msk [vmem:[%s416 + $0x8] sm:$0xff] %vm411, 0.0
      %419 = vst.msk [vmem:[%s416 + $0x10] sm:$0x3] %vm414, 0.0
      %s420 = scalar_lea.vmem [#allocation2], 24
      %vm421 = vcmask 24576
      %422 = vst.msk [vmem:[%s420] sm:$0x1] %vm421, 0.0
      %423 = vst.msk [vmem:[%s420 + $0x18] sm:$0x1] %vm421, 0.0
      %424 = vst.msk [vmem:[%s420 + $0x30] sm:$0x1] %vm421, 0.0
      %425 = vst.msk [vmem:[%s420 + $0x48] sm:$0x1] %vm421, 0.0
      %426 = vst.msk [vmem:[%s420 + $0x60] sm:$0x1] %vm421, 0.0
      %427 = vst.msk [vmem:[%s420 + $0x78] sm:$0x1] %vm421, 0.0
      %428 = vst.msk [vmem:[%s420 + $0x90] sm:$0x1] %vm421, 0.0
      %429 = vst.msk [vmem:[%s420 + $0xa8] sm:$0x1] %vm421, 0.0
      %430 = vst.msk [vmem:[%s420 + $0xc0] sm:$0x1] %vm421, 0.0
      %431 = vst.msk [vmem:[%s420 + $0xd8] sm:$0x1] %vm421, 0.0
      %432 = vst.msk [vmem:[%s420 + $0xf0] sm:$0x1] %vm421, 0.0
      %433 = vst.msk [vmem:[%s420 + $0x108] sm:$0x1] %vm421, 0.0
      %434 = vst.msk [vmem:[%s420 + $0x120] sm:$0x1] %vm421, 0.0
      %435 = vst.msk [vmem:[%s420 + $0x138] sm:$0x1] %vm421, 0.0
      %436 = vst.msk [vmem:[%s420 + $0x150] sm:$0x1] %vm421, 0.0
      %437 = vst.msk [vmem:[%s420 + $0x168] sm:$0x1] %vm421, 0.0
      %438 = vst.msk [vmem:[%s420 + $0x11] sm:$0x1] %vm421, 0.0
      %439 = vst.msk [vmem:[%s420 + $0x29] sm:$0x1] %vm421, 0.0
      %440 = vst.msk [vmem:[%s420 + $0x41] sm:$0x1] %vm421, 0.0
      %441 = vst.msk [vmem:[%s420 + $0x59] sm:$0x1] %vm421, 0.0
      %442 = vst.msk [vmem:[%s420 + $0x71] sm:$0x1] %vm421, 0.0
      %443 = vst.msk [vmem:[%s420 + $0x89] sm:$0x1] %vm421, 0.0
      %444 = vst.msk [vmem:[%s420 + $0xa1] sm:$0x1] %vm421, 0.0
      %445 = vst.msk [vmem:[%s420 + $0xb9] sm:$0x1] %vm421, 0.0
      %446 = vst.msk [vmem:[%s420 + $0xd1] sm:$0x1] %vm421, 0.0
      %447 = vst.msk [vmem:[%s420 + $0xe9] sm:$0x1] %vm421, 0.0
      %448 = vst.msk [vmem:[%s420 + $0x101] sm:$0x1] %vm421, 0.0
      %449 = vst.msk [vmem:[%s420 + $0x119] sm:$0x1] %vm421, 0.0
      %450 = vst.msk [vmem:[%s420 + $0x131] sm:$0x1] %vm421, 0.0
      %451 = vst.msk [vmem:[%s420 + $0x149] sm:$0x1] %vm421, 0.0
      %452 = vst.msk [vmem:[%s420 + $0x161] sm:$0x1] %vm421, 0.0
      %453 = vst.msk [vmem:[%s420 + $0x179] sm:$0x1] %vm421, 0.0
      %454 = vst.msk [vmem:[%s420 + $0x1] sm:$0xff] %vm411, %v379
      %455 = vst.msk [vmem:[%s420 + $0x9] sm:$0xff] %vm411, %v380
      %456 = vst.msk [vmem:[%s420 + $0x19] sm:$0xff] %vm411, %v381
      %457 = vst.msk [vmem:[%s420 + $0x21] sm:$0xff] %vm411, %v382
      %458 = vst.msk [vmem:[%s420 + $0x31] sm:$0xff] %vm411, %v383
      %459 = vst.msk [vmem:[%s420 + $0x39] sm:$0xff] %vm411, %v384
      %460 = vst.msk [vmem:[%s420 + $0x49] sm:$0xff] %vm411, %v385
      %461 = vst.msk [vmem:[%s420 + $0x51] sm:$0xff] %vm411, %v386
      %462 = vst.msk [vmem:[%s420 + $0x61] sm:$0xff] %vm411, %v387
      %463 = vst.msk [vmem:[%s420 + $0x69] sm:$0xff] %vm411, %v388
      %464 = vst.msk [vmem:[%s420 + $0x79] sm:$0xff] %vm411, %v389
      %465 = vst.msk [vmem:[%s420 + $0x81] sm:$0xff] %vm411, %v390
      %466 = vst.msk [vmem:[%s420 + $0x91] sm:$0xff] %vm411, %v391
      %467 = vst.msk [vmem:[%s420 + $0x99] sm:$0xff] %vm411, %v392
      %468 = vst.msk [vmem:[%s420 + $0xa9] sm:$0xff] %vm411, %v393
      %469 = vst.msk [vmem:[%s420 + $0xb1] sm:$0xff] %vm411, %v394
      %470 = vst.msk [vmem:[%s420 + $0xc1] sm:$0xff] %vm411, %v395
      %471 = vst.msk [vmem:[%s420 + $0xc9] sm:$0xff] %vm411, %v396
      %472 = vst.msk [vmem:[%s420 + $0xd9] sm:$0xff] %vm411, %v397
      %473 = vst.msk [vmem:[%s420 + $0xe1] sm:$0xff] %vm411, %v398
      %474 = vst.msk [vmem:[%s420 + $0xf1] sm:$0xff] %vm411, %v399
      %475 = vst.msk [vmem:[%s420 + $0xf9] sm:$0xff] %vm411, %v400
      %476 = vst.msk [vmem:[%s420 + $0x109] sm:$0xff] %vm411, %v401
      %477 = vst.msk [vmem:[%s420 + $0x111] sm:$0xff] %vm411, %v402
      %478 = vst.msk [vmem:[%s420 + $0x121] sm:$0xff] %vm411, %v403
      %479 = vst.msk [vmem:[%s420 + $0x129] sm:$0xff] %vm411, %v404
      %480 = vst.msk [vmem:[%s420 + $0x139] sm:$0xff] %vm411, %v405
      %481 = vst.msk [vmem:[%s420 + $0x141] sm:$0xff] %vm411, %v406
      %482 = vst.msk [vmem:[%s420 + $0x151] sm:$0xff] %vm411, %v407
      %483 = vst.msk [vmem:[%s420 + $0x159] sm:$0xff] %vm411, %v408
      %484 = vst.msk [vmem:[%s420 + $0x169] sm:$0xff] %vm411, %v409
      %485 = vst.msk [vmem:[%s420 + $0x171] sm:$0xff] %vm411, %v410
      %v486 = vld [vmem:[#allocation2] sm:$0xff]
      %v487 = vld [vmem:[#allocation2 + $0x8] sm:$0xff]
      %v488 = vld [vmem:[#allocation2 + $0x18] sm:$0xff]
      %v489 = vld [vmem:[#allocation2 + $0x20] sm:$0xff]
      %v490 = vld [vmem:[#allocation2 + $0x30] sm:$0xff]
      %v491 = vld [vmem:[#allocation2 + $0x38] sm:$0xff]
      %v492 = vld [vmem:[#allocation2 + $0x48] sm:$0xff]
      %v493 = vld [vmem:[#allocation2 + $0x50] sm:$0xff]
      %v494 = vld [vmem:[#allocation2 + $0x60] sm:$0xff]
      %v495 = vld [vmem:[#allocation2 + $0x68] sm:$0xff]
      %v496 = vld [vmem:[#allocation2 + $0x78] sm:$0xff]
      %v497 = vld [vmem:[#allocation2 + $0x80] sm:$0xff]
      %v498 = vld [vmem:[#allocation2 + $0x90] sm:$0xff]
      %v499 = vld [vmem:[#allocation2 + $0x98] sm:$0xff]
      %v500 = vld [vmem:[#allocation2 + $0xa8] sm:$0xff]
      %v501 = vld [vmem:[#allocation2 + $0xb0] sm:$0xff]
      %v502 = vld [vmem:[#allocation2 + $0xc0] sm:$0xff]
      %v503 = vld [vmem:[#allocation2 + $0xc8] sm:$0xff]
      %v504 = vld [vmem:[#allocation2 + $0xd8] sm:$0xff]
      %v505 = vld [vmem:[#allocation2 + $0xe0] sm:$0xff]
      %v506 = vld [vmem:[#allocation2 + $0xf0] sm:$0xff]
      %v507 = vld [vmem:[#allocation2 + $0xf8] sm:$0xff]
      %v508 = vld [vmem:[#allocation2 + $0x108] sm:$0xff]
      %v509 = vld [vmem:[#allocation2 + $0x110] sm:$0xff]
      %v510 = vld [vmem:[#allocation2 + $0x120] sm:$0xff]
      %v511 = vld [vmem:[#allocation2 + $0x128] sm:$0xff]
      %v512 = vld [vmem:[#allocation2 + $0x138] sm:$0xff]
      %v513 = vld [vmem:[#allocation2 + $0x140] sm:$0xff]
      %v514 = vld [vmem:[#allocation2 + $0x150] sm:$0xff]
      %v515 = vld [vmem:[#allocation2 + $0x158] sm:$0xff]
      %v516 = vld [vmem:[#allocation2 + $0x168] sm:$0xff]
      %v517 = vld [vmem:[#allocation2 + $0x170] sm:$0xff]
      %v518 = vpack.c.bf16 %v487, %v486
      %v519 = vpack.c.bf16 %v489, %v488
      %v520 = vpack.c.bf16 %v491, %v490
      %v521 = vpack.c.bf16 %v493, %v492
      %v522 = vpack.c.bf16 %v495, %v494
      %v523 = vpack.c.bf16 %v497, %v496
      %v524 = vpack.c.bf16 %v499, %v498
      %v525 = vpack.c.bf16 %v501, %v500
      %v526 = vpack.c.bf16 %v503, %v502
      %v527 = vpack.c.bf16 %v505, %v504
      %v528 = vpack.c.bf16 %v507, %v506
      %v529 = vpack.c.bf16 %v509, %v508
      %v530 = vpack.c.bf16 %v511, %v510
      %v531 = vpack.c.bf16 %v513, %v512
      %v532 = vpack.c.bf16 %v515, %v514
      %v533 = vpack.c.bf16 %v517, %v516
      %v534 = vld [vmem:[%s1] sm:$0x3]
      %v535 = vld [vmem:[#allocation2 + $0x1] sm:$0xff]
      %v536 = vld [vmem:[#allocation2 + $0x9] sm:$0xff]
      %v537 = vld [vmem:[#allocation2 + $0x19] sm:$0xff]
      %v538 = vld [vmem:[#allocation2 + $0x21] sm:$0xff]
      %v539 = vld [vmem:[#allocation2 + $0x31] sm:$0xff]
      %v540 = vld [vmem:[#allocation2 + $0x39] sm:$0xff]
      %v541 = vld [vmem:[#allocation2 + $0x49] sm:$0xff]
      %v542 = vld [vmem:[#allocation2 + $0x51] sm:$0xff]
      %v543 = vld [vmem:[#allocation2 + $0x61] sm:$0xff]
      %v544 = vld [vmem:[#allocation2 + $0x69] sm:$0xff]
      %v545 = vld [vmem:[#allocation2 + $0x79] sm:$0xff]
      %v546 = vld [vmem:[#allocation2 + $0x81] sm:$0xff]
      %v547 = vld [vmem:[#allocation2 + $0x91] sm:$0xff]
      %v548 = vld [vmem:[#allocation2 + $0x99] sm:$0xff]
      %v549 = vld [vmem:[#allocation2 + $0xa9] sm:$0xff]
      %v550 = vld [vmem:[#allocation2 + $0xb1] sm:$0xff]
      %v551 = vld [vmem:[#allocation2 + $0xc1] sm:$0xff]
      %v552 = vld [vmem:[#allocation2 + $0xc9] sm:$0xff]
      %v553 = vld [vmem:[#allocation2 + $0xd9] sm:$0xff]
      %v554 = vld [vmem:[#allocation2 + $0xe1] sm:$0xff]
      %v555 = vld [vmem:[#allocation2 + $0xf1] sm:$0xff]
      %v556 = vld [vmem:[#allocation2 + $0xf9] sm:$0xff]
      %v557 = vld [vmem:[#allocation2 + $0x109] sm:$0xff]
      %v558 = vld [vmem:[#allocation2 + $0x111] sm:$0xff]
      %v559 = vld [vmem:[#allocation2 + $0x121] sm:$0xff]
      %v560 = vld [vmem:[#allocation2 + $0x129] sm:$0xff]
      %v561 = vld [vmem:[#allocation2 + $0x139] sm:$0xff]
      %v562 = vld [vmem:[#allocation2 + $0x141] sm:$0xff]
      %v563 = vld [vmem:[#allocation2 + $0x151] sm:$0xff]
      %v564 = vld [vmem:[#allocation2 + $0x159] sm:$0xff]
      %v565 = vld [vmem:[#allocation2 + $0x169] sm:$0xff]
      %v566 = vld [vmem:[#allocation2 + $0x171] sm:$0xff]
      %v567 = vpack.c.bf16 %v536, %v535
      %v568 = vpack.c.bf16 %v538, %v537
      %v569 = vpack.c.bf16 %v540, %v539
      %v570 = vpack.c.bf16 %v542, %v541
      %v571 = vpack.c.bf16 %v544, %v543
      %v572 = vpack.c.bf16 %v546, %v545
      %v573 = vpack.c.bf16 %v548, %v547
      %v574 = vpack.c.bf16 %v550, %v549
      %v575 = vpack.c.bf16 %v552, %v551
      %v576 = vpack.c.bf16 %v554, %v553
      %v577 = vpack.c.bf16 %v556, %v555
      %v578 = vpack.c.bf16 %v558, %v557
      %v579 = vpack.c.bf16 %v560, %v559
      %v580 = vpack.c.bf16 %v562, %v561
      %v581 = vpack.c.bf16 %v564, %v563
      %v582 = vpack.c.bf16 %v566, %v565
      %s583 = scalar_lea.vmem %s1, 2
      %v584 = vld [vmem:[%s583] sm:$0x3]
      %v586 = vsel %vm411, %v567, 0
      %v589 = vsel %vm411, %v568, 0
      %v592 = vsel %vm411, %v569, 0
      %v595 = vsel %vm411, %v570, 0
      %v598 = vsel %vm411, %v571, 0
      %v601 = vsel %vm411, %v572, 0
      %v604 = vsel %vm411, %v573, 0
      %v607 = vsel %vm411, %v574, 0
      %v610 = vsel %vm411, %v575, 0
      %v613 = vsel %vm411, %v576, 0
      %v616 = vsel %vm411, %v577, 0
      %v619 = vsel %vm411, %v578, 0
      %v622 = vsel %vm411, %v579, 0
      %v625 = vsel %vm411, %v580, 0
      %v628 = vsel %vm411, %v581, 0
      %v631 = vsel %vm411, %v582, 0
      %vm633 = vcmask 1041408
      %v635 = vsel %vm633, %v584, 0
      %637 = vmatprep.subr.bf16.mxu0 0
      %638 = vmatpush1.bf16.msra.mxu0 0
      %639 = vmatprep.subr.bf16.mxu0 0
      %640 = vmatpush1.bf16.msra.mxu0 0
      %641 = vmatprep.subr.bf16.mxu0 0
      %642 = vmatpush1.bf16.msra.mxu0 0
      %643 = vmatprep.subr.bf16.mxu0 0
      %644 = vmatpush1.bf16.msra.mxu0 0
      %645 = vmatprep.subr.bf16.mxu0 0
      %646 = vmatpush1.bf16.msra.mxu0 0
      %647 = vmatprep.subr.bf16.mxu0 0
      %648 = vmatpush1.bf16.msra.mxu0 0
      %649 = vmatprep.subr.bf16.mxu0 0
      %650 = vmatpush1.bf16.msra.mxu0 0
      %651 = vmatprep.subr.bf16.mxu0 0
      %652 = vmatpush1.bf16.msra.mxu0 %v635
      %653 = vmatprep.subr.bf16.mxu0 0
      %654 = vmatpush2.bf16.msra.mxu0 0
      %655 = vmatprep.subr.bf16.mxu0 0
      %656 = vmatpush2.bf16.msra.mxu0 0
      %657 = vmatprep.subr.bf16.mxu0 0
      %658 = vmatpush2.bf16.msra.mxu0 0
      %659 = vmatprep.subr.bf16.mxu0 0
      %660 = vmatpush2.bf16.msra.mxu0 0
      %661 = vmatprep.subr.bf16.mxu0 0
      %662 = vmatpush2.bf16.msra.mxu0 0
      %663 = vmatprep.subr.bf16.mxu0 0
      %664 = vmatpush2.bf16.msra.mxu0 0
      %665 = vmatprep.subr.bf16.mxu0 0
      %666 = vmatpush2.bf16.msra.mxu0 0
      %667 = vmatprep.subr.bf16.mxu0 0
      %668 = vmatpush2.bf16.msra.mxu0 0
      %669 = vmatprep.mubr.bf16.mxu0 0
      %670 = vmatmul.mubr.bf16.gmra.mxu0 %v586
      %v671 = vpop.f32.mrf.mxu0
      %v672 = vadd.f32 0.0, %v671
      %v673 = vpop.f32.mrf.mxu0
      %v674 = vpop.f32.mrf.mxu0
      %v675 = vadd.f32 0.0, %v674
      %v676 = vpop.f32.mrf.mxu0
      %677 = vmatprep.mubr.bf16.mxu0 0
      %678 = vmatmul.mubr.bf16.gmra.mxu0 %v589
      %v679 = vpop.f32.mrf.mxu0
      %v680 = vadd.f32 0.0, %v679
      %v681 = vpop.f32.mrf.mxu0
      %v682 = vpop.f32.mrf.mxu0
      %v683 = vadd.f32 0.0, %v682
      %v684 = vpop.f32.mrf.mxu0
      %685 = vmatprep.mubr.bf16.mxu0 0
      %686 = vmatmul.mubr.bf16.gmra.mxu0 %v592
      %v687 = vpop.f32.mrf.mxu0
      %v688 = vadd.f32 0.0, %v687
      %v689 = vpop.f32.mrf.mxu0
      %v690 = vpop.f32.mrf.mxu0
      %v691 = vadd.f32 0.0, %v690
      %v692 = vpop.f32.mrf.mxu0
      %693 = vmatprep.mubr.bf16.mxu0 0
      %694 = vmatmul.mubr.bf16.gmra.mxu0 %v595
      %v695 = vpop.f32.mrf.mxu0
      %v696 = vadd.f32 0.0, %v695
      %v697 = vpop.f32.mrf.mxu0
      %v698 = vpop.f32.mrf.mxu0
      %v699 = vadd.f32 0.0, %v698
      %v700 = vpop.f32.mrf.mxu0
      %701 = vmatprep.mubr.bf16.mxu0 0
      %702 = vmatmul.mubr.bf16.gmra.mxu0 %v598
      %v703 = vpop.f32.mrf.mxu0
      %v704 = vadd.f32 0.0, %v703
      %v705 = vpop.f32.mrf.mxu0
      %v706 = vpop.f32.mrf.mxu0
      %v707 = vadd.f32 0.0, %v706
      %v708 = vpop.f32.mrf.mxu0
      %709 = vmatprep.mubr.bf16.mxu0 0
      %710 = vmatmul.mubr.bf16.gmra.mxu0 %v601
      %v711 = vpop.f32.mrf.mxu0
      %v712 = vadd.f32 0.0, %v711
      %v713 = vpop.f32.mrf.mxu0
      %v714 = vpop.f32.mrf.mxu0
      %v715 = vadd.f32 0.0, %v714
      %v716 = vpop.f32.mrf.mxu0
      %717 = vmatprep.mubr.bf16.mxu0 0
      %718 = vmatmul.mubr.bf16.gmra.mxu0 %v604
      %v719 = vpop.f32.mrf.mxu0
      %v720 = vadd.f32 0.0, %v719
      %v721 = vpop.f32.mrf.mxu0
      %v722 = vpop.f32.mrf.mxu0
      %v723 = vadd.f32 0.0, %v722
      %v724 = vpop.f32.mrf.mxu0
      %725 = vmatprep.mubr.bf16.mxu0 0
      %726 = vmatmul.mubr.bf16.gmra.mxu0 %v607
      %v727 = vpop.f32.mrf.mxu0
      %v728 = vadd.f32 0.0, %v727
      %v729 = vpop.f32.mrf.mxu0
      %v730 = vpop.f32.mrf.mxu0
      %v731 = vadd.f32 0.0, %v730
      %v732 = vpop.f32.mrf.mxu0
      %733 = vmatprep.mubr.bf16.mxu0 0
      %734 = vmatmul.mubr.bf16.gmra.mxu0 %v610
      %v735 = vpop.f32.mrf.mxu0
      %v736 = vadd.f32 0.0, %v735
      %v737 = vpop.f32.mrf.mxu0
      %v738 = vpop.f32.mrf.mxu0
      %v739 = vadd.f32 0.0, %v738
      %v740 = vpop.f32.mrf.mxu0
      %741 = vmatprep.mubr.bf16.mxu0 0
      %742 = vmatmul.mubr.bf16.gmra.mxu0 %v613
      %v743 = vpop.f32.mrf.mxu0
      %v744 = vadd.f32 0.0, %v743
      %v745 = vpop.f32.mrf.mxu0
      %v746 = vpop.f32.mrf.mxu0
      %v747 = vadd.f32 0.0, %v746
      %v748 = vpop.f32.mrf.mxu0
      %749 = vmatprep.mubr.bf16.mxu0 0
      %750 = vmatmul.mubr.bf16.gmra.mxu0 %v616
      %v751 = vpop.f32.mrf.mxu0
      %v752 = vadd.f32 0.0, %v751
      %v753 = vpop.f32.mrf.mxu0
      %v754 = vpop.f32.mrf.mxu0
      %v755 = vadd.f32 0.0, %v754
      %v756 = vpop.f32.mrf.mxu0
      %757 = vmatprep.mubr.bf16.mxu0 0
      %758 = vmatmul.mubr.bf16.gmra.mxu0 %v619
      %v759 = vpop.f32.mrf.mxu0
      %v760 = vadd.f32 0.0, %v759
      %v761 = vpop.f32.mrf.mxu0
      %v762 = vpop.f32.mrf.mxu0
      %v763 = vadd.f32 0.0, %v762
      %v764 = vpop.f32.mrf.mxu0
      %765 = vmatprep.mubr.bf16.mxu0 0
      %766 = vmatmul.mubr.bf16.gmra.mxu0 %v622
      %v767 = vpop.f32.mrf.mxu0
      %v768 = vadd.f32 0.0, %v767
      %v769 = vpop.f32.mrf.mxu0
      %v770 = vpop.f32.mrf.mxu0
      %v771 = vadd.f32 0.0, %v770
      %v772 = vpop.f32.mrf.mxu0
      %773 = vmatprep.mubr.bf16.mxu0 0
      %774 = vmatmul.mubr.bf16.gmra.mxu0 %v625
      %v775 = vpop.f32.mrf.mxu0
      %v776 = vadd.f32 0.0, %v775
      %v777 = vpop.f32.mrf.mxu0
      %v778 = vpop.f32.mrf.mxu0
      %v779 = vadd.f32 0.0, %v778
      %v780 = vpop.f32.mrf.mxu0
      %781 = vmatprep.mubr.bf16.mxu0 0
      %782 = vmatmul.mubr.bf16.gmra.mxu0 %v628
      %v783 = vpop.f32.mrf.mxu0
      %v784 = vadd.f32 0.0, %v783
      %v785 = vpop.f32.mrf.mxu0
      %v786 = vpop.f32.mrf.mxu0
      %v787 = vadd.f32 0.0, %v786
      %v788 = vpop.f32.mrf.mxu0
      %789 = vmatprep.mubr.bf16.mxu0 0
      %790 = vmatmul.mubr.bf16.gmra.mxu0 %v631
      %v791 = vpop.f32.mrf.mxu0
      %v792 = vadd.f32 0.0, %v791
      %v793 = vpop.f32.mrf.mxu0
      %v794 = vpop.f32.mrf.mxu0
      %v795 = vadd.f32 0.0, %v794
      %v796 = vpop.f32.mrf.mxu0
      %797 = vdwg.mxu0
      %v799 = vsel %vm411, %v518, 0
      %v802 = vsel %vm411, %v519, 0
      %v805 = vsel %vm411, %v520, 0
      %v808 = vsel %vm411, %v521, 0
      %v811 = vsel %vm411, %v522, 0
      %v814 = vsel %vm411, %v523, 0
      %v817 = vsel %vm411, %v524, 0
      %v820 = vsel %vm411, %v525, 0
      %v823 = vsel %vm411, %v526, 0
      %v826 = vsel %vm411, %v527, 0
      %v829 = vsel %vm411, %v528, 0
      %v832 = vsel %vm411, %v529, 0
      %v835 = vsel %vm411, %v530, 0
      %v838 = vsel %vm411, %v531, 0
      %v841 = vsel %vm411, %v532, 0
      %v844 = vsel %vm411, %v533, 0
      %v847 = vsel %vm633, %v534, 0
      %849 = vmatprep.subr.bf16.mxu0 0
      %850 = vmatpush1.bf16.msra.mxu0 0
      %851 = vmatprep.subr.bf16.mxu0 0
      %852 = vmatpush1.bf16.msra.mxu0 0
      %853 = vmatprep.subr.bf16.mxu0 0
      %854 = vmatpush1.bf16.msra.mxu0 0
      %855 = vmatprep.subr.bf16.mxu0 0
      %856 = vmatpush1.bf16.msra.mxu0 0
      %857 = vmatprep.subr.bf16.mxu0 0
      %858 = vmatpush1.bf16.msra.mxu0 0
      %859 = vmatprep.subr.bf16.mxu0 0
      %860 = vmatpush1.bf16.msra.mxu0 0
      %861 = vmatprep.subr.bf16.mxu0 0
      %862 = vmatpush1.bf16.msra.mxu0 0
      %863 = vmatprep.subr.bf16.mxu0 0
      %864 = vmatpush1.bf16.msra.mxu0 %v847
      %865 = vmatprep.subr.bf16.mxu0 0
      %866 = vmatpush2.bf16.msra.mxu0 0
      %867 = vmatprep.subr.bf16.mxu0 0
      %868 = vmatpush2.bf16.msra.mxu0 0
      %869 = vmatprep.subr.bf16.mxu0 0
      %870 = vmatpush2.bf16.msra.mxu0 0
      %871 = vmatprep.subr.bf16.mxu0 0
      %872 = vmatpush2.bf16.msra.mxu0 0
      %873 = vmatprep.subr.bf16.mxu0 0
      %874 = vmatpush2.bf16.msra.mxu0 0
      %875 = vmatprep.subr.bf16.mxu0 0
      %876 = vmatpush2.bf16.msra.mxu0 0
      %877 = vmatprep.subr.bf16.mxu0 0
      %878 = vmatpush2.bf16.msra.mxu0 0
      %879 = vmatprep.subr.bf16.mxu0 0
      %880 = vmatpush2.bf16.msra.mxu0 0
      %881 = vmatprep.mubr.bf16.mxu0 0
      %882 = vmatmul.mubr.bf16.gmra.mxu0 %v799
      %v883 = vpop.f32.mrf.mxu0
      %v884 = vadd.f32 %v672, %v883
      %v885 = vpop.f32.mrf.mxu0
      %v886 = vpop.f32.mrf.mxu0
      %v887 = vadd.f32 %v675, %v886
      %v888 = vpop.f32.mrf.mxu0
      %889 = vmatprep.mubr.bf16.mxu0 0
      %890 = vmatmul.mubr.bf16.gmra.mxu0 %v802
      %v891 = vpop.f32.mrf.mxu0
      %v892 = vadd.f32 %v680, %v891
      %v893 = vpop.f32.mrf.mxu0
      %v894 = vpop.f32.mrf.mxu0
      %v895 = vadd.f32 %v683, %v894
      %v896 = vpop.f32.mrf.mxu0
      %897 = vmatprep.mubr.bf16.mxu0 0
      %898 = vmatmul.mubr.bf16.gmra.mxu0 %v805
      %v899 = vpop.f32.mrf.mxu0
      %v900 = vadd.f32 %v688, %v899
      %v901 = vpop.f32.mrf.mxu0
      %v902 = vpop.f32.mrf.mxu0
      %v903 = vadd.f32 %v691, %v902
      %v904 = vpop.f32.mrf.mxu0
      %905 = vmatprep.mubr.bf16.mxu0 0
      %906 = vmatmul.mubr.bf16.gmra.mxu0 %v808
      %v907 = vpop.f32.mrf.mxu0
      %v908 = vadd.f32 %v696, %v907
      %v909 = vpop.f32.mrf.mxu0
      %v910 = vpop.f32.mrf.mxu0
      %v911 = vadd.f32 %v699, %v910
      %v912 = vpop.f32.mrf.mxu0
      %913 = vmatprep.mubr.bf16.mxu0 0
      %914 = vmatmul.mubr.bf16.gmra.mxu0 %v811
      %v915 = vpop.f32.mrf.mxu0
      %v916 = vadd.f32 %v704, %v915
      %v917 = vpop.f32.mrf.mxu0
      %v918 = vpop.f32.mrf.mxu0
      %v919 = vadd.f32 %v707, %v918
      %v920 = vpop.f32.mrf.mxu0
      %921 = vmatprep.mubr.bf16.mxu0 0
      %922 = vmatmul.mubr.bf16.gmra.mxu0 %v814
      %v923 = vpop.f32.mrf.mxu0
      %v924 = vadd.f32 %v712, %v923
      %v925 = vpop.f32.mrf.mxu0
      %v926 = vpop.f32.mrf.mxu0
      %v927 = vadd.f32 %v715, %v926
      %v928 = vpop.f32.mrf.mxu0
      %929 = vmatprep.mubr.bf16.mxu0 0
      %930 = vmatmul.mubr.bf16.gmra.mxu0 %v817
      %v931 = vpop.f32.mrf.mxu0
      %v932 = vadd.f32 %v720, %v931
      %v933 = vpop.f32.mrf.mxu0
      %v934 = vpop.f32.mrf.mxu0
      %v935 = vadd.f32 %v723, %v934
      %v936 = vpop.f32.mrf.mxu0
      %937 = vmatprep.mubr.bf16.mxu0 0
      %938 = vmatmul.mubr.bf16.gmra.mxu0 %v820
      %v939 = vpop.f32.mrf.mxu0
      %v940 = vadd.f32 %v728, %v939
      %v941 = vpop.f32.mrf.mxu0
      %v942 = vpop.f32.mrf.mxu0
      %v943 = vadd.f32 %v731, %v942
      %v944 = vpop.f32.mrf.mxu0
      %945 = vmatprep.mubr.bf16.mxu0 0
      %946 = vmatmul.mubr.bf16.gmra.mxu0 %v823
      %v947 = vpop.f32.mrf.mxu0
      %v948 = vadd.f32 %v736, %v947
      %v949 = vpop.f32.mrf.mxu0
      %v950 = vpop.f32.mrf.mxu0
      %v951 = vadd.f32 %v739, %v950
      %v952 = vpop.f32.mrf.mxu0
      %953 = vmatprep.mubr.bf16.mxu0 0
      %954 = vmatmul.mubr.bf16.gmra.mxu0 %v826
      %v955 = vpop.f32.mrf.mxu0
      %v956 = vadd.f32 %v744, %v955
      %v957 = vpop.f32.mrf.mxu0
      %v958 = vpop.f32.mrf.mxu0
      %v959 = vadd.f32 %v747, %v958
      %v960 = vpop.f32.mrf.mxu0
      %961 = vmatprep.mubr.bf16.mxu0 0
      %962 = vmatmul.mubr.bf16.gmra.mxu0 %v829
      %v963 = vpop.f32.mrf.mxu0
      %v964 = vadd.f32 %v752, %v963
      %v965 = vpop.f32.mrf.mxu0
      %v966 = vpop.f32.mrf.mxu0
      %v967 = vadd.f32 %v755, %v966
      %v968 = vpop.f32.mrf.mxu0
      %969 = vmatprep.mubr.bf16.mxu0 0
      %970 = vmatmul.mubr.bf16.gmra.mxu0 %v832
      %v971 = vpop.f32.mrf.mxu0
      %v972 = vadd.f32 %v760, %v971
      %v973 = vpop.f32.mrf.mxu0
      %v974 = vpop.f32.mrf.mxu0
      %v975 = vadd.f32 %v763, %v974
      %v976 = vpop.f32.mrf.mxu0
      %977 = vmatprep.mubr.bf16.mxu0 0
      %978 = vmatmul.mubr.bf16.gmra.mxu0 %v835
      %v979 = vpop.f32.mrf.mxu0
      %v980 = vadd.f32 %v768, %v979
      %v981 = vpop.f32.mrf.mxu0
      %v982 = vpop.f32.mrf.mxu0
      %v983 = vadd.f32 %v771, %v982
      %v984 = vpop.f32.mrf.mxu0
      %985 = vmatprep.mubr.bf16.mxu0 0
      %986 = vmatmul.mubr.bf16.gmra.mxu0 %v838
      %v987 = vpop.f32.mrf.mxu0
      %v988 = vadd.f32 %v776, %v987
      %v989 = vpop.f32.mrf.mxu0
      %v990 = vpop.f32.mrf.mxu0
      %v991 = vadd.f32 %v779, %v990
      %v992 = vpop.f32.mrf.mxu0
      %993 = vmatprep.mubr.bf16.mxu0 0
      %994 = vmatmul.mubr.bf16.gmra.mxu0 %v841
      %v995 = vpop.f32.mrf.mxu0
      %v996 = vadd.f32 %v784, %v995
      %v997 = vpop.f32.mrf.mxu0
      %v998 = vpop.f32.mrf.mxu0
      %v999 = vadd.f32 %v787, %v998
      %v1000 = vpop.f32.mrf.mxu0
      %1001 = vmatprep.mubr.bf16.mxu0 0
      %1002 = vmatmul.mubr.bf16.gmra.mxu0 %v844
      %v1003 = vpop.f32.mrf.mxu0
      %v1004 = vadd.f32 %v792, %v1003
      %v1005 = vpop.f32.mrf.mxu0
      %v1006 = vpop.f32.mrf.mxu0
      %v1007 = vadd.f32 %v795, %v1006
      %v1008 = vpop.f32.mrf.mxu0
      %1009 = vdwg.mxu0
      %v1010 = vld [vmem:[#allocation2 + $0x2] sm:$0xff]
      %v1011 = vld [vmem:[#allocation2 + $0xa] sm:$0xff]
      %v1012 = vld [vmem:[#allocation2 + $0x1a] sm:$0xff]
      %v1013 = vld [vmem:[#allocation2 + $0x22] sm:$0xff]
      %v1014 = vld [vmem:[#allocation2 + $0x32] sm:$0xff]
      %v1015 = vld [vmem:[#allocation2 + $0x3a] sm:$0xff]
      %v1016 = vld [vmem:[#allocation2 + $0x4a] sm:$0xff]
      %v1017 = vld [vmem:[#allocation2 + $0x52] sm:$0xff]
      %v1018 = vld [vmem:[#allocation2 + $0x62] sm:$0xff]
      %v1019 = vld [vmem:[#allocation2 + $0x6a] sm:$0xff]
      %v1020 = vld [vmem:[#allocation2 + $0x7a] sm:$0xff]
      %v1021 = vld [vmem:[#allocation2 + $0x82] sm:$0xff]
      %v1022 = vld [vmem:[#allocation2 + $0x92] sm:$0xff]
      %v1023 = vld [vmem:[#allocation2 + $0x9a] sm:$0xff]
      %v1024 = vld [vmem:[#allocation2 + $0xaa] sm:$0xff]
      %v1025 = vld [vmem:[#allocation2 + $0xb2] sm:$0xff]
      %v1026 = vld [vmem:[#allocation2 + $0xc2] sm:$0xff]
      %v1027 = vld [vmem:[#allocation2 + $0xca] sm:$0xff]
      %v1028 = vld [vmem:[#allocation2 + $0xda] sm:$0xff]
      %v1029 = vld [vmem:[#allocation2 + $0xe2] sm:$0xff]
      %v1030 = vld [vmem:[#allocation2 + $0xf2] sm:$0xff]
      %v1031 = vld [vmem:[#allocation2 + $0xfa] sm:$0xff]
      %v1032 = vld [vmem:[#allocation2 + $0x10a] sm:$0xff]
      %v1033 = vld [vmem:[#allocation2 + $0x112] sm:$0xff]
      %v1034 = vld [vmem:[#allocation2 + $0x122] sm:$0xff]
      %v1035 = vld [vmem:[#allocation2 + $0x12a] sm:$0xff]
      %v1036 = vld [vmem:[#allocation2 + $0x13a] sm:$0xff]
      %v1037 = vld [vmem:[#allocation2 + $0x142] sm:$0xff]
      %v1038 = vld [vmem:[#allocation2 + $0x152] sm:$0xff]
      %v1039 = vld [vmem:[#allocation2 + $0x15a] sm:$0xff]
      %v1040 = vld [vmem:[#allocation2 + $0x16a] sm:$0xff]
      %v1041 = vld [vmem:[#allocation2 + $0x172] sm:$0xff]
      %v1042 = vpack.c.bf16 %v1011, %v1010
      %v1043 = vpack.c.bf16 %v1013, %v1012
      %v1044 = vpack.c.bf16 %v1015, %v1014
      %v1045 = vpack.c.bf16 %v1017, %v1016
      %v1046 = vpack.c.bf16 %v1019, %v1018
      %v1047 = vpack.c.bf16 %v1021, %v1020
      %v1048 = vpack.c.bf16 %v1023, %v1022
      %v1049 = vpack.c.bf16 %v1025, %v1024
      %v1050 = vpack.c.bf16 %v1027, %v1026
      %v1051 = vpack.c.bf16 %v1029, %v1028
      %v1052 = vpack.c.bf16 %v1031, %v1030
      %v1053 = vpack.c.bf16 %v1033, %v1032
      %v1054 = vpack.c.bf16 %v1035, %v1034
      %v1055 = vpack.c.bf16 %v1037, %v1036
      %v1056 = vpack.c.bf16 %v1039, %v1038
      %v1057 = vpack.c.bf16 %v1041, %v1040
      %s1058 = scalar_lea.vmem %s1, 4
      %v1059 = vld [vmem:[%s1058] sm:$0x3]
      %v1061 = vsel %vm411, %v1042, 0
      %v1064 = vsel %vm411, %v1043, 0
      %v1067 = vsel %vm411, %v1044, 0
      %v1070 = vsel %vm411, %v1045, 0
      %v1073 = vsel %vm411, %v1046, 0
      %v1076 = vsel %vm411, %v1047, 0
      %v1079 = vsel %vm411, %v1048, 0
      %v1082 = vsel %vm411, %v1049, 0
      %v1085 = vsel %vm411, %v1050, 0
      %v1088 = vsel %vm411, %v1051, 0
      %v1091 = vsel %vm411, %v1052, 0
      %v1094 = vsel %vm411, %v1053, 0
      %v1097 = vsel %vm411, %v1054, 0
      %v1100 = vsel %vm411, %v1055, 0
      %v1103 = vsel %vm411, %v1056, 0
      %v1106 = vsel %vm411, %v1057, 0
      %v1109 = vsel %vm633, %v1059, 0
      %1111 = vmatprep.subr.bf16.mxu0 0
      %1112 = vmatpush1.bf16.msra.mxu0 0
      %1113 = vmatprep.subr.bf16.mxu0 0
      %1114 = vmatpush1.bf16.msra.mxu0 0
      %1115 = vmatprep.subr.bf16.mxu0 0
      %1116 = vmatpush1.bf16.msra.mxu0 0
      %1117 = vmatprep.subr.bf16.mxu0 0
      %1118 = vmatpush1.bf16.msra.mxu0 0
      %1119 = vmatprep.subr.bf16.mxu0 0
      %1120 = vmatpush1.bf16.msra.mxu0 0
      %1121 = vmatprep.subr.bf16.mxu0 0
      %1122 = vmatpush1.bf16.msra.mxu0 0
      %1123 = vmatprep.subr.bf16.mxu0 0
      %1124 = vmatpush1.bf16.msra.mxu0 0
      %1125 = vmatprep.subr.bf16.mxu0 0
      %1126 = vmatpush1.bf16.msra.mxu0 %v1109
      %1127 = vmatprep.subr.bf16.mxu0 0
      %1128 = vmatpush2.bf16.msra.mxu0 0
      %1129 = vmatprep.subr.bf16.mxu0 0
      %1130 = vmatpush2.bf16.msra.mxu0 0
      %1131 = vmatprep.subr.bf16.mxu0 0
      %1132 = vmatpush2.bf16.msra.mxu0 0
      %1133 = vmatprep.subr.bf16.mxu0 0
      %1134 = vmatpush2.bf16.msra.mxu0 0
      %1135 = vmatprep.subr.bf16.mxu0 0
      %1136 = vmatpush2.bf16.msra.mxu0 0
      %1137 = vmatprep.subr.bf16.mxu0 0
      %1138 = vmatpush2.bf16.msra.mxu0 0
      %1139 = vmatprep.subr.bf16.mxu0 0
      %1140 = vmatpush2.bf16.msra.mxu0 0
      %1141 = vmatprep.subr.bf16.mxu0 0
      %1142 = vmatpush2.bf16.msra.mxu0 0
      %1143 = vmatprep.mubr.bf16.mxu0 0
      %1144 = vmatmul.mubr.bf16.gmra.mxu0 %v1061
      %v1145 = vpop.f32.mrf.mxu0
      %v1146 = vadd.f32 0.0, %v1145
      %v1147 = vpop.f32.mrf.mxu0
      %v1148 = vpop.f32.mrf.mxu0
      %v1149 = vadd.f32 0.0, %v1148
      %v1150 = vpop.f32.mrf.mxu0
      %1151 = vmatprep.mubr.bf16.mxu0 0
      %1152 = vmatmul.mubr.bf16.gmra.mxu0 %v1064
      %v1153 = vpop.f32.mrf.mxu0
      %v1154 = vadd.f32 0.0, %v1153
      %v1155 = vpop.f32.mrf.mxu0
      %v1156 = vpop.f32.mrf.mxu0
      %v1157 = vadd.f32 0.0, %v1156
      %v1158 = vpop.f32.mrf.mxu0
      %1159 = vmatprep.mubr.bf16.mxu0 0
      %1160 = vmatmul.mubr.bf16.gmra.mxu0 %v1067
      %v1161 = vpop.f32.mrf.mxu0
      %v1162 = vadd.f32 0.0, %v1161
      %v1163 = vpop.f32.mrf.mxu0
      %v1164 = vpop.f32.mrf.mxu0
      %v1165 = vadd.f32 0.0, %v1164
      %v1166 = vpop.f32.mrf.mxu0
      %1167 = vmatprep.mubr.bf16.mxu0 0
      %1168 = vmatmul.mubr.bf16.gmra.mxu0 %v1070
      %v1169 = vpop.f32.mrf.mxu0
      %v1170 = vadd.f32 0.0, %v1169
      %v1171 = vpop.f32.mrf.mxu0
      %v1172 = vpop.f32.mrf.mxu0
      %v1173 = vadd.f32 0.0, %v1172
      %v1174 = vpop.f32.mrf.mxu0
      %1175 = vmatprep.mubr.bf16.mxu0 0
      %1176 = vmatmul.mubr.bf16.gmra.mxu0 %v1073
      %v1177 = vpop.f32.mrf.mxu0
      %v1178 = vadd.f32 0.0, %v1177
      %v1179 = vpop.f32.mrf.mxu0
      %v1180 = vpop.f32.mrf.mxu0
      %v1181 = vadd.f32 0.0, %v1180
      %v1182 = vpop.f32.mrf.mxu0
      %1183 = vmatprep.mubr.bf16.mxu0 0
      %1184 = vmatmul.mubr.bf16.gmra.mxu0 %v1076
      %v1185 = vpop.f32.mrf.mxu0
      %v1186 = vadd.f32 0.0, %v1185
      %v1187 = vpop.f32.mrf.mxu0
      %v1188 = vpop.f32.mrf.mxu0
      %v1189 = vadd.f32 0.0, %v1188
      %v1190 = vpop.f32.mrf.mxu0
      %1191 = vmatprep.mubr.bf16.mxu0 0
      %1192 = vmatmul.mubr.bf16.gmra.mxu0 %v1079
      %v1193 = vpop.f32.mrf.mxu0
      %v1194 = vadd.f32 0.0, %v1193
      %v1195 = vpop.f32.mrf.mxu0
      %v1196 = vpop.f32.mrf.mxu0
      %v1197 = vadd.f32 0.0, %v1196
      %v1198 = vpop.f32.mrf.mxu0
      %1199 = vmatprep.mubr.bf16.mxu0 0
      %1200 = vmatmul.mubr.bf16.gmra.mxu0 %v1082
      %v1201 = vpop.f32.mrf.mxu0
      %v1202 = vadd.f32 0.0, %v1201
      %v1203 = vpop.f32.mrf.mxu0
      %v1204 = vpop.f32.mrf.mxu0
      %v1205 = vadd.f32 0.0, %v1204
      %v1206 = vpop.f32.mrf.mxu0
      %1207 = vmatprep.mubr.bf16.mxu0 0
      %1208 = vmatmul.mubr.bf16.gmra.mxu0 %v1085
      %v1209 = vpop.f32.mrf.mxu0
      %v1210 = vadd.f32 0.0, %v1209
      %v1211 = vpop.f32.mrf.mxu0
      %v1212 = vpop.f32.mrf.mxu0
      %v1213 = vadd.f32 0.0, %v1212
      %v1214 = vpop.f32.mrf.mxu0
      %1215 = vmatprep.mubr.bf16.mxu0 0
      %1216 = vmatmul.mubr.bf16.gmra.mxu0 %v1088
      %v1217 = vpop.f32.mrf.mxu0
      %v1218 = vadd.f32 0.0, %v1217
      %v1219 = vpop.f32.mrf.mxu0
      %v1220 = vpop.f32.mrf.mxu0
      %v1221 = vadd.f32 0.0, %v1220
      %v1222 = vpop.f32.mrf.mxu0
      %1223 = vmatprep.mubr.bf16.mxu0 0
      %1224 = vmatmul.mubr.bf16.gmra.mxu0 %v1091
      %v1225 = vpop.f32.mrf.mxu0
      %v1226 = vadd.f32 0.0, %v1225
      %v1227 = vpop.f32.mrf.mxu0
      %v1228 = vpop.f32.mrf.mxu0
      %v1229 = vadd.f32 0.0, %v1228
      %v1230 = vpop.f32.mrf.mxu0
      %1231 = vmatprep.mubr.bf16.mxu0 0
      %1232 = vmatmul.mubr.bf16.gmra.mxu0 %v1094
      %v1233 = vpop.f32.mrf.mxu0
      %v1234 = vadd.f32 0.0, %v1233
      %v1235 = vpop.f32.mrf.mxu0
      %v1236 = vpop.f32.mrf.mxu0
      %v1237 = vadd.f32 0.0, %v1236
      %v1238 = vpop.f32.mrf.mxu0
      %1239 = vmatprep.mubr.bf16.mxu0 0
      %1240 = vmatmul.mubr.bf16.gmra.mxu0 %v1097
      %v1241 = vpop.f32.mrf.mxu0
      %v1242 = vadd.f32 0.0, %v1241
      %v1243 = vpop.f32.mrf.mxu0
      %v1244 = vpop.f32.mrf.mxu0
      %v1245 = vadd.f32 0.0, %v1244
      %v1246 = vpop.f32.mrf.mxu0
      %1247 = vmatprep.mubr.bf16.mxu0 0
      %1248 = vmatmul.mubr.bf16.gmra.mxu0 %v1100
      %v1249 = vpop.f32.mrf.mxu0
      %v1250 = vadd.f32 0.0, %v1249
      %v1251 = vpop.f32.mrf.mxu0
      %v1252 = vpop.f32.mrf.mxu0
      %v1253 = vadd.f32 0.0, %v1252
      %v1254 = vpop.f32.mrf.mxu0
      %1255 = vmatprep.mubr.bf16.mxu0 0
      %1256 = vmatmul.mubr.bf16.gmra.mxu0 %v1103
      %v1257 = vpop.f32.mrf.mxu0
      %v1258 = vadd.f32 0.0, %v1257
      %v1259 = vpop.f32.mrf.mxu0
      %v1260 = vpop.f32.mrf.mxu0
      %v1261 = vadd.f32 0.0, %v1260
      %v1262 = vpop.f32.mrf.mxu0
      %1263 = vmatprep.mubr.bf16.mxu0 0
      %1264 = vmatmul.mubr.bf16.gmra.mxu0 %v1106
      %v1265 = vpop.f32.mrf.mxu0
      %v1266 = vadd.f32 0.0, %v1265
      %v1267 = vpop.f32.mrf.mxu0
      %v1268 = vpop.f32.mrf.mxu0
      %v1269 = vadd.f32 0.0, %v1268
      %v1270 = vpop.f32.mrf.mxu0
      %1271 = vdwg.mxu0
      %v1272 = vadd.f32 %v884, %v1146
      %v1273 = vadd.f32 %v887, %v1149
      %v1274 = vadd.f32 %v892, %v1154
      %v1275 = vadd.f32 %v895, %v1157
      %v1276 = vadd.f32 %v900, %v1162
      %v1277 = vadd.f32 %v903, %v1165
      %v1278 = vadd.f32 %v908, %v1170
      %v1279 = vadd.f32 %v911, %v1173
      %v1280 = vadd.f32 %v916, %v1178
      %v1281 = vadd.f32 %v919, %v1181
      %v1282 = vadd.f32 %v924, %v1186
      %v1283 = vadd.f32 %v927, %v1189
      %v1284 = vadd.f32 %v932, %v1194
      %v1285 = vadd.f32 %v935, %v1197
      %v1286 = vadd.f32 %v940, %v1202
      %v1287 = vadd.f32 %v943, %v1205
      %v1288 = vadd.f32 %v948, %v1210
      %v1289 = vadd.f32 %v951, %v1213
      %v1290 = vadd.f32 %v956, %v1218
      %v1291 = vadd.f32 %v959, %v1221
      %v1292 = vadd.f32 %v964, %v1226
      %v1293 = vadd.f32 %v967, %v1229
      %v1294 = vadd.f32 %v972, %v1234
      %v1295 = vadd.f32 %v975, %v1237
      %v1296 = vadd.f32 %v980, %v1242
      %v1297 = vadd.f32 %v983, %v1245
      %v1298 = vadd.f32 %v988, %v1250
      %v1299 = vadd.f32 %v991, %v1253
      %v1300 = vadd.f32 %v996, %v1258
      %v1301 = vadd.f32 %v999, %v1261
      %v1302 = vadd.f32 %v1004, %v1266
      %v1303 = vadd.f32 %v1007, %v1269
      %v1304 = vld [vmem:[%s420] sm:$0xff]
      %v1305 = vld [vmem:[%s420 + $0x8] sm:$0xff]
      %v1306 = vld [vmem:[%s420 + $0x18] sm:$0xff]
      %v1307 = vld [vmem:[%s420 + $0x20] sm:$0xff]
      %v1308 = vld [vmem:[%s420 + $0x30] sm:$0xff]
      %v1309 = vld [vmem:[%s420 + $0x38] sm:$0xff]
      %v1310 = vld [vmem:[%s420 + $0x48] sm:$0xff]
      %v1311 = vld [vmem:[%s420 + $0x50] sm:$0xff]
      %v1312 = vld [vmem:[%s420 + $0x60] sm:$0xff]
      %v1313 = vld [vmem:[%s420 + $0x68] sm:$0xff]
      %v1314 = vld [vmem:[%s420 + $0x78] sm:$0xff]
      %v1315 = vld [vmem:[%s420 + $0x80] sm:$0xff]
      %v1316 = vld [vmem:[%s420 + $0x90] sm:$0xff]
      %v1317 = vld [vmem:[%s420 + $0x98] sm:$0xff]
      %v1318 = vld [vmem:[%s420 + $0xa8] sm:$0xff]
      %v1319 = vld [vmem:[%s420 + $0xb0] sm:$0xff]
      %v1320 = vld [vmem:[%s420 + $0xc0] sm:$0xff]
      %v1321 = vld [vmem:[%s420 + $0xc8] sm:$0xff]
      %v1322 = vld [vmem:[%s420 + $0xd8] sm:$0xff]
      %v1323 = vld [vmem:[%s420 + $0xe0] sm:$0xff]
      %v1324 = vld [vmem:[%s420 + $0xf0] sm:$0xff]
      %v1325 = vld [vmem:[%s420 + $0xf8] sm:$0xff]
      %v1326 = vld [vmem:[%s420 + $0x108] sm:$0xff]
      %v1327 = vld [vmem:[%s420 + $0x110] sm:$0xff]
      %v1328 = vld [vmem:[%s420 + $0x120] sm:$0xff]
      %v1329 = vld [vmem:[%s420 + $0x128] sm:$0xff]
      %v1330 = vld [vmem:[%s420 + $0x138] sm:$0xff]
      %v1331 = vld [vmem:[%s420 + $0x140] sm:$0xff]
      %v1332 = vld [vmem:[%s420 + $0x150] sm:$0xff]
      %v1333 = vld [vmem:[%s420 + $0x158] sm:$0xff]
      %v1334 = vld [vmem:[%s420 + $0x168] sm:$0xff]
      %v1335 = vld [vmem:[%s420 + $0x170] sm:$0xff]
      %v1336 = vpack.c.bf16 %v1305, %v1304
      %v1337 = vpack.c.bf16 %v1307, %v1306
      %v1338 = vpack.c.bf16 %v1309, %v1308
      %v1339 = vpack.c.bf16 %v1311, %v1310
      %v1340 = vpack.c.bf16 %v1313, %v1312
      %v1341 = vpack.c.bf16 %v1315, %v1314
      %v1342 = vpack.c.bf16 %v1317, %v1316
      %v1343 = vpack.c.bf16 %v1319, %v1318
      %v1344 = vpack.c.bf16 %v1321, %v1320
      %v1345 = vpack.c.bf16 %v1323, %v1322
      %v1346 = vpack.c.bf16 %v1325, %v1324
      %v1347 = vpack.c.bf16 %v1327, %v1326
      %v1348 = vpack.c.bf16 %v1329, %v1328
      %v1349 = vpack.c.bf16 %v1331, %v1330
      %v1350 = vpack.c.bf16 %v1333, %v1332
      %v1351 = vpack.c.bf16 %v1335, %v1334
      %s1352 = scalar_lea.vmem %s1, 6
      %v1353 = vld [vmem:[%s1352] sm:$0x3]
      %v1355 = vsel %vm411, %v1336, 0
      %v1358 = vsel %vm411, %v1337, 0
      %v1361 = vsel %vm411, %v1338, 0
      %v1364 = vsel %vm411, %v1339, 0
      %v1367 = vsel %vm411, %v1340, 0
      %v1370 = vsel %vm411, %v1341, 0
      %v1373 = vsel %vm411, %v1342, 0
      %v1376 = vsel %vm411, %v1343, 0
      %v1379 = vsel %vm411, %v1344, 0
      %v1382 = vsel %vm411, %v1345, 0
      %v1385 = vsel %vm411, %v1346, 0
      %v1388 = vsel %vm411, %v1347, 0
      %v1391 = vsel %vm411, %v1348, 0
      %v1394 = vsel %vm411, %v1349, 0
      %v1397 = vsel %vm411, %v1350, 0
      %v1400 = vsel %vm411, %v1351, 0
      %v1403 = vsel %vm633, %v1353, 0
      %1405 = vmatprep.subr.bf16.mxu0 0
      %1406 = vmatpush1.bf16.msra.mxu0 0
      %1407 = vmatprep.subr.bf16.mxu0 0
      %1408 = vmatpush1.bf16.msra.mxu0 0
      %1409 = vmatprep.subr.bf16.mxu0 0
      %1410 = vmatpush1.bf16.msra.mxu0 0
      %1411 = vmatprep.subr.bf16.mxu0 0
      %1412 = vmatpush1.bf16.msra.mxu0 0
      %1413 = vmatprep.subr.bf16.mxu0 0
      %1414 = vmatpush1.bf16.msra.mxu0 0
      %1415 = vmatprep.subr.bf16.mxu0 0
      %1416 = vmatpush1.bf16.msra.mxu0 0
      %1417 = vmatprep.subr.bf16.mxu0 0
      %1418 = vmatpush1.bf16.msra.mxu0 0
      %1419 = vmatprep.subr.bf16.mxu0 0
      %1420 = vmatpush1.bf16.msra.mxu0 %v1403
      %1421 = vmatprep.subr.bf16.mxu0 0
      %1422 = vmatpush2.bf16.msra.mxu0 0
      %1423 = vmatprep.subr.bf16.mxu0 0
      %1424 = vmatpush2.bf16.msra.mxu0 0
      %1425 = vmatprep.subr.bf16.mxu0 0
      %1426 = vmatpush2.bf16.msra.mxu0 0
      %1427 = vmatprep.subr.bf16.mxu0 0
      %1428 = vmatpush2.bf16.msra.mxu0 0
      %1429 = vmatprep.subr.bf16.mxu0 0
      %1430 = vmatpush2.bf16.msra.mxu0 0
      %1431 = vmatprep.subr.bf16.mxu0 0
      %1432 = vmatpush2.bf16.msra.mxu0 0
      %1433 = vmatprep.subr.bf16.mxu0 0
      %1434 = vmatpush2.bf16.msra.mxu0 0
      %1435 = vmatprep.subr.bf16.mxu0 0
      %1436 = vmatpush2.bf16.msra.mxu0 0
      %1437 = vmatprep.mubr.bf16.mxu0 0
      %1438 = vmatmul.mubr.bf16.gmra.mxu0 %v1355
      %v1439 = vpop.f32.mrf.mxu0
      %v1440 = vadd.f32 0.0, %v1439
      %v1441 = vpop.f32.mrf.mxu0
      %v1442 = vpop.f32.mrf.mxu0
      %v1443 = vadd.f32 0.0, %v1442
      %v1444 = vpop.f32.mrf.mxu0
      %1445 = vmatprep.mubr.bf16.mxu0 0
      %1446 = vmatmul.mubr.bf16.gmra.mxu0 %v1358
      %v1447 = vpop.f32.mrf.mxu0
      %v1448 = vadd.f32 0.0, %v1447
      %v1449 = vpop.f32.mrf.mxu0
      %v1450 = vpop.f32.mrf.mxu0
      %v1451 = vadd.f32 0.0, %v1450
      %v1452 = vpop.f32.mrf.mxu0
      %1453 = vmatprep.mubr.bf16.mxu0 0
      %1454 = vmatmul.mubr.bf16.gmra.mxu0 %v1361
      %v1455 = vpop.f32.mrf.mxu0
      %v1456 = vadd.f32 0.0, %v1455
      %v1457 = vpop.f32.mrf.mxu0
      %v1458 = vpop.f32.mrf.mxu0
      %v1459 = vadd.f32 0.0, %v1458
      %v1460 = vpop.f32.mrf.mxu0
      %1461 = vmatprep.mubr.bf16.mxu0 0
      %1462 = vmatmul.mubr.bf16.gmra.mxu0 %v1364
      %v1463 = vpop.f32.mrf.mxu0
      %v1464 = vadd.f32 0.0, %v1463
      %v1465 = vpop.f32.mrf.mxu0
      %v1466 = vpop.f32.mrf.mxu0
      %v1467 = vadd.f32 0.0, %v1466
      %v1468 = vpop.f32.mrf.mxu0
      %1469 = vmatprep.mubr.bf16.mxu0 0
      %1470 = vmatmul.mubr.bf16.gmra.mxu0 %v1367
      %v1471 = vpop.f32.mrf.mxu0
      %v1472 = vadd.f32 0.0, %v1471
      %v1473 = vpop.f32.mrf.mxu0
      %v1474 = vpop.f32.mrf.mxu0
      %v1475 = vadd.f32 0.0, %v1474
      %v1476 = vpop.f32.mrf.mxu0
      %1477 = vmatprep.mubr.bf16.mxu0 0
      %1478 = vmatmul.mubr.bf16.gmra.mxu0 %v1370
      %v1479 = vpop.f32.mrf.mxu0
      %v1480 = vadd.f32 0.0, %v1479
      %v1481 = vpop.f32.mrf.mxu0
      %v1482 = vpop.f32.mrf.mxu0
      %v1483 = vadd.f32 0.0, %v1482
      %v1484 = vpop.f32.mrf.mxu0
      %1485 = vmatprep.mubr.bf16.mxu0 0
      %1486 = vmatmul.mubr.bf16.gmra.mxu0 %v1373
      %v1487 = vpop.f32.mrf.mxu0
      %v1488 = vadd.f32 0.0, %v1487
      %v1489 = vpop.f32.mrf.mxu0
      %v1490 = vpop.f32.mrf.mxu0
      %v1491 = vadd.f32 0.0, %v1490
      %v1492 = vpop.f32.mrf.mxu0
      %1493 = vmatprep.mubr.bf16.mxu0 0
      %1494 = vmatmul.mubr.bf16.gmra.mxu0 %v1376
      %v1495 = vpop.f32.mrf.mxu0
      %v1496 = vadd.f32 0.0, %v1495
      %v1497 = vpop.f32.mrf.mxu0
      %v1498 = vpop.f32.mrf.mxu0
      %v1499 = vadd.f32 0.0, %v1498
      %v1500 = vpop.f32.mrf.mxu0
      %1501 = vmatprep.mubr.bf16.mxu0 0
      %1502 = vmatmul.mubr.bf16.gmra.mxu0 %v1379
      %v1503 = vpop.f32.mrf.mxu0
      %v1504 = vadd.f32 0.0, %v1503
      %v1505 = vpop.f32.mrf.mxu0
      %v1506 = vpop.f32.mrf.mxu0
      %v1507 = vadd.f32 0.0, %v1506
      %v1508 = vpop.f32.mrf.mxu0
      %1509 = vmatprep.mubr.bf16.mxu0 0
      %1510 = vmatmul.mubr.bf16.gmra.mxu0 %v1382
      %v1511 = vpop.f32.mrf.mxu0
      %v1512 = vadd.f32 0.0, %v1511
      %v1513 = vpop.f32.mrf.mxu0
      %v1514 = vpop.f32.mrf.mxu0
      %v1515 = vadd.f32 0.0, %v1514
      %v1516 = vpop.f32.mrf.mxu0
      %1517 = vmatprep.mubr.bf16.mxu0 0
      %1518 = vmatmul.mubr.bf16.gmra.mxu0 %v1385
      %v1519 = vpop.f32.mrf.mxu0
      %v1520 = vadd.f32 0.0, %v1519
      %v1521 = vpop.f32.mrf.mxu0
      %v1522 = vpop.f32.mrf.mxu0
      %v1523 = vadd.f32 0.0, %v1522
      %v1524 = vpop.f32.mrf.mxu0
      %1525 = vmatprep.mubr.bf16.mxu0 0
      %1526 = vmatmul.mubr.bf16.gmra.mxu0 %v1388
      %v1527 = vpop.f32.mrf.mxu0
      %v1528 = vadd.f32 0.0, %v1527
      %v1529 = vpop.f32.mrf.mxu0
      %v1530 = vpop.f32.mrf.mxu0
      %v1531 = vadd.f32 0.0, %v1530
      %v1532 = vpop.f32.mrf.mxu0
      %1533 = vmatprep.mubr.bf16.mxu0 0
      %1534 = vmatmul.mubr.bf16.gmra.mxu0 %v1391
      %v1535 = vpop.f32.mrf.mxu0
      %v1536 = vadd.f32 0.0, %v1535
      %v1537 = vpop.f32.mrf.mxu0
      %v1538 = vpop.f32.mrf.mxu0
      %v1539 = vadd.f32 0.0, %v1538
      %v1540 = vpop.f32.mrf.mxu0
      %1541 = vmatprep.mubr.bf16.mxu0 0
      %1542 = vmatmul.mubr.bf16.gmra.mxu0 %v1394
      %v1543 = vpop.f32.mrf.mxu0
      %v1544 = vadd.f32 0.0, %v1543
      %v1545 = vpop.f32.mrf.mxu0
      %v1546 = vpop.f32.mrf.mxu0
      %v1547 = vadd.f32 0.0, %v1546
      %v1548 = vpop.f32.mrf.mxu0
      %1549 = vmatprep.mubr.bf16.mxu0 0
      %1550 = vmatmul.mubr.bf16.gmra.mxu0 %v1397
      %v1551 = vpop.f32.mrf.mxu0
      %v1552 = vadd.f32 0.0, %v1551
      %v1553 = vpop.f32.mrf.mxu0
      %v1554 = vpop.f32.mrf.mxu0
      %v1555 = vadd.f32 0.0, %v1554
      %v1556 = vpop.f32.mrf.mxu0
      %1557 = vmatprep.mubr.bf16.mxu0 0
      %1558 = vmatmul.mubr.bf16.gmra.mxu0 %v1400
      %v1559 = vpop.f32.mrf.mxu0
      %v1560 = vadd.f32 0.0, %v1559
      %v1561 = vpop.f32.mrf.mxu0
      %v1562 = vpop.f32.mrf.mxu0
      %v1563 = vadd.f32 0.0, %v1562
      %v1564 = vpop.f32.mrf.mxu0
      %1565 = vdwg.mxu0
      %v1566 = vadd.f32 %v1272, %v1440
      %v1567 = vadd.f32 %v1273, %v1443
      %v1568 = vadd.f32 %v1274, %v1448
      %v1569 = vadd.f32 %v1275, %v1451
      %v1570 = vadd.f32 %v1276, %v1456
      %v1571 = vadd.f32 %v1277, %v1459
      %v1572 = vadd.f32 %v1278, %v1464
      %v1573 = vadd.f32 %v1279, %v1467
      %v1574 = vadd.f32 %v1280, %v1472
      %v1575 = vadd.f32 %v1281, %v1475
      %v1576 = vadd.f32 %v1282, %v1480
      %v1577 = vadd.f32 %v1283, %v1483
      %v1578 = vadd.f32 %v1284, %v1488
      %v1579 = vadd.f32 %v1285, %v1491
      %v1580 = vadd.f32 %v1286, %v1496
      %v1581 = vadd.f32 %v1287, %v1499
      %v1582 = vadd.f32 %v1288, %v1504
      %v1583 = vadd.f32 %v1289, %v1507
      %v1584 = vadd.f32 %v1290, %v1512
      %v1585 = vadd.f32 %v1291, %v1515
      %v1586 = vadd.f32 %v1292, %v1520
      %v1587 = vadd.f32 %v1293, %v1523
      %v1588 = vadd.f32 %v1294, %v1528
      %v1589 = vadd.f32 %v1295, %v1531
      %v1590 = vadd.f32 %v1296, %v1536
      %v1591 = vadd.f32 %v1297, %v1539
      %v1592 = vadd.f32 %v1298, %v1544
      %v1593 = vadd.f32 %v1299, %v1547
      %v1594 = vadd.f32 %v1300, %v1552
      %v1595 = vadd.f32 %v1301, %v1555
      %v1596 = vadd.f32 %v1302, %v1560
      %v1597 = vadd.f32 %v1303, %v1563
      %v1598 = vld [vmem:[%s420 + $0x1] sm:$0xff]
      %v1599 = vld [vmem:[%s420 + $0x9] sm:$0xff]
      %v1600 = vld [vmem:[%s420 + $0x19] sm:$0xff]
      %v1601 = vld [vmem:[%s420 + $0x21] sm:$0xff]
      %v1602 = vld [vmem:[%s420 + $0x31] sm:$0xff]
      %v1603 = vld [vmem:[%s420 + $0x39] sm:$0xff]
      %v1604 = vld [vmem:[%s420 + $0x49] sm:$0xff]
      %v1605 = vld [vmem:[%s420 + $0x51] sm:$0xff]
      %v1606 = vld [vmem:[%s420 + $0x61] sm:$0xff]
      %v1607 = vld [vmem:[%s420 + $0x69] sm:$0xff]
      %v1608 = vld [vmem:[%s420 + $0x79] sm:$0xff]
      %v1609 = vld [vmem:[%s420 + $0x81] sm:$0xff]
      %v1610 = vld [vmem:[%s420 + $0x91] sm:$0xff]
      %v1611 = vld [vmem:[%s420 + $0x99] sm:$0xff]
      %v1612 = vld [vmem:[%s420 + $0xa9] sm:$0xff]
      %v1613 = vld [vmem:[%s420 + $0xb1] sm:$0xff]
      %v1614 = vld [vmem:[%s420 + $0xc1] sm:$0xff]
      %v1615 = vld [vmem:[%s420 + $0xc9] sm:$0xff]
      %v1616 = vld [vmem:[%s420 + $0xd9] sm:$0xff]
      %v1617 = vld [vmem:[%s420 + $0xe1] sm:$0xff]
      %v1618 = vld [vmem:[%s420 + $0xf1] sm:$0xff]
      %v1619 = vld [vmem:[%s420 + $0xf9] sm:$0xff]
      %v1620 = vld [vmem:[%s420 + $0x109] sm:$0xff]
      %v1621 = vld [vmem:[%s420 + $0x111] sm:$0xff]
      %v1622 = vld [vmem:[%s420 + $0x121] sm:$0xff]
      %v1623 = vld [vmem:[%s420 + $0x129] sm:$0xff]
      %v1624 = vld [vmem:[%s420 + $0x139] sm:$0xff]
      %v1625 = vld [vmem:[%s420 + $0x141] sm:$0xff]
      %v1626 = vld [vmem:[%s420 + $0x151] sm:$0xff]
      %v1627 = vld [vmem:[%s420 + $0x159] sm:$0xff]
      %v1628 = vld [vmem:[%s420 + $0x169] sm:$0xff]
      %v1629 = vld [vmem:[%s420 + $0x171] sm:$0xff]
      %v1630 = vpack.c.bf16 %v1599, %v1598
      %v1631 = vpack.c.bf16 %v1601, %v1600
      %v1632 = vpack.c.bf16 %v1603, %v1602
      %v1633 = vpack.c.bf16 %v1605, %v1604
      %v1634 = vpack.c.bf16 %v1607, %v1606
      %v1635 = vpack.c.bf16 %v1609, %v1608
      %v1636 = vpack.c.bf16 %v1611, %v1610
      %v1637 = vpack.c.bf16 %v1613, %v1612
      %v1638 = vpack.c.bf16 %v1615, %v1614
      %v1639 = vpack.c.bf16 %v1617, %v1616
      %v1640 = vpack.c.bf16 %v1619, %v1618
      %v1641 = vpack.c.bf16 %v1621, %v1620
      %v1642 = vpack.c.bf16 %v1623, %v1622
      %v1643 = vpack.c.bf16 %v1625, %v1624
      %v1644 = vpack.c.bf16 %v1627, %v1626
      %v1645 = vpack.c.bf16 %v1629, %v1628
      %s1646 = scalar_lea.vmem %s1, 8
      %v1647 = vld [vmem:[%s1646] sm:$0x3]
      %v1649 = vsel %vm411, %v1630, 0
      %v1652 = vsel %vm411, %v1631, 0
      %v1655 = vsel %vm411, %v1632, 0
      %v1658 = vsel %vm411, %v1633, 0
      %v1661 = vsel %vm411, %v1634, 0
      %v1664 = vsel %vm411, %v1635, 0
      %v1667 = vsel %vm411, %v1636, 0
      %v1670 = vsel %vm411, %v1637, 0
      %v1673 = vsel %vm411, %v1638, 0
      %v1676 = vsel %vm411, %v1639, 0
      %v1679 = vsel %vm411, %v1640, 0
      %v1682 = vsel %vm411, %v1641, 0
      %v1685 = vsel %vm411, %v1642, 0
      %v1688 = vsel %vm411, %v1643, 0
      %v1691 = vsel %vm411, %v1644, 0
      %v1694 = vsel %vm411, %v1645, 0
      %v1697 = vsel %vm633, %v1647, 0
      %1699 = vmatprep.subr.bf16.mxu0 0
      %1700 = vmatpush1.bf16.msra.mxu0 0
      %1701 = vmatprep.subr.bf16.mxu0 0
      %1702 = vmatpush1.bf16.msra.mxu0 0
      %1703 = vmatprep.subr.bf16.mxu0 0
      %1704 = vmatpush1.bf16.msra.mxu0 0
      %1705 = vmatprep.subr.bf16.mxu0 0
      %1706 = vmatpush1.bf16.msra.mxu0 0
      %1707 = vmatprep.subr.bf16.mxu0 0
      %1708 = vmatpush1.bf16.msra.mxu0 0
      %1709 = vmatprep.subr.bf16.mxu0 0
      %1710 = vmatpush1.bf16.msra.mxu0 0
      %1711 = vmatprep.subr.bf16.mxu0 0
      %1712 = vmatpush1.bf16.msra.mxu0 0
      %1713 = vmatprep.subr.bf16.mxu0 0
      %1714 = vmatpush1.bf16.msra.mxu0 %v1697
      %1715 = vmatprep.subr.bf16.mxu0 0
      %1716 = vmatpush2.bf16.msra.mxu0 0
      %1717 = vmatprep.subr.bf16.mxu0 0
      %1718 = vmatpush2.bf16.msra.mxu0 0
      %1719 = vmatprep.subr.bf16.mxu0 0
      %1720 = vmatpush2.bf16.msra.mxu0 0
      %1721 = vmatprep.subr.bf16.mxu0 0
      %1722 = vmatpush2.bf16.msra.mxu0 0
      %1723 = vmatprep.subr.bf16.mxu0 0
      %1724 = vmatpush2.bf16.msra.mxu0 0
      %1725 = vmatprep.subr.bf16.mxu0 0
      %1726 = vmatpush2.bf16.msra.mxu0 0
      %1727 = vmatprep.subr.bf16.mxu0 0
      %1728 = vmatpush2.bf16.msra.mxu0 0
      %1729 = vmatprep.subr.bf16.mxu0 0
      %1730 = vmatpush2.bf16.msra.mxu0 0
      %1731 = vmatprep.mubr.bf16.mxu0 0
      %1732 = vmatmul.mubr.bf16.gmra.mxu0 %v1649
      %v1733 = vpop.f32.mrf.mxu0
      %v1734 = vadd.f32 0.0, %v1733
      %v1735 = vpop.f32.mrf.mxu0
      %v1736 = vpop.f32.mrf.mxu0
      %v1737 = vadd.f32 0.0, %v1736
      %v1738 = vpop.f32.mrf.mxu0
      %1739 = vmatprep.mubr.bf16.mxu0 0
      %1740 = vmatmul.mubr.bf16.gmra.mxu0 %v1652
      %v1741 = vpop.f32.mrf.mxu0
      %v1742 = vadd.f32 0.0, %v1741
      %v1743 = vpop.f32.mrf.mxu0
      %v1744 = vpop.f32.mrf.mxu0
      %v1745 = vadd.f32 0.0, %v1744
      %v1746 = vpop.f32.mrf.mxu0
      %1747 = vmatprep.mubr.bf16.mxu0 0
      %1748 = vmatmul.mubr.bf16.gmra.mxu0 %v1655
      %v1749 = vpop.f32.mrf.mxu0
      %v1750 = vadd.f32 0.0, %v1749
      %v1751 = vpop.f32.mrf.mxu0
      %v1752 = vpop.f32.mrf.mxu0
      %v1753 = vadd.f32 0.0, %v1752
      %v1754 = vpop.f32.mrf.mxu0
      %1755 = vmatprep.mubr.bf16.mxu0 0
      %1756 = vmatmul.mubr.bf16.gmra.mxu0 %v1658
      %v1757 = vpop.f32.mrf.mxu0
      %v1758 = vadd.f32 0.0, %v1757
      %v1759 = vpop.f32.mrf.mxu0
      %v1760 = vpop.f32.mrf.mxu0
      %v1761 = vadd.f32 0.0, %v1760
      %v1762 = vpop.f32.mrf.mxu0
      %1763 = vmatprep.mubr.bf16.mxu0 0
      %1764 = vmatmul.mubr.bf16.gmra.mxu0 %v1661
      %v1765 = vpop.f32.mrf.mxu0
      %v1766 = vadd.f32 0.0, %v1765
      %v1767 = vpop.f32.mrf.mxu0
      %v1768 = vpop.f32.mrf.mxu0
      %v1769 = vadd.f32 0.0, %v1768
      %v1770 = vpop.f32.mrf.mxu0
      %1771 = vmatprep.mubr.bf16.mxu0 0
      %1772 = vmatmul.mubr.bf16.gmra.mxu0 %v1664
      %v1773 = vpop.f32.mrf.mxu0
      %v1774 = vadd.f32 0.0, %v1773
      %v1775 = vpop.f32.mrf.mxu0
      %v1776 = vpop.f32.mrf.mxu0
      %v1777 = vadd.f32 0.0, %v1776
      %v1778 = vpop.f32.mrf.mxu0
      %1779 = vmatprep.mubr.bf16.mxu0 0
      %1780 = vmatmul.mubr.bf16.gmra.mxu0 %v1667
      %v1781 = vpop.f32.mrf.mxu0
      %v1782 = vadd.f32 0.0, %v1781
      %v1783 = vpop.f32.mrf.mxu0
      %v1784 = vpop.f32.mrf.mxu0
      %v1785 = vadd.f32 0.0, %v1784
      %v1786 = vpop.f32.mrf.mxu0
      %1787 = vmatprep.mubr.bf16.mxu0 0
      %1788 = vmatmul.mubr.bf16.gmra.mxu0 %v1670
      %v1789 = vpop.f32.mrf.mxu0
      %v1790 = vadd.f32 0.0, %v1789
      %v1791 = vpop.f32.mrf.mxu0
      %v1792 = vpop.f32.mrf.mxu0
      %v1793 = vadd.f32 0.0, %v1792
      %v1794 = vpop.f32.mrf.mxu0
      %1795 = vmatprep.mubr.bf16.mxu0 0
      %1796 = vmatmul.mubr.bf16.gmra.mxu0 %v1673
      %v1797 = vpop.f32.mrf.mxu0
      %v1798 = vadd.f32 0.0, %v1797
      %v1799 = vpop.f32.mrf.mxu0
      %v1800 = vpop.f32.mrf.mxu0
      %v1801 = vadd.f32 0.0, %v1800
      %v1802 = vpop.f32.mrf.mxu0
      %1803 = vmatprep.mubr.bf16.mxu0 0
      %1804 = vmatmul.mubr.bf16.gmra.mxu0 %v1676
      %v1805 = vpop.f32.mrf.mxu0
      %v1806 = vadd.f32 0.0, %v1805
      %v1807 = vpop.f32.mrf.mxu0
      %v1808 = vpop.f32.mrf.mxu0
      %v1809 = vadd.f32 0.0, %v1808
      %v1810 = vpop.f32.mrf.mxu0
      %1811 = vmatprep.mubr.bf16.mxu0 0
      %1812 = vmatmul.mubr.bf16.gmra.mxu0 %v1679
      %v1813 = vpop.f32.mrf.mxu0
      %v1814 = vadd.f32 0.0, %v1813
      %v1815 = vpop.f32.mrf.mxu0
      %v1816 = vpop.f32.mrf.mxu0
      %v1817 = vadd.f32 0.0, %v1816
      %v1818 = vpop.f32.mrf.mxu0
      %1819 = vmatprep.mubr.bf16.mxu0 0
      %1820 = vmatmul.mubr.bf16.gmra.mxu0 %v1682
      %v1821 = vpop.f32.mrf.mxu0
      %v1822 = vadd.f32 0.0, %v1821
      %v1823 = vpop.f32.mrf.mxu0
      %v1824 = vpop.f32.mrf.mxu0
      %v1825 = vadd.f32 0.0, %v1824
      %v1826 = vpop.f32.mrf.mxu0
      %1827 = vmatprep.mubr.bf16.mxu0 0
      %1828 = vmatmul.mubr.bf16.gmra.mxu0 %v1685
      %v1829 = vpop.f32.mrf.mxu0
      %v1830 = vadd.f32 0.0, %v1829
      %v1831 = vpop.f32.mrf.mxu0
      %v1832 = vpop.f32.mrf.mxu0
      %v1833 = vadd.f32 0.0, %v1832
      %v1834 = vpop.f32.mrf.mxu0
      %1835 = vmatprep.mubr.bf16.mxu0 0
      %1836 = vmatmul.mubr.bf16.gmra.mxu0 %v1688
      %v1837 = vpop.f32.mrf.mxu0
      %v1838 = vadd.f32 0.0, %v1837
      %v1839 = vpop.f32.mrf.mxu0
      %v1840 = vpop.f32.mrf.mxu0
      %v1841 = vadd.f32 0.0, %v1840
      %v1842 = vpop.f32.mrf.mxu0
      %1843 = vmatprep.mubr.bf16.mxu0 0
      %1844 = vmatmul.mubr.bf16.gmra.mxu0 %v1691
      %v1845 = vpop.f32.mrf.mxu0
      %v1846 = vadd.f32 0.0, %v1845
      %v1847 = vpop.f32.mrf.mxu0
      %v1848 = vpop.f32.mrf.mxu0
      %v1849 = vadd.f32 0.0, %v1848
      %v1850 = vpop.f32.mrf.mxu0
      %1851 = vmatprep.mubr.bf16.mxu0 0
      %1852 = vmatmul.mubr.bf16.gmra.mxu0 %v1694
      %v1853 = vpop.f32.mrf.mxu0
      %v1854 = vadd.f32 0.0, %v1853
      %v1855 = vpop.f32.mrf.mxu0
      %v1856 = vpop.f32.mrf.mxu0
      %v1857 = vadd.f32 0.0, %v1856
      %v1858 = vpop.f32.mrf.mxu0
      %1859 = vdwg.mxu0
      %v1860 = vadd.f32 %v1566, %v1734
      %v1861 = vadd.f32 %v1567, %v1737
      %v1862 = vadd.f32 %v1568, %v1742
      %v1863 = vadd.f32 %v1569, %v1745
      %v1864 = vadd.f32 %v1570, %v1750
      %v1865 = vadd.f32 %v1571, %v1753
      %v1866 = vadd.f32 %v1572, %v1758
      %v1867 = vadd.f32 %v1573, %v1761
      %v1868 = vadd.f32 %v1574, %v1766
      %v1869 = vadd.f32 %v1575, %v1769
      %v1870 = vadd.f32 %v1576, %v1774
      %v1871 = vadd.f32 %v1577, %v1777
      %v1872 = vadd.f32 %v1578, %v1782
      %v1873 = vadd.f32 %v1579, %v1785
      %v1874 = vadd.f32 %v1580, %v1790
      %v1875 = vadd.f32 %v1581, %v1793
      %v1876 = vadd.f32 %v1582, %v1798
      %v1877 = vadd.f32 %v1583, %v1801
      %v1878 = vadd.f32 %v1584, %v1806
      %v1879 = vadd.f32 %v1585, %v1809
      %v1880 = vadd.f32 %v1586, %v1814
      %v1881 = vadd.f32 %v1587, %v1817
      %v1882 = vadd.f32 %v1588, %v1822
      %v1883 = vadd.f32 %v1589, %v1825
      %v1884 = vadd.f32 %v1590, %v1830
      %v1885 = vadd.f32 %v1591, %v1833
      %v1886 = vadd.f32 %v1592, %v1838
      %v1887 = vadd.f32 %v1593, %v1841
      %v1888 = vadd.f32 %v1594, %v1846
      %v1889 = vadd.f32 %v1595, %v1849
      %v1890 = vadd.f32 %v1596, %v1854
      %v1891 = vadd.f32 %v1597, %v1857
      %v1892 = vld [vmem:[%s420 + $0x2] sm:$0xff]
      %v1893 = vld [vmem:[%s420 + $0xa] sm:$0xff]
      %v1894 = vld [vmem:[%s420 + $0x1a] sm:$0xff]
      %v1895 = vld [vmem:[%s420 + $0x22] sm:$0xff]
      %v1896 = vld [vmem:[%s420 + $0x32] sm:$0xff]
      %v1897 = vld [vmem:[%s420 + $0x3a] sm:$0xff]
      %v1898 = vld [vmem:[%s420 + $0x4a] sm:$0xff]
      %v1899 = vld [vmem:[%s420 + $0x52] sm:$0xff]
      %v1900 = vld [vmem:[%s420 + $0x62] sm:$0xff]
      %v1901 = vld [vmem:[%s420 + $0x6a] sm:$0xff]
      %v1902 = vld [vmem:[%s420 + $0x7a] sm:$0xff]
      %v1903 = vld [vmem:[%s420 + $0x82] sm:$0xff]
      %v1904 = vld [vmem:[%s420 + $0x92] sm:$0xff]
      %v1905 = vld [vmem:[%s420 + $0x9a] sm:$0xff]
      %v1906 = vld [vmem:[%s420 + $0xaa] sm:$0xff]
      %v1907 = vld [vmem:[%s420 + $0xb2] sm:$0xff]
      %v1908 = vld [vmem:[%s420 + $0xc2] sm:$0xff]
      %v1909 = vld [vmem:[%s420 + $0xca] sm:$0xff]
      %v1910 = vld [vmem:[%s420 + $0xda] sm:$0xff]
      %v1911 = vld [vmem:[%s420 + $0xe2] sm:$0xff]
      %v1912 = vld [vmem:[%s420 + $0xf2] sm:$0xff]
      %v1913 = vld [vmem:[%s420 + $0xfa] sm:$0xff]
      %v1914 = vld [vmem:[%s420 + $0x10a] sm:$0xff]
      %v1915 = vld [vmem:[%s420 + $0x112] sm:$0xff]
      %v1916 = vld [vmem:[%s420 + $0x122] sm:$0xff]
      %v1917 = vld [vmem:[%s420 + $0x12a] sm:$0xff]
      %v1918 = vld [vmem:[%s420 + $0x13a] sm:$0xff]
      %v1919 = vld [vmem:[%s420 + $0x142] sm:$0xff]
      %v1920 = vld [vmem:[%s420 + $0x152] sm:$0xff]
      %v1921 = vld [vmem:[%s420 + $0x15a] sm:$0xff]
      %v1922 = vld [vmem:[%s420 + $0x16a] sm:$0xff]
      %v1923 = vld [vmem:[%s420 + $0x172] sm:$0xff]
      %v1924 = vpack.c.bf16 %v1893, %v1892
      %v1925 = vpack.c.bf16 %v1895, %v1894
      %v1926 = vpack.c.bf16 %v1897, %v1896
      %v1927 = vpack.c.bf16 %v1899, %v1898
      %v1928 = vpack.c.bf16 %v1901, %v1900
      %v1929 = vpack.c.bf16 %v1903, %v1902
      %v1930 = vpack.c.bf16 %v1905, %v1904
      %v1931 = vpack.c.bf16 %v1907, %v1906
      %v1932 = vpack.c.bf16 %v1909, %v1908
      %v1933 = vpack.c.bf16 %v1911, %v1910
      %v1934 = vpack.c.bf16 %v1913, %v1912
      %v1935 = vpack.c.bf16 %v1915, %v1914
      %v1936 = vpack.c.bf16 %v1917, %v1916
      %v1937 = vpack.c.bf16 %v1919, %v1918
      %v1938 = vpack.c.bf16 %v1921, %v1920
      %v1939 = vpack.c.bf16 %v1923, %v1922
      %s1940 = scalar_lea.vmem %s1, 10
      %v1941 = vld [vmem:[%s1940] sm:$0x3]
      %v1943 = vsel %vm411, %v1924, 0
      %v1946 = vsel %vm411, %v1925, 0
      %v1949 = vsel %vm411, %v1926, 0
      %v1952 = vsel %vm411, %v1927, 0
      %v1955 = vsel %vm411, %v1928, 0
      %v1958 = vsel %vm411, %v1929, 0
      %v1961 = vsel %vm411, %v1930, 0
      %v1964 = vsel %vm411, %v1931, 0
      %v1967 = vsel %vm411, %v1932, 0
      %v1970 = vsel %vm411, %v1933, 0
      %v1973 = vsel %vm411, %v1934, 0
      %v1976 = vsel %vm411, %v1935, 0
      %v1979 = vsel %vm411, %v1936, 0
      %v1982 = vsel %vm411, %v1937, 0
      %v1985 = vsel %vm411, %v1938, 0
      %v1988 = vsel %vm411, %v1939, 0
      %v1991 = vsel %vm633, %v1941, 0
      %1993 = vmatprep.subr.bf16.mxu0 0
      %1994 = vmatpush1.bf16.msra.mxu0 0
      %1995 = vmatprep.subr.bf16.mxu0 0
      %1996 = vmatpush1.bf16.msra.mxu0 0
      %1997 = vmatprep.subr.bf16.mxu0 0
      %1998 = vmatpush1.bf16.msra.mxu0 0
      %1999 = vmatprep.subr.bf16.mxu0 0
      %2000 = vmatpush1.bf16.msra.mxu0 0
      %2001 = vmatprep.subr.bf16.mxu0 0
      %2002 = vmatpush1.bf16.msra.mxu0 0
      %2003 = vmatprep.subr.bf16.mxu0 0
      %2004 = vmatpush1.bf16.msra.mxu0 0
      %2005 = vmatprep.subr.bf16.mxu0 0
      %2006 = vmatpush1.bf16.msra.mxu0 0
      %2007 = vmatprep.subr.bf16.mxu0 0
      %2008 = vmatpush1.bf16.msra.mxu0 %v1991
      %2009 = vmatprep.subr.bf16.mxu0 0
      %2010 = vmatpush2.bf16.msra.mxu0 0
      %2011 = vmatprep.subr.bf16.mxu0 0
      %2012 = vmatpush2.bf16.msra.mxu0 0
      %2013 = vmatprep.subr.bf16.mxu0 0
      %2014 = vmatpush2.bf16.msra.mxu0 0
      %2015 = vmatprep.subr.bf16.mxu0 0
      %2016 = vmatpush2.bf16.msra.mxu0 0
      %2017 = vmatprep.subr.bf16.mxu0 0
      %2018 = vmatpush2.bf16.msra.mxu0 0
      %2019 = vmatprep.subr.bf16.mxu0 0
      %2020 = vmatpush2.bf16.msra.mxu0 0
      %2021 = vmatprep.subr.bf16.mxu0 0
      %2022 = vmatpush2.bf16.msra.mxu0 0
      %2023 = vmatprep.subr.bf16.mxu0 0
      %2024 = vmatpush2.bf16.msra.mxu0 0
      %2025 = vmatprep.mubr.bf16.mxu0 0
      %2026 = vmatmul.mubr.bf16.gmra.mxu0 %v1943
      %v2027 = vpop.f32.mrf.mxu0
      %v2028 = vadd.f32 0.0, %v2027
      %v2029 = vpop.f32.mrf.mxu0
      %v2030 = vpop.f32.mrf.mxu0
      %v2031 = vadd.f32 0.0, %v2030
      %v2032 = vpop.f32.mrf.mxu0
      %2033 = vmatprep.mubr.bf16.mxu0 0
      %2034 = vmatmul.mubr.bf16.gmra.mxu0 %v1946
      %v2035 = vpop.f32.mrf.mxu0
      %v2036 = vadd.f32 0.0, %v2035
      %v2037 = vpop.f32.mrf.mxu0
      %v2038 = vpop.f32.mrf.mxu0
      %v2039 = vadd.f32 0.0, %v2038
      %v2040 = vpop.f32.mrf.mxu0
      %2041 = vmatprep.mubr.bf16.mxu0 0
      %2042 = vmatmul.mubr.bf16.gmra.mxu0 %v1949
      %v2043 = vpop.f32.mrf.mxu0
      %v2044 = vadd.f32 0.0, %v2043
      %v2045 = vpop.f32.mrf.mxu0
      %v2046 = vpop.f32.mrf.mxu0
      %v2047 = vadd.f32 0.0, %v2046
      %v2048 = vpop.f32.mrf.mxu0
      %2049 = vmatprep.mubr.bf16.mxu0 0
      %2050 = vmatmul.mubr.bf16.gmra.mxu0 %v1952
      %v2051 = vpop.f32.mrf.mxu0
      %v2052 = vadd.f32 0.0, %v2051
      %v2053 = vpop.f32.mrf.mxu0
      %v2054 = vpop.f32.mrf.mxu0
      %v2055 = vadd.f32 0.0, %v2054
      %v2056 = vpop.f32.mrf.mxu0
      %2057 = vmatprep.mubr.bf16.mxu0 0
      %2058 = vmatmul.mubr.bf16.gmra.mxu0 %v1955
      %v2059 = vpop.f32.mrf.mxu0
      %v2060 = vadd.f32 0.0, %v2059
      %v2061 = vpop.f32.mrf.mxu0
      %v2062 = vpop.f32.mrf.mxu0
      %v2063 = vadd.f32 0.0, %v2062
      %v2064 = vpop.f32.mrf.mxu0
      %2065 = vmatprep.mubr.bf16.mxu0 0
      %2066 = vmatmul.mubr.bf16.gmra.mxu0 %v1958
      %v2067 = vpop.f32.mrf.mxu0
      %v2068 = vadd.f32 0.0, %v2067
      %v2069 = vpop.f32.mrf.mxu0
      %v2070 = vpop.f32.mrf.mxu0
      %v2071 = vadd.f32 0.0, %v2070
      %v2072 = vpop.f32.mrf.mxu0
      %2073 = vmatprep.mubr.bf16.mxu0 0
      %2074 = vmatmul.mubr.bf16.gmra.mxu0 %v1961
      %v2075 = vpop.f32.mrf.mxu0
      %v2076 = vadd.f32 0.0, %v2075
      %v2077 = vpop.f32.mrf.mxu0
      %v2078 = vpop.f32.mrf.mxu0
      %v2079 = vadd.f32 0.0, %v2078
      %v2080 = vpop.f32.mrf.mxu0
      %2081 = vmatprep.mubr.bf16.mxu0 0
      %2082 = vmatmul.mubr.bf16.gmra.mxu0 %v1964
      %v2083 = vpop.f32.mrf.mxu0
      %v2084 = vadd.f32 0.0, %v2083
      %v2085 = vpop.f32.mrf.mxu0
      %v2086 = vpop.f32.mrf.mxu0
      %v2087 = vadd.f32 0.0, %v2086
      %v2088 = vpop.f32.mrf.mxu0
      %2089 = vmatprep.mubr.bf16.mxu0 0
      %2090 = vmatmul.mubr.bf16.gmra.mxu0 %v1967
      %v2091 = vpop.f32.mrf.mxu0
      %v2092 = vadd.f32 0.0, %v2091
      %v2093 = vpop.f32.mrf.mxu0
      %v2094 = vpop.f32.mrf.mxu0
      %v2095 = vadd.f32 0.0, %v2094
      %v2096 = vpop.f32.mrf.mxu0
      %2097 = vmatprep.mubr.bf16.mxu0 0
      %2098 = vmatmul.mubr.bf16.gmra.mxu0 %v1970
      %v2099 = vpop.f32.mrf.mxu0
      %v2100 = vadd.f32 0.0, %v2099
      %v2101 = vpop.f32.mrf.mxu0
      %v2102 = vpop.f32.mrf.mxu0
      %v2103 = vadd.f32 0.0, %v2102
      %v2104 = vpop.f32.mrf.mxu0
      %2105 = vmatprep.mubr.bf16.mxu0 0
      %2106 = vmatmul.mubr.bf16.gmra.mxu0 %v1973
      %v2107 = vpop.f32.mrf.mxu0
      %v2108 = vadd.f32 0.0, %v2107
      %v2109 = vpop.f32.mrf.mxu0
      %v2110 = vpop.f32.mrf.mxu0
      %v2111 = vadd.f32 0.0, %v2110
      %v2112 = vpop.f32.mrf.mxu0
      %2113 = vmatprep.mubr.bf16.mxu0 0
      %2114 = vmatmul.mubr.bf16.gmra.mxu0 %v1976
      %v2115 = vpop.f32.mrf.mxu0
      %v2116 = vadd.f32 0.0, %v2115
      %v2117 = vpop.f32.mrf.mxu0
      %v2118 = vpop.f32.mrf.mxu0
      %v2119 = vadd.f32 0.0, %v2118
      %v2120 = vpop.f32.mrf.mxu0
      %2121 = vmatprep.mubr.bf16.mxu0 0
      %2122 = vmatmul.mubr.bf16.gmra.mxu0 %v1979
      %v2123 = vpop.f32.mrf.mxu0
      %v2124 = vadd.f32 0.0, %v2123
      %v2125 = vpop.f32.mrf.mxu0
      %v2126 = vpop.f32.mrf.mxu0
      %v2127 = vadd.f32 0.0, %v2126
      %v2128 = vpop.f32.mrf.mxu0
      %2129 = vmatprep.mubr.bf16.mxu0 0
      %2130 = vmatmul.mubr.bf16.gmra.mxu0 %v1982
      %v2131 = vpop.f32.mrf.mxu0
      %v2132 = vadd.f32 0.0, %v2131
      %v2133 = vpop.f32.mrf.mxu0
      %v2134 = vpop.f32.mrf.mxu0
      %v2135 = vadd.f32 0.0, %v2134
      %v2136 = vpop.f32.mrf.mxu0
      %2137 = vmatprep.mubr.bf16.mxu0 0
      %2138 = vmatmul.mubr.bf16.gmra.mxu0 %v1985
      %v2139 = vpop.f32.mrf.mxu0
      %v2140 = vadd.f32 0.0, %v2139
      %v2141 = vpop.f32.mrf.mxu0
      %v2142 = vpop.f32.mrf.mxu0
      %v2143 = vadd.f32 0.0, %v2142
      %v2144 = vpop.f32.mrf.mxu0
      %2145 = vmatprep.mubr.bf16.mxu0 0
      %2146 = vmatmul.mubr.bf16.gmra.mxu0 %v1988
      %v2147 = vpop.f32.mrf.mxu0
      %v2148 = vadd.f32 0.0, %v2147
      %v2149 = vpop.f32.mrf.mxu0
      %v2150 = vpop.f32.mrf.mxu0
      %v2151 = vadd.f32 0.0, %v2150
      %v2152 = vpop.f32.mrf.mxu0
      %2153 = vdwg.mxu0
      %v2154 = vadd.f32 %v1860, %v2028
      %v2155 = vadd.f32 %v1861, %v2031
      %v2156 = vadd.f32 %v1862, %v2036
      %v2157 = vadd.f32 %v1863, %v2039
      %v2158 = vadd.f32 %v1864, %v2044
      %v2159 = vadd.f32 %v1865, %v2047
      %v2160 = vadd.f32 %v1866, %v2052
      %v2161 = vadd.f32 %v1867, %v2055
      %v2162 = vadd.f32 %v1868, %v2060
      %v2163 = vadd.f32 %v1869, %v2063
      %v2164 = vadd.f32 %v1870, %v2068
      %v2165 = vadd.f32 %v1871, %v2071
      %v2166 = vadd.f32 %v1872, %v2076
      %v2167 = vadd.f32 %v1873, %v2079
      %v2168 = vadd.f32 %v1874, %v2084
      %v2169 = vadd.f32 %v1875, %v2087
      %v2170 = vadd.f32 %v1876, %v2092
      %v2171 = vadd.f32 %v1877, %v2095
      %v2172 = vadd.f32 %v1878, %v2100
      %v2173 = vadd.f32 %v1879, %v2103
      %v2174 = vadd.f32 %v1880, %v2108
      %v2175 = vadd.f32 %v1881, %v2111
      %v2176 = vadd.f32 %v1882, %v2116
      %v2177 = vadd.f32 %v1883, %v2119
      %v2178 = vadd.f32 %v1884, %v2124
      %v2179 = vadd.f32 %v1885, %v2127
      %v2180 = vadd.f32 %v1886, %v2132
      %v2181 = vadd.f32 %v1887, %v2135
      %v2182 = vadd.f32 %v1888, %v2140
      %v2183 = vadd.f32 %v1889, %v2143
      %v2184 = vadd.f32 %v1890, %v2148
      %v2185 = vadd.f32 %v1891, %v2151
      %s2186 = scalar_lea.vmem [#allocation2], 48
      %v2187 = vld [vmem:[%s2186] sm:$0xff]
      %v2188 = vld [vmem:[%s2186 + $0x8] sm:$0xff]
      %v2189 = vld [vmem:[%s2186 + $0x18] sm:$0xff]
      %v2190 = vld [vmem:[%s2186 + $0x20] sm:$0xff]
      %v2191 = vld [vmem:[%s2186 + $0x30] sm:$0xff]
      %v2192 = vld [vmem:[%s2186 + $0x38] sm:$0xff]
      %v2193 = vld [vmem:[%s2186 + $0x48] sm:$0xff]
      %v2194 = vld [vmem:[%s2186 + $0x50] sm:$0xff]
      %v2195 = vld [vmem:[%s2186 + $0x60] sm:$0xff]
      %v2196 = vld [vmem:[%s2186 + $0x68] sm:$0xff]
      %v2197 = vld [vmem:[%s2186 + $0x78] sm:$0xff]
      %v2198 = vld [vmem:[%s2186 + $0x80] sm:$0xff]
      %v2199 = vld [vmem:[%s2186 + $0x90] sm:$0xff]
      %v2200 = vld [vmem:[%s2186 + $0x98] sm:$0xff]
      %v2201 = vld [vmem:[%s2186 + $0xa8] sm:$0xff]
      %v2202 = vld [vmem:[%s2186 + $0xb0] sm:$0xff]
      %v2203 = vld [vmem:[%s2186 + $0xc0] sm:$0xff]
      %v2204 = vld [vmem:[%s2186 + $0xc8] sm:$0xff]
      %v2205 = vld [vmem:[%s2186 + $0xd8] sm:$0xff]
      %v2206 = vld [vmem:[%s2186 + $0xe0] sm:$0xff]
      %v2207 = vld [vmem:[%s2186 + $0xf0] sm:$0xff]
      %v2208 = vld [vmem:[%s2186 + $0xf8] sm:$0xff]
      %v2209 = vld [vmem:[%s2186 + $0x108] sm:$0xff]
      %v2210 = vld [vmem:[%s2186 + $0x110] sm:$0xff]
      %v2211 = vld [vmem:[%s2186 + $0x120] sm:$0xff]
      %v2212 = vld [vmem:[%s2186 + $0x128] sm:$0xff]
      %v2213 = vld [vmem:[%s2186 + $0x138] sm:$0xff]
      %v2214 = vld [vmem:[%s2186 + $0x140] sm:$0xff]
      %v2215 = vld [vmem:[%s2186 + $0x150] sm:$0xff]
      %v2216 = vld [vmem:[%s2186 + $0x158] sm:$0xff]
      %v2217 = vld [vmem:[%s2186 + $0x168] sm:$0xff]
      %v2218 = vld [vmem:[%s2186 + $0x170] sm:$0xff]
      %v2219 = vpack.c.bf16 %v2188, %v2187
      %v2220 = vpack.c.bf16 %v2190, %v2189
      %v2221 = vpack.c.bf16 %v2192, %v2191
      %v2222 = vpack.c.bf16 %v2194, %v2193
      %v2223 = vpack.c.bf16 %v2196, %v2195
      %v2224 = vpack.c.bf16 %v2198, %v2197
      %v2225 = vpack.c.bf16 %v2200, %v2199
      %v2226 = vpack.c.bf16 %v2202, %v2201
      %v2227 = vpack.c.bf16 %v2204, %v2203
      %v2228 = vpack.c.bf16 %v2206, %v2205
      %v2229 = vpack.c.bf16 %v2208, %v2207
      %v2230 = vpack.c.bf16 %v2210, %v2209
      %v2231 = vpack.c.bf16 %v2212, %v2211
      %v2232 = vpack.c.bf16 %v2214, %v2213
      %v2233 = vpack.c.bf16 %v2216, %v2215
      %v2234 = vpack.c.bf16 %v2218, %v2217
      %s2235 = scalar_lea.vmem %s1, 12
      %v2236 = vld [vmem:[%s2235] sm:$0x3]
      %v2238 = vsel %vm411, %v2219, 0
      %v2241 = vsel %vm411, %v2220, 0
      %v2244 = vsel %vm411, %v2221, 0
      %v2247 = vsel %vm411, %v2222, 0
      %v2250 = vsel %vm411, %v2223, 0
      %v2253 = vsel %vm411, %v2224, 0
      %v2256 = vsel %vm411, %v2225, 0
      %v2259 = vsel %vm411, %v2226, 0
      %v2262 = vsel %vm411, %v2227, 0
      %v2265 = vsel %vm411, %v2228, 0
      %v2268 = vsel %vm411, %v2229, 0
      %v2271 = vsel %vm411, %v2230, 0
      %v2274 = vsel %vm411, %v2231, 0
      %v2277 = vsel %vm411, %v2232, 0
      %v2280 = vsel %vm411, %v2233, 0
      %v2283 = vsel %vm411, %v2234, 0
      %v2286 = vsel %vm633, %v2236, 0
      %2288 = vmatprep.subr.bf16.mxu0 0
      %2289 = vmatpush1.bf16.msra.mxu0 0
      %2290 = vmatprep.subr.bf16.mxu0 0
      %2291 = vmatpush1.bf16.msra.mxu0 0
      %2292 = vmatprep.subr.bf16.mxu0 0
      %2293 = vmatpush1.bf16.msra.mxu0 0
      %2294 = vmatprep.subr.bf16.mxu0 0
      %2295 = vmatpush1.bf16.msra.mxu0 0
      %2296 = vmatprep.subr.bf16.mxu0 0
      %2297 = vmatpush1.bf16.msra.mxu0 0
      %2298 = vmatprep.subr.bf16.mxu0 0
      %2299 = vmatpush1.bf16.msra.mxu0 0
      %2300 = vmatprep.subr.bf16.mxu0 0
      %2301 = vmatpush1.bf16.msra.mxu0 0
      %2302 = vmatprep.subr.bf16.mxu0 0
      %2303 = vmatpush1.bf16.msra.mxu0 %v2286
      %2304 = vmatprep.subr.bf16.mxu0 0
      %2305 = vmatpush2.bf16.msra.mxu0 0
      %2306 = vmatprep.subr.bf16.mxu0 0
      %2307 = vmatpush2.bf16.msra.mxu0 0
      %2308 = vmatprep.subr.bf16.mxu0 0
      %2309 = vmatpush2.bf16.msra.mxu0 0
      %2310 = vmatprep.subr.bf16.mxu0 0
      %2311 = vmatpush2.bf16.msra.mxu0 0
      %2312 = vmatprep.subr.bf16.mxu0 0
      %2313 = vmatpush2.bf16.msra.mxu0 0
      %2314 = vmatprep.subr.bf16.mxu0 0
      %2315 = vmatpush2.bf16.msra.mxu0 0
      %2316 = vmatprep.subr.bf16.mxu0 0
      %2317 = vmatpush2.bf16.msra.mxu0 0
      %2318 = vmatprep.subr.bf16.mxu0 0
      %2319 = vmatpush2.bf16.msra.mxu0 0
      %2320 = vmatprep.mubr.bf16.mxu0 0
      %2321 = vmatmul.mubr.bf16.gmra.mxu0 %v2238
      %v2322 = vpop.f32.mrf.mxu0
      %v2323 = vadd.f32 0.0, %v2322
      %v2324 = vpop.f32.mrf.mxu0
      %v2325 = vpop.f32.mrf.mxu0
      %v2326 = vadd.f32 0.0, %v2325
      %v2327 = vpop.f32.mrf.mxu0
      %2328 = vmatprep.mubr.bf16.mxu0 0
      %2329 = vmatmul.mubr.bf16.gmra.mxu0 %v2241
      %v2330 = vpop.f32.mrf.mxu0
      %v2331 = vadd.f32 0.0, %v2330
      %v2332 = vpop.f32.mrf.mxu0
      %v2333 = vpop.f32.mrf.mxu0
      %v2334 = vadd.f32 0.0, %v2333
      %v2335 = vpop.f32.mrf.mxu0
      %2336 = vmatprep.mubr.bf16.mxu0 0
      %2337 = vmatmul.mubr.bf16.gmra.mxu0 %v2244
      %v2338 = vpop.f32.mrf.mxu0
      %v2339 = vadd.f32 0.0, %v2338
      %v2340 = vpop.f32.mrf.mxu0
      %v2341 = vpop.f32.mrf.mxu0
      %v2342 = vadd.f32 0.0, %v2341
      %v2343 = vpop.f32.mrf.mxu0
      %2344 = vmatprep.mubr.bf16.mxu0 0
      %2345 = vmatmul.mubr.bf16.gmra.mxu0 %v2247
      %v2346 = vpop.f32.mrf.mxu0
      %v2347 = vadd.f32 0.0, %v2346
      %v2348 = vpop.f32.mrf.mxu0
      %v2349 = vpop.f32.mrf.mxu0
      %v2350 = vadd.f32 0.0, %v2349
      %v2351 = vpop.f32.mrf.mxu0
      %2352 = vmatprep.mubr.bf16.mxu0 0
      %2353 = vmatmul.mubr.bf16.gmra.mxu0 %v2250
      %v2354 = vpop.f32.mrf.mxu0
      %v2355 = vadd.f32 0.0, %v2354
      %v2356 = vpop.f32.mrf.mxu0
      %v2357 = vpop.f32.mrf.mxu0
      %v2358 = vadd.f32 0.0, %v2357
      %v2359 = vpop.f32.mrf.mxu0
      %2360 = vmatprep.mubr.bf16.mxu0 0
      %2361 = vmatmul.mubr.bf16.gmra.mxu0 %v2253
      %v2362 = vpop.f32.mrf.mxu0
      %v2363 = vadd.f32 0.0, %v2362
      %v2364 = vpop.f32.mrf.mxu0
      %v2365 = vpop.f32.mrf.mxu0
      %v2366 = vadd.f32 0.0, %v2365
      %v2367 = vpop.f32.mrf.mxu0
      %2368 = vmatprep.mubr.bf16.mxu0 0
      %2369 = vmatmul.mubr.bf16.gmra.mxu0 %v2256
      %v2370 = vpop.f32.mrf.mxu0
      %v2371 = vadd.f32 0.0, %v2370
      %v2372 = vpop.f32.mrf.mxu0
      %v2373 = vpop.f32.mrf.mxu0
      %v2374 = vadd.f32 0.0, %v2373
      %v2375 = vpop.f32.mrf.mxu0
      %2376 = vmatprep.mubr.bf16.mxu0 0
      %2377 = vmatmul.mubr.bf16.gmra.mxu0 %v2259
      %v2378 = vpop.f32.mrf.mxu0
      %v2379 = vadd.f32 0.0, %v2378
      %v2380 = vpop.f32.mrf.mxu0
      %v2381 = vpop.f32.mrf.mxu0
      %v2382 = vadd.f32 0.0, %v2381
      %v2383 = vpop.f32.mrf.mxu0
      %2384 = vmatprep.mubr.bf16.mxu0 0
      %2385 = vmatmul.mubr.bf16.gmra.mxu0 %v2262
      %v2386 = vpop.f32.mrf.mxu0
      %v2387 = vadd.f32 0.0, %v2386
      %v2388 = vpop.f32.mrf.mxu0
      %v2389 = vpop.f32.mrf.mxu0
      %v2390 = vadd.f32 0.0, %v2389
      %v2391 = vpop.f32.mrf.mxu0
      %2392 = vmatprep.mubr.bf16.mxu0 0
      %2393 = vmatmul.mubr.bf16.gmra.mxu0 %v2265
      %v2394 = vpop.f32.mrf.mxu0
      %v2395 = vadd.f32 0.0, %v2394
      %v2396 = vpop.f32.mrf.mxu0
      %v2397 = vpop.f32.mrf.mxu0
      %v2398 = vadd.f32 0.0, %v2397
      %v2399 = vpop.f32.mrf.mxu0
      %2400 = vmatprep.mubr.bf16.mxu0 0
      %2401 = vmatmul.mubr.bf16.gmra.mxu0 %v2268
      %v2402 = vpop.f32.mrf.mxu0
      %v2403 = vadd.f32 0.0, %v2402
      %v2404 = vpop.f32.mrf.mxu0
      %v2405 = vpop.f32.mrf.mxu0
      %v2406 = vadd.f32 0.0, %v2405
      %v2407 = vpop.f32.mrf.mxu0
      %2408 = vmatprep.mubr.bf16.mxu0 0
      %2409 = vmatmul.mubr.bf16.gmra.mxu0 %v2271
      %v2410 = vpop.f32.mrf.mxu0
      %v2411 = vadd.f32 0.0, %v2410
      %v2412 = vpop.f32.mrf.mxu0
      %v2413 = vpop.f32.mrf.mxu0
      %v2414 = vadd.f32 0.0, %v2413
      %v2415 = vpop.f32.mrf.mxu0
      %2416 = vmatprep.mubr.bf16.mxu0 0
      %2417 = vmatmul.mubr.bf16.gmra.mxu0 %v2274
      %v2418 = vpop.f32.mrf.mxu0
      %v2419 = vadd.f32 0.0, %v2418
      %v2420 = vpop.f32.mrf.mxu0
      %v2421 = vpop.f32.mrf.mxu0
      %v2422 = vadd.f32 0.0, %v2421
      %v2423 = vpop.f32.mrf.mxu0
      %2424 = vmatprep.mubr.bf16.mxu0 0
      %2425 = vmatmul.mubr.bf16.gmra.mxu0 %v2277
      %v2426 = vpop.f32.mrf.mxu0
      %v2427 = vadd.f32 0.0, %v2426
      %v2428 = vpop.f32.mrf.mxu0
      %v2429 = vpop.f32.mrf.mxu0
      %v2430 = vadd.f32 0.0, %v2429
      %v2431 = vpop.f32.mrf.mxu0
      %2432 = vmatprep.mubr.bf16.mxu0 0
      %2433 = vmatmul.mubr.bf16.gmra.mxu0 %v2280
      %v2434 = vpop.f32.mrf.mxu0
      %v2435 = vadd.f32 0.0, %v2434
      %v2436 = vpop.f32.mrf.mxu0
      %v2437 = vpop.f32.mrf.mxu0
      %v2438 = vadd.f32 0.0, %v2437
      %v2439 = vpop.f32.mrf.mxu0
      %2440 = vmatprep.mubr.bf16.mxu0 0
      %2441 = vmatmul.mubr.bf16.gmra.mxu0 %v2283
      %v2442 = vpop.f32.mrf.mxu0
      %v2443 = vadd.f32 0.0, %v2442
      %v2444 = vpop.f32.mrf.mxu0
      %v2445 = vpop.f32.mrf.mxu0
      %v2446 = vadd.f32 0.0, %v2445
      %v2447 = vpop.f32.mrf.mxu0
      %2448 = vdwg.mxu0
      %v2449 = vadd.f32 %v2154, %v2323
      %v2450 = vadd.f32 %v2155, %v2326
      %v2451 = vadd.f32 %v2156, %v2331
      %v2452 = vadd.f32 %v2157, %v2334
      %v2453 = vadd.f32 %v2158, %v2339
      %v2454 = vadd.f32 %v2159, %v2342
      %v2455 = vadd.f32 %v2160, %v2347
      %v2456 = vadd.f32 %v2161, %v2350
      %v2457 = vadd.f32 %v2162, %v2355
      %v2458 = vadd.f32 %v2163, %v2358
      %v2459 = vadd.f32 %v2164, %v2363
      %v2460 = vadd.f32 %v2165, %v2366
      %v2461 = vadd.f32 %v2166, %v2371
      %v2462 = vadd.f32 %v2167, %v2374
      %v2463 = vadd.f32 %v2168, %v2379
      %v2464 = vadd.f32 %v2169, %v2382
      %v2465 = vadd.f32 %v2170, %v2387
      %v2466 = vadd.f32 %v2171, %v2390
      %v2467 = vadd.f32 %v2172, %v2395
      %v2468 = vadd.f32 %v2173, %v2398
      %v2469 = vadd.f32 %v2174, %v2403
      %v2470 = vadd.f32 %v2175, %v2406
      %v2471 = vadd.f32 %v2176, %v2411
      %v2472 = vadd.f32 %v2177, %v2414
      %v2473 = vadd.f32 %v2178, %v2419
      %v2474 = vadd.f32 %v2179, %v2422
      %v2475 = vadd.f32 %v2180, %v2427
      %v2476 = vadd.f32 %v2181, %v2430
      %v2477 = vadd.f32 %v2182, %v2435
      %v2478 = vadd.f32 %v2183, %v2438
      %v2479 = vadd.f32 %v2184, %v2443
      %v2480 = vadd.f32 %v2185, %v2446
      %v2481 = vld [vmem:[%s2186 + $0x1] sm:$0xff]
      %v2482 = vld [vmem:[%s2186 + $0x9] sm:$0xff]
      %v2483 = vld [vmem:[%s2186 + $0x19] sm:$0xff]
      %v2484 = vld [vmem:[%s2186 + $0x21] sm:$0xff]
      %v2485 = vld [vmem:[%s2186 + $0x31] sm:$0xff]
      %v2486 = vld [vmem:[%s2186 + $0x39] sm:$0xff]
      %v2487 = vld [vmem:[%s2186 + $0x49] sm:$0xff]
      %v2488 = vld [vmem:[%s2186 + $0x51] sm:$0xff]
      %v2489 = vld [vmem:[%s2186 + $0x61] sm:$0xff]
      %v2490 = vld [vmem:[%s2186 + $0x69] sm:$0xff]
      %v2491 = vld [vmem:[%s2186 + $0x79] sm:$0xff]
      %v2492 = vld [vmem:[%s2186 + $0x81] sm:$0xff]
      %v2493 = vld [vmem:[%s2186 + $0x91] sm:$0xff]
      %v2494 = vld [vmem:[%s2186 + $0x99] sm:$0xff]
      %v2495 = vld [vmem:[%s2186 + $0xa9] sm:$0xff]
      %v2496 = vld [vmem:[%s2186 + $0xb1] sm:$0xff]
      %v2497 = vld [vmem:[%s2186 + $0xc1] sm:$0xff]
      %v2498 = vld [vmem:[%s2186 + $0xc9] sm:$0xff]
      %v2499 = vld [vmem:[%s2186 + $0xd9] sm:$0xff]
      %v2500 = vld [vmem:[%s2186 + $0xe1] sm:$0xff]
      %v2501 = vld [vmem:[%s2186 + $0xf1] sm:$0xff]
      %v2502 = vld [vmem:[%s2186 + $0xf9] sm:$0xff]
      %v2503 = vld [vmem:[%s2186 + $0x109] sm:$0xff]
      %v2504 = vld [vmem:[%s2186 + $0x111] sm:$0xff]
      %v2505 = vld [vmem:[%s2186 + $0x121] sm:$0xff]
      %v2506 = vld [vmem:[%s2186 + $0x129] sm:$0xff]
      %v2507 = vld [vmem:[%s2186 + $0x139] sm:$0xff]
      %v2508 = vld [vmem:[%s2186 + $0x141] sm:$0xff]
      %v2509 = vld [vmem:[%s2186 + $0x151] sm:$0xff]
      %v2510 = vld [vmem:[%s2186 + $0x159] sm:$0xff]
      %v2511 = vld [vmem:[%s2186 + $0x169] sm:$0xff]
      %v2512 = vld [vmem:[%s2186 + $0x171] sm:$0xff]
      %v2513 = vpack.c.bf16 %v2482, %v2481
      %v2514 = vpack.c.bf16 %v2484, %v2483
      %v2515 = vpack.c.bf16 %v2486, %v2485
      %v2516 = vpack.c.bf16 %v2488, %v2487
      %v2517 = vpack.c.bf16 %v2490, %v2489
      %v2518 = vpack.c.bf16 %v2492, %v2491
      %v2519 = vpack.c.bf16 %v2494, %v2493
      %v2520 = vpack.c.bf16 %v2496, %v2495
      %v2521 = vpack.c.bf16 %v2498, %v2497
      %v2522 = vpack.c.bf16 %v2500, %v2499
      %v2523 = vpack.c.bf16 %v2502, %v2501
      %v2524 = vpack.c.bf16 %v2504, %v2503
      %v2525 = vpack.c.bf16 %v2506, %v2505
      %v2526 = vpack.c.bf16 %v2508, %v2507
      %v2527 = vpack.c.bf16 %v2510, %v2509
      %v2528 = vpack.c.bf16 %v2512, %v2511
      %s2529 = scalar_lea.vmem %s1, 14
      %v2530 = vld [vmem:[%s2529] sm:$0x3]
      %v2532 = vsel %vm411, %v2513, 0
      %v2535 = vsel %vm411, %v2514, 0
      %v2538 = vsel %vm411, %v2515, 0
      %v2541 = vsel %vm411, %v2516, 0
      %v2544 = vsel %vm411, %v2517, 0
      %v2547 = vsel %vm411, %v2518, 0
      %v2550 = vsel %vm411, %v2519, 0
      %v2553 = vsel %vm411, %v2520, 0
      %v2556 = vsel %vm411, %v2521, 0
      %v2559 = vsel %vm411, %v2522, 0
      %v2562 = vsel %vm411, %v2523, 0
      %v2565 = vsel %vm411, %v2524, 0
      %v2568 = vsel %vm411, %v2525, 0
      %v2571 = vsel %vm411, %v2526, 0
      %v2574 = vsel %vm411, %v2527, 0
      %v2577 = vsel %vm411, %v2528, 0
      %v2580 = vsel %vm633, %v2530, 0
      %2582 = vmatprep.subr.bf16.mxu0 0
      %2583 = vmatpush1.bf16.msra.mxu0 0
      %2584 = vmatprep.subr.bf16.mxu0 0
      %2585 = vmatpush1.bf16.msra.mxu0 0
      %2586 = vmatprep.subr.bf16.mxu0 0
      %2587 = vmatpush1.bf16.msra.mxu0 0
      %2588 = vmatprep.subr.bf16.mxu0 0
      %2589 = vmatpush1.bf16.msra.mxu0 0
      %2590 = vmatprep.subr.bf16.mxu0 0
      %2591 = vmatpush1.bf16.msra.mxu0 0
      %2592 = vmatprep.subr.bf16.mxu0 0
      %2593 = vmatpush1.bf16.msra.mxu0 0
      %2594 = vmatprep.subr.bf16.mxu0 0
      %2595 = vmatpush1.bf16.msra.mxu0 0
      %2596 = vmatprep.subr.bf16.mxu0 0
      %2597 = vmatpush1.bf16.msra.mxu0 %v2580
      %2598 = vmatprep.subr.bf16.mxu0 0
      %2599 = vmatpush2.bf16.msra.mxu0 0
      %2600 = vmatprep.subr.bf16.mxu0 0
      %2601 = vmatpush2.bf16.msra.mxu0 0
      %2602 = vmatprep.subr.bf16.mxu0 0
      %2603 = vmatpush2.bf16.msra.mxu0 0
      %2604 = vmatprep.subr.bf16.mxu0 0
      %2605 = vmatpush2.bf16.msra.mxu0 0
      %2606 = vmatprep.subr.bf16.mxu0 0
      %2607 = vmatpush2.bf16.msra.mxu0 0
      %2608 = vmatprep.subr.bf16.mxu0 0
      %2609 = vmatpush2.bf16.msra.mxu0 0
      %2610 = vmatprep.subr.bf16.mxu0 0
      %2611 = vmatpush2.bf16.msra.mxu0 0
      %2612 = vmatprep.subr.bf16.mxu0 0
      %2613 = vmatpush2.bf16.msra.mxu0 0
      %2614 = vmatprep.mubr.bf16.mxu0 0
      %2615 = vmatmul.mubr.bf16.gmra.mxu0 %v2532
      %v2616 = vpop.f32.mrf.mxu0
      %v2617 = vadd.f32 0.0, %v2616
      %v2618 = vpop.f32.mrf.mxu0
      %v2619 = vpop.f32.mrf.mxu0
      %v2620 = vadd.f32 0.0, %v2619
      %v2621 = vpop.f32.mrf.mxu0
      %2622 = vmatprep.mubr.bf16.mxu0 0
      %2623 = vmatmul.mubr.bf16.gmra.mxu0 %v2535
      %v2624 = vpop.f32.mrf.mxu0
      %v2625 = vadd.f32 0.0, %v2624
      %v2626 = vpop.f32.mrf.mxu0
      %v2627 = vpop.f32.mrf.mxu0
      %v2628 = vadd.f32 0.0, %v2627
      %v2629 = vpop.f32.mrf.mxu0
      %2630 = vmatprep.mubr.bf16.mxu0 0
      %2631 = vmatmul.mubr.bf16.gmra.mxu0 %v2538
      %v2632 = vpop.f32.mrf.mxu0
      %v2633 = vadd.f32 0.0, %v2632
      %v2634 = vpop.f32.mrf.mxu0
      %v2635 = vpop.f32.mrf.mxu0
      %v2636 = vadd.f32 0.0, %v2635
      %v2637 = vpop.f32.mrf.mxu0
      %2638 = vmatprep.mubr.bf16.mxu0 0
      %2639 = vmatmul.mubr.bf16.gmra.mxu0 %v2541
      %v2640 = vpop.f32.mrf.mxu0
      %v2641 = vadd.f32 0.0, %v2640
      %v2642 = vpop.f32.mrf.mxu0
      %v2643 = vpop.f32.mrf.mxu0
      %v2644 = vadd.f32 0.0, %v2643
      %v2645 = vpop.f32.mrf.mxu0
      %2646 = vmatprep.mubr.bf16.mxu0 0
      %2647 = vmatmul.mubr.bf16.gmra.mxu0 %v2544
      %v2648 = vpop.f32.mrf.mxu0
      %v2649 = vadd.f32 0.0, %v2648
      %v2650 = vpop.f32.mrf.mxu0
      %v2651 = vpop.f32.mrf.mxu0
      %v2652 = vadd.f32 0.0, %v2651
      %v2653 = vpop.f32.mrf.mxu0
      %2654 = vmatprep.mubr.bf16.mxu0 0
      %2655 = vmatmul.mubr.bf16.gmra.mxu0 %v2547
      %v2656 = vpop.f32.mrf.mxu0
      %v2657 = vadd.f32 0.0, %v2656
      %v2658 = vpop.f32.mrf.mxu0
      %v2659 = vpop.f32.mrf.mxu0
      %v2660 = vadd.f32 0.0, %v2659
      %v2661 = vpop.f32.mrf.mxu0
      %2662 = vmatprep.mubr.bf16.mxu0 0
      %2663 = vmatmul.mubr.bf16.gmra.mxu0 %v2550
      %v2664 = vpop.f32.mrf.mxu0
      %v2665 = vadd.f32 0.0, %v2664
      %v2666 = vpop.f32.mrf.mxu0
      %v2667 = vpop.f32.mrf.mxu0
      %v2668 = vadd.f32 0.0, %v2667
      %v2669 = vpop.f32.mrf.mxu0
      %2670 = vmatprep.mubr.bf16.mxu0 0
      %2671 = vmatmul.mubr.bf16.gmra.mxu0 %v2553
      %v2672 = vpop.f32.mrf.mxu0
      %v2673 = vadd.f32 0.0, %v2672
      %v2674 = vpop.f32.mrf.mxu0
      %v2675 = vpop.f32.mrf.mxu0
      %v2676 = vadd.f32 0.0, %v2675
      %v2677 = vpop.f32.mrf.mxu0
      %2678 = vmatprep.mubr.bf16.mxu0 0
      %2679 = vmatmul.mubr.bf16.gmra.mxu0 %v2556
      %v2680 = vpop.f32.mrf.mxu0
      %v2681 = vadd.f32 0.0, %v2680
      %v2682 = vpop.f32.mrf.mxu0
      %v2683 = vpop.f32.mrf.mxu0
      %v2684 = vadd.f32 0.0, %v2683
      %v2685 = vpop.f32.mrf.mxu0
      %2686 = vmatprep.mubr.bf16.mxu0 0
      %2687 = vmatmul.mubr.bf16.gmra.mxu0 %v2559
      %v2688 = vpop.f32.mrf.mxu0
      %v2689 = vadd.f32 0.0, %v2688
      %v2690 = vpop.f32.mrf.mxu0
      %v2691 = vpop.f32.mrf.mxu0
      %v2692 = vadd.f32 0.0, %v2691
      %v2693 = vpop.f32.mrf.mxu0
      %2694 = vmatprep.mubr.bf16.mxu0 0
      %2695 = vmatmul.mubr.bf16.gmra.mxu0 %v2562
      %v2696 = vpop.f32.mrf.mxu0
      %v2697 = vadd.f32 0.0, %v2696
      %v2698 = vpop.f32.mrf.mxu0
      %v2699 = vpop.f32.mrf.mxu0
      %v2700 = vadd.f32 0.0, %v2699
      %v2701 = vpop.f32.mrf.mxu0
      %2702 = vmatprep.mubr.bf16.mxu0 0
      %2703 = vmatmul.mubr.bf16.gmra.mxu0 %v2565
      %v2704 = vpop.f32.mrf.mxu0
      %v2705 = vadd.f32 0.0, %v2704
      %v2706 = vpop.f32.mrf.mxu0
      %v2707 = vpop.f32.mrf.mxu0
      %v2708 = vadd.f32 0.0, %v2707
      %v2709 = vpop.f32.mrf.mxu0
      %2710 = vmatprep.mubr.bf16.mxu0 0
      %2711 = vmatmul.mubr.bf16.gmra.mxu0 %v2568
      %v2712 = vpop.f32.mrf.mxu0
      %v2713 = vadd.f32 0.0, %v2712
      %v2714 = vpop.f32.mrf.mxu0
      %v2715 = vpop.f32.mrf.mxu0
      %v2716 = vadd.f32 0.0, %v2715
      %v2717 = vpop.f32.mrf.mxu0
      %2718 = vmatprep.mubr.bf16.mxu0 0
      %2719 = vmatmul.mubr.bf16.gmra.mxu0 %v2571
      %v2720 = vpop.f32.mrf.mxu0
      %v2721 = vadd.f32 0.0, %v2720
      %v2722 = vpop.f32.mrf.mxu0
      %v2723 = vpop.f32.mrf.mxu0
      %v2724 = vadd.f32 0.0, %v2723
      %v2725 = vpop.f32.mrf.mxu0
      %2726 = vmatprep.mubr.bf16.mxu0 0
      %2727 = vmatmul.mubr.bf16.gmra.mxu0 %v2574
      %v2728 = vpop.f32.mrf.mxu0
      %v2729 = vadd.f32 0.0, %v2728
      %v2730 = vpop.f32.mrf.mxu0
      %v2731 = vpop.f32.mrf.mxu0
      %v2732 = vadd.f32 0.0, %v2731
      %v2733 = vpop.f32.mrf.mxu0
      %2734 = vmatprep.mubr.bf16.mxu0 0
      %2735 = vmatmul.mubr.bf16.gmra.mxu0 %v2577
      %v2736 = vpop.f32.mrf.mxu0
      %v2737 = vadd.f32 0.0, %v2736
      %v2738 = vpop.f32.mrf.mxu0
      %v2739 = vpop.f32.mrf.mxu0
      %v2740 = vadd.f32 0.0, %v2739
      %v2741 = vpop.f32.mrf.mxu0
      %2742 = vdwg.mxu0
      %v2743 = vadd.f32 %v2449, %v2617
      %v2744 = vadd.f32 %v2450, %v2620
      %v2745 = vadd.f32 %v2451, %v2625
      %v2746 = vadd.f32 %v2452, %v2628
      %v2747 = vadd.f32 %v2453, %v2633
      %v2748 = vadd.f32 %v2454, %v2636
      %v2749 = vadd.f32 %v2455, %v2641
      %v2750 = vadd.f32 %v2456, %v2644
      %v2751 = vadd.f32 %v2457, %v2649
      %v2752 = vadd.f32 %v2458, %v2652
      %v2753 = vadd.f32 %v2459, %v2657
      %v2754 = vadd.f32 %v2460, %v2660
      %v2755 = vadd.f32 %v2461, %v2665
      %v2756 = vadd.f32 %v2462, %v2668
      %v2757 = vadd.f32 %v2463, %v2673
      %v2758 = vadd.f32 %v2464, %v2676
      %v2759 = vadd.f32 %v2465, %v2681
      %v2760 = vadd.f32 %v2466, %v2684
      %v2761 = vadd.f32 %v2467, %v2689
      %v2762 = vadd.f32 %v2468, %v2692
      %v2763 = vadd.f32 %v2469, %v2697
      %v2764 = vadd.f32 %v2470, %v2700
      %v2765 = vadd.f32 %v2471, %v2705
      %v2766 = vadd.f32 %v2472, %v2708
      %v2767 = vadd.f32 %v2473, %v2713
      %v2768 = vadd.f32 %v2474, %v2716
      %v2769 = vadd.f32 %v2475, %v2721
      %v2770 = vadd.f32 %v2476, %v2724
      %v2771 = vadd.f32 %v2477, %v2729
      %v2772 = vadd.f32 %v2478, %v2732
      %v2773 = vadd.f32 %v2479, %v2737
      %v2774 = vadd.f32 %v2480, %v2740
      %v2775 = vld [vmem:[%s2186 + $0x2] sm:$0xff]
      %v2776 = vld [vmem:[%s2186 + $0xa] sm:$0xff]
      %v2777 = vld [vmem:[%s2186 + $0x1a] sm:$0xff]
      %v2778 = vld [vmem:[%s2186 + $0x22] sm:$0xff]
      %v2779 = vld [vmem:[%s2186 + $0x32] sm:$0xff]
      %v2780 = vld [vmem:[%s2186 + $0x3a] sm:$0xff]
      %v2781 = vld [vmem:[%s2186 + $0x4a] sm:$0xff]
      %v2782 = vld [vmem:[%s2186 + $0x52] sm:$0xff]
      %v2783 = vld [vmem:[%s2186 + $0x62] sm:$0xff]
      %v2784 = vld [vmem:[%s2186 + $0x6a] sm:$0xff]
      %v2785 = vld [vmem:[%s2186 + $0x7a] sm:$0xff]
      %v2786 = vld [vmem:[%s2186 + $0x82] sm:$0xff]
      %v2787 = vld [vmem:[%s2186 + $0x92] sm:$0xff]
      %v2788 = vld [vmem:[%s2186 + $0x9a] sm:$0xff]
      %v2789 = vld [vmem:[%s2186 + $0xaa] sm:$0xff]
      %v2790 = vld [vmem:[%s2186 + $0xb2] sm:$0xff]
      %v2791 = vld [vmem:[%s2186 + $0xc2] sm:$0xff]
      %v2792 = vld [vmem:[%s2186 + $0xca] sm:$0xff]
      %v2793 = vld [vmem:[%s2186 + $0xda] sm:$0xff]
      %v2794 = vld [vmem:[%s2186 + $0xe2] sm:$0xff]
      %v2795 = vld [vmem:[%s2186 + $0xf2] sm:$0xff]
      %v2796 = vld [vmem:[%s2186 + $0xfa] sm:$0xff]
      %v2797 = vld [vmem:[%s2186 + $0x10a] sm:$0xff]
      %v2798 = vld [vmem:[%s2186 + $0x112] sm:$0xff]
      %v2799 = vld [vmem:[%s2186 + $0x122] sm:$0xff]
      %v2800 = vld [vmem:[%s2186 + $0x12a] sm:$0xff]
      %v2801 = vld [vmem:[%s2186 + $0x13a] sm:$0xff]
      %v2802 = vld [vmem:[%s2186 + $0x142] sm:$0xff]
      %v2803 = vld [vmem:[%s2186 + $0x152] sm:$0xff]
      %v2804 = vld [vmem:[%s2186 + $0x15a] sm:$0xff]
      %v2805 = vld [vmem:[%s2186 + $0x16a] sm:$0xff]
      %v2806 = vld [vmem:[%s2186 + $0x172] sm:$0xff]
      %v2807 = vpack.c.bf16 %v2776, %v2775
      %v2808 = vpack.c.bf16 %v2778, %v2777
      %v2809 = vpack.c.bf16 %v2780, %v2779
      %v2810 = vpack.c.bf16 %v2782, %v2781
      %v2811 = vpack.c.bf16 %v2784, %v2783
      %v2812 = vpack.c.bf16 %v2786, %v2785
      %v2813 = vpack.c.bf16 %v2788, %v2787
      %v2814 = vpack.c.bf16 %v2790, %v2789
      %v2815 = vpack.c.bf16 %v2792, %v2791
      %v2816 = vpack.c.bf16 %v2794, %v2793
      %v2817 = vpack.c.bf16 %v2796, %v2795
      %v2818 = vpack.c.bf16 %v2798, %v2797
      %v2819 = vpack.c.bf16 %v2800, %v2799
      %v2820 = vpack.c.bf16 %v2802, %v2801
      %v2821 = vpack.c.bf16 %v2804, %v2803
      %v2822 = vpack.c.bf16 %v2806, %v2805
      %s2823 = scalar_lea.vmem %s1, 16
      %v2824 = vld [vmem:[%s2823] sm:$0x3]
      %v2826 = vsel %vm411, %v2807, 0
      %v2829 = vsel %vm411, %v2808, 0
      %v2832 = vsel %vm411, %v2809, 0
      %v2835 = vsel %vm411, %v2810, 0
      %v2838 = vsel %vm411, %v2811, 0
      %v2841 = vsel %vm411, %v2812, 0
      %v2844 = vsel %vm411, %v2813, 0
      %v2847 = vsel %vm411, %v2814, 0
      %v2850 = vsel %vm411, %v2815, 0
      %v2853 = vsel %vm411, %v2816, 0
      %v2856 = vsel %vm411, %v2817, 0
      %v2859 = vsel %vm411, %v2818, 0
      %v2862 = vsel %vm411, %v2819, 0
      %v2865 = vsel %vm411, %v2820, 0
      %v2868 = vsel %vm411, %v2821, 0
      %v2871 = vsel %vm411, %v2822, 0
      %v2874 = vsel %vm633, %v2824, 0
      %2876 = vmatprep.subr.bf16.mxu0 0
      %2877 = vmatpush1.bf16.msra.mxu0 0
      %2878 = vmatprep.subr.bf16.mxu0 0
      %2879 = vmatpush1.bf16.msra.mxu0 0
      %2880 = vmatprep.subr.bf16.mxu0 0
      %2881 = vmatpush1.bf16.msra.mxu0 0
      %2882 = vmatprep.subr.bf16.mxu0 0
      %2883 = vmatpush1.bf16.msra.mxu0 0
      %2884 = vmatprep.subr.bf16.mxu0 0
      %2885 = vmatpush1.bf16.msra.mxu0 0
      %2886 = vmatprep.subr.bf16.mxu0 0
      %2887 = vmatpush1.bf16.msra.mxu0 0
      %2888 = vmatprep.subr.bf16.mxu0 0
      %2889 = vmatpush1.bf16.msra.mxu0 0
      %2890 = vmatprep.subr.bf16.mxu0 0
      %2891 = vmatpush1.bf16.msra.mxu0 %v2874
      %2892 = vmatprep.subr.bf16.mxu0 0
      %2893 = vmatpush2.bf16.msra.mxu0 0
      %2894 = vmatprep.subr.bf16.mxu0 0
      %2895 = vmatpush2.bf16.msra.mxu0 0
      %2896 = vmatprep.subr.bf16.mxu0 0
      %2897 = vmatpush2.bf16.msra.mxu0 0
      %2898 = vmatprep.subr.bf16.mxu0 0
      %2899 = vmatpush2.bf16.msra.mxu0 0
      %2900 = vmatprep.subr.bf16.mxu0 0
      %2901 = vmatpush2.bf16.msra.mxu0 0
      %2902 = vmatprep.subr.bf16.mxu0 0
      %2903 = vmatpush2.bf16.msra.mxu0 0
      %2904 = vmatprep.subr.bf16.mxu0 0
      %2905 = vmatpush2.bf16.msra.mxu0 0
      %2906 = vmatprep.subr.bf16.mxu0 0
      %2907 = vmatpush2.bf16.msra.mxu0 0
      %2908 = vmatprep.mubr.bf16.mxu0 0
      %2909 = vmatmul.mubr.bf16.gmra.mxu0 %v2826
      %v2910 = vpop.f32.mrf.mxu0
      %v2911 = vadd.f32 0.0, %v2910
      %v2912 = vpop.f32.mrf.mxu0
      %v2913 = vpop.f32.mrf.mxu0
      %v2914 = vadd.f32 0.0, %v2913
      %v2915 = vpop.f32.mrf.mxu0
      %2916 = vmatprep.mubr.bf16.mxu0 0
      %2917 = vmatmul.mubr.bf16.gmra.mxu0 %v2829
      %v2918 = vpop.f32.mrf.mxu0
      %v2919 = vadd.f32 0.0, %v2918
      %v2920 = vpop.f32.mrf.mxu0
      %v2921 = vpop.f32.mrf.mxu0
      %v2922 = vadd.f32 0.0, %v2921
      %v2923 = vpop.f32.mrf.mxu0
      %2924 = vmatprep.mubr.bf16.mxu0 0
      %2925 = vmatmul.mubr.bf16.gmra.mxu0 %v2832
      %v2926 = vpop.f32.mrf.mxu0
      %v2927 = vadd.f32 0.0, %v2926
      %v2928 = vpop.f32.mrf.mxu0
      %v2929 = vpop.f32.mrf.mxu0
      %v2930 = vadd.f32 0.0, %v2929
      %v2931 = vpop.f32.mrf.mxu0
      %2932 = vmatprep.mubr.bf16.mxu0 0
      %2933 = vmatmul.mubr.bf16.gmra.mxu0 %v2835
      %v2934 = vpop.f32.mrf.mxu0
      %v2935 = vadd.f32 0.0, %v2934
      %v2936 = vpop.f32.mrf.mxu0
      %v2937 = vpop.f32.mrf.mxu0
      %v2938 = vadd.f32 0.0, %v2937
      %v2939 = vpop.f32.mrf.mxu0
      %2940 = vmatprep.mubr.bf16.mxu0 0
      %2941 = vmatmul.mubr.bf16.gmra.mxu0 %v2838
      %v2942 = vpop.f32.mrf.mxu0
      %v2943 = vadd.f32 0.0, %v2942
      %v2944 = vpop.f32.mrf.mxu0
      %v2945 = vpop.f32.mrf.mxu0
      %v2946 = vadd.f32 0.0, %v2945
      %v2947 = vpop.f32.mrf.mxu0
      %2948 = vmatprep.mubr.bf16.mxu0 0
      %2949 = vmatmul.mubr.bf16.gmra.mxu0 %v2841
      %v2950 = vpop.f32.mrf.mxu0
      %v2951 = vadd.f32 0.0, %v2950
      %v2952 = vpop.f32.mrf.mxu0
      %v2953 = vpop.f32.mrf.mxu0
      %v2954 = vadd.f32 0.0, %v2953
      %v2955 = vpop.f32.mrf.mxu0
      %2956 = vmatprep.mubr.bf16.mxu0 0
      %2957 = vmatmul.mubr.bf16.gmra.mxu0 %v2844
      %v2958 = vpop.f32.mrf.mxu0
      %v2959 = vadd.f32 0.0, %v2958
      %v2960 = vpop.f32.mrf.mxu0
      %v2961 = vpop.f32.mrf.mxu0
      %v2962 = vadd.f32 0.0, %v2961
      %v2963 = vpop.f32.mrf.mxu0
      %2964 = vmatprep.mubr.bf16.mxu0 0
      %2965 = vmatmul.mubr.bf16.gmra.mxu0 %v2847
      %v2966 = vpop.f32.mrf.mxu0
      %v2967 = vadd.f32 0.0, %v2966
      %v2968 = vpop.f32.mrf.mxu0
      %v2969 = vpop.f32.mrf.mxu0
      %v2970 = vadd.f32 0.0, %v2969
      %v2971 = vpop.f32.mrf.mxu0
      %2972 = vmatprep.mubr.bf16.mxu0 0
      %2973 = vmatmul.mubr.bf16.gmra.mxu0 %v2850
      %v2974 = vpop.f32.mrf.mxu0
      %v2975 = vadd.f32 0.0, %v2974
      %v2976 = vpop.f32.mrf.mxu0
      %v2977 = vpop.f32.mrf.mxu0
      %v2978 = vadd.f32 0.0, %v2977
      %v2979 = vpop.f32.mrf.mxu0
      %2980 = vmatprep.mubr.bf16.mxu0 0
      %2981 = vmatmul.mubr.bf16.gmra.mxu0 %v2853
      %v2982 = vpop.f32.mrf.mxu0
      %v2983 = vadd.f32 0.0, %v2982
      %v2984 = vpop.f32.mrf.mxu0
      %v2985 = vpop.f32.mrf.mxu0
      %v2986 = vadd.f32 0.0, %v2985
      %v2987 = vpop.f32.mrf.mxu0
      %2988 = vmatprep.mubr.bf16.mxu0 0
      %2989 = vmatmul.mubr.bf16.gmra.mxu0 %v2856
      %v2990 = vpop.f32.mrf.mxu0
      %v2991 = vadd.f32 0.0, %v2990
      %v2992 = vpop.f32.mrf.mxu0
      %v2993 = vpop.f32.mrf.mxu0
      %v2994 = vadd.f32 0.0, %v2993
      %v2995 = vpop.f32.mrf.mxu0
      %2996 = vmatprep.mubr.bf16.mxu0 0
      %2997 = vmatmul.mubr.bf16.gmra.mxu0 %v2859
      %v2998 = vpop.f32.mrf.mxu0
      %v2999 = vadd.f32 0.0, %v2998
      %v3000 = vpop.f32.mrf.mxu0
      %v3001 = vpop.f32.mrf.mxu0
      %v3002 = vadd.f32 0.0, %v3001
      %v3003 = vpop.f32.mrf.mxu0
      %3004 = vmatprep.mubr.bf16.mxu0 0
      %3005 = vmatmul.mubr.bf16.gmra.mxu0 %v2862
      %v3006 = vpop.f32.mrf.mxu0
      %v3007 = vadd.f32 0.0, %v3006
      %v3008 = vpop.f32.mrf.mxu0
      %v3009 = vpop.f32.mrf.mxu0
      %v3010 = vadd.f32 0.0, %v3009
      %v3011 = vpop.f32.mrf.mxu0
      %3012 = vmatprep.mubr.bf16.mxu0 0
      %3013 = vmatmul.mubr.bf16.gmra.mxu0 %v2865
      %v3014 = vpop.f32.mrf.mxu0
      %v3015 = vadd.f32 0.0, %v3014
      %v3016 = vpop.f32.mrf.mxu0
      %v3017 = vpop.f32.mrf.mxu0
      %v3018 = vadd.f32 0.0, %v3017
      %v3019 = vpop.f32.mrf.mxu0
      %3020 = vmatprep.mubr.bf16.mxu0 0
      %3021 = vmatmul.mubr.bf16.gmra.mxu0 %v2868
      %v3022 = vpop.f32.mrf.mxu0
      %v3023 = vadd.f32 0.0, %v3022
      %v3024 = vpop.f32.mrf.mxu0
      %v3025 = vpop.f32.mrf.mxu0
      %v3026 = vadd.f32 0.0, %v3025
      %v3027 = vpop.f32.mrf.mxu0
      %3028 = vmatprep.mubr.bf16.mxu0 0
      %3029 = vmatmul.mubr.bf16.gmra.mxu0 %v2871
      %v3030 = vpop.f32.mrf.mxu0
      %v3031 = vadd.f32 0.0, %v3030
      %v3032 = vpop.f32.mrf.mxu0
      %v3033 = vpop.f32.mrf.mxu0
      %v3034 = vadd.f32 0.0, %v3033
      %v3035 = vpop.f32.mrf.mxu0
      %3036 = vdwg.mxu0
      %v3037 = vadd.f32 %v2743, %v2911
      %v3038 = vadd.f32 %v2744, %v2914
      %v3039 = vadd.f32 %v2745, %v2919
      %v3040 = vadd.f32 %v2746, %v2922
      %v3041 = vadd.f32 %v2747, %v2927
      %v3042 = vadd.f32 %v2748, %v2930
      %v3043 = vadd.f32 %v2749, %v2935
      %v3044 = vadd.f32 %v2750, %v2938
      %v3045 = vadd.f32 %v2751, %v2943
      %v3046 = vadd.f32 %v2752, %v2946
      %v3047 = vadd.f32 %v2753, %v2951
      %v3048 = vadd.f32 %v2754, %v2954
      %v3049 = vadd.f32 %v2755, %v2959
      %v3050 = vadd.f32 %v2756, %v2962
      %v3051 = vadd.f32 %v2757, %v2967
      %v3052 = vadd.f32 %v2758, %v2970
      %v3053 = vadd.f32 %v2759, %v2975
      %v3054 = vadd.f32 %v2760, %v2978
      %v3055 = vadd.f32 %v2761, %v2983
      %v3056 = vadd.f32 %v2762, %v2986
      %v3057 = vadd.f32 %v2763, %v2991
      %v3058 = vadd.f32 %v2764, %v2994
      %v3059 = vadd.f32 %v2765, %v2999
      %v3060 = vadd.f32 %v2766, %v3002
      %v3061 = vadd.f32 %v2767, %v3007
      %v3062 = vadd.f32 %v2768, %v3010
      %v3063 = vadd.f32 %v2769, %v3015
      %v3064 = vadd.f32 %v2770, %v3018
      %v3065 = vadd.f32 %v2771, %v3023
      %v3066 = vadd.f32 %v2772, %v3026
      %v3067 = vadd.f32 %v2773, %v3031
      %v3068 = vadd.f32 %v2774, %v3034
      %v3069 = vsel %vm411, %v3037, 0.0
      %v3070 = vsel %vm411, %v3038, 0.0
      %v3071 = vadd.f32 %v3069, %v3070
      %v3072 = vsel %vm411, %v3039, 0.0
      %v3073 = vadd.f32 %v3071, %v3072
      %v3074 = vsel %vm411, %v3040, 0.0
      %v3075 = vadd.f32 %v3073, %v3074
      %v3076 = vsel %vm411, %v3041, 0.0
      %v3077 = vadd.f32 %v3075, %v3076
      %v3078 = vsel %vm411, %v3042, 0.0
      %v3079 = vadd.f32 %v3077, %v3078
      %v3080 = vsel %vm411, %v3043, 0.0
      %v3081 = vadd.f32 %v3079, %v3080
      %v3082 = vsel %vm411, %v3044, 0.0
      %v3083 = vadd.f32 %v3081, %v3082
      %v3084 = vsel %vm411, %v3045, 0.0
      %v3085 = vadd.f32 %v3083, %v3084
      %v3086 = vsel %vm411, %v3046, 0.0
      %v3087 = vadd.f32 %v3085, %v3086
      %v3088 = vsel %vm411, %v3047, 0.0
      %v3089 = vadd.f32 %v3087, %v3088
      %v3090 = vsel %vm411, %v3048, 0.0
      %v3091 = vadd.f32 %v3089, %v3090
      %v3092 = vsel %vm411, %v3049, 0.0
      %v3093 = vadd.f32 %v3091, %v3092
      %v3094 = vsel %vm411, %v3050, 0.0
      %v3095 = vadd.f32 %v3093, %v3094
      %v3096 = vsel %vm411, %v3051, 0.0
      %v3097 = vadd.f32 %v3095, %v3096
      %v3098 = vsel %vm411, %v3052, 0.0
      %v3099 = vadd.f32 %v3097, %v3098
      %v3100 = vsel %vm411, %v3053, 0.0
      %v3101 = vadd.f32 %v3099, %v3100
      %v3102 = vsel %vm411, %v3054, 0.0
      %v3103 = vadd.f32 %v3101, %v3102
      %v3104 = vsel %vm411, %v3055, 0.0
      %v3105 = vadd.f32 %v3103, %v3104
      %v3106 = vsel %vm411, %v3056, 0.0
      %v3107 = vadd.f32 %v3105, %v3106
      %v3108 = vsel %vm411, %v3057, 0.0
      %v3109 = vadd.f32 %v3107, %v3108
      %v3110 = vsel %vm411, %v3058, 0.0
      %v3111 = vadd.f32 %v3109, %v3110
      %v3112 = vsel %vm411, %v3059, 0.0
      %v3113 = vadd.f32 %v3111, %v3112
      %v3114 = vsel %vm411, %v3060, 0.0
      %v3115 = vadd.f32 %v3113, %v3114
      %v3116 = vsel %vm411, %v3061, 0.0
      %v3117 = vadd.f32 %v3115, %v3116
      %v3118 = vsel %vm411, %v3062, 0.0
      %v3119 = vadd.f32 %v3117, %v3118
      %v3120 = vsel %vm411, %v3063, 0.0
      %v3121 = vadd.f32 %v3119, %v3120
      %v3122 = vsel %vm411, %v3064, 0.0
      %v3123 = vadd.f32 %v3121, %v3122
      %v3124 = vsel %vm411, %v3065, 0.0
      %v3125 = vadd.f32 %v3123, %v3124
      %v3126 = vsel %vm411, %v3066, 0.0
      %v3127 = vadd.f32 %v3125, %v3126
      %v3128 = vsel %vm411, %v3067, 0.0
      %v3129 = vadd.f32 %v3127, %v3128
      %v3130 = vsel %vm411, %v3068, 0.0
      %v3131 = vadd.f32 %v3129, %v3130
      %v3132 = vrot.slane %v3131, 4
      %v3133 = vadd.f32 %v3131, %v3132
      %v3134 = vrot.slane %v3133, 2
      %v3135 = vadd.f32 %v3133, %v3134
      %v3136 = vrot.slane %v3135, 1
      %v3137 = vadd.f32 %v3135, %v3136
      %v3138 = vmul.f32 %v3037, %v3037
      %v3139 = vmul.f32 %v3038, %v3038
      %v3140 = vmul.f32 %v3039, %v3039
      %v3141 = vmul.f32 %v3040, %v3040
      %v3142 = vmul.f32 %v3041, %v3041
      %v3143 = vmul.f32 %v3042, %v3042
      %v3144 = vmul.f32 %v3043, %v3043
      %v3145 = vmul.f32 %v3044, %v3044
      %v3146 = vmul.f32 %v3045, %v3045
      %v3147 = vmul.f32 %v3046, %v3046
      %v3148 = vmul.f32 %v3047, %v3047
      %v3149 = vmul.f32 %v3048, %v3048
      %v3150 = vmul.f32 %v3049, %v3049
      %v3151 = vmul.f32 %v3050, %v3050
      %v3152 = vmul.f32 %v3051, %v3051
      %v3153 = vmul.f32 %v3052, %v3052
      %v3154 = vmul.f32 %v3053, %v3053
      %v3155 = vmul.f32 %v3054, %v3054
      %v3156 = vmul.f32 %v3055, %v3055
      %v3157 = vmul.f32 %v3056, %v3056
      %v3158 = vmul.f32 %v3057, %v3057
      %v3159 = vmul.f32 %v3058, %v3058
      %v3160 = vmul.f32 %v3059, %v3059
      %v3161 = vmul.f32 %v3060, %v3060
      %v3162 = vmul.f32 %v3061, %v3061
      %v3163 = vmul.f32 %v3062, %v3062
      %v3164 = vmul.f32 %v3063, %v3063
      %v3165 = vmul.f32 %v3064, %v3064
      %v3166 = vmul.f32 %v3065, %v3065
      %v3167 = vmul.f32 %v3066, %v3066
      %v3168 = vmul.f32 %v3067, %v3067
      %v3169 = vmul.f32 %v3068, %v3068
      %v3170 = vsel %vm411, %v3138, 0.0
      %v3171 = vsel %vm411, %v3139, 0.0
      %v3172 = vadd.f32 %v3170, %v3171
      %v3173 = vsel %vm411, %v3140, 0.0
      %v3174 = vadd.f32 %v3172, %v3173
      %v3175 = vsel %vm411, %v3141, 0.0
      %v3176 = vadd.f32 %v3174, %v3175
      %v3177 = vsel %vm411, %v3142, 0.0
      %v3178 = vadd.f32 %v3176, %v3177
      %v3179 = vsel %vm411, %v3143, 0.0
      %v3180 = vadd.f32 %v3178, %v3179
      %v3181 = vsel %vm411, %v3144, 0.0
      %v3182 = vadd.f32 %v3180, %v3181
      %v3183 = vsel %vm411, %v3145, 0.0
      %v3184 = vadd.f32 %v3182, %v3183
      %v3185 = vsel %vm411, %v3146, 0.0
      %v3186 = vadd.f32 %v3184, %v3185
      %v3187 = vsel %vm411, %v3147, 0.0
      %v3188 = vadd.f32 %v3186, %v3187
      %v3189 = vsel %vm411, %v3148, 0.0
      %v3190 = vadd.f32 %v3188, %v3189
      %v3191 = vsel %vm411, %v3149, 0.0
      %v3192 = vadd.f32 %v3190, %v3191
      %v3193 = vsel %vm411, %v3150, 0.0
      %v3194 = vadd.f32 %v3192, %v3193
      %v3195 = vsel %vm411, %v3151, 0.0
      %v3196 = vadd.f32 %v3194, %v3195
      %v3197 = vsel %vm411, %v3152, 0.0
      %v3198 = vadd.f32 %v3196, %v3197
      %v3199 = vsel %vm411, %v3153, 0.0
      %v3200 = vadd.f32 %v3198, %v3199
      %v3201 = vsel %vm411, %v3154, 0.0
      %v3202 = vadd.f32 %v3200, %v3201
      %v3203 = vsel %vm411, %v3155, 0.0
      %v3204 = vadd.f32 %v3202, %v3203
      %v3205 = vsel %vm411, %v3156, 0.0
      %v3206 = vadd.f32 %v3204, %v3205
      %v3207 = vsel %vm411, %v3157, 0.0
      %v3208 = vadd.f32 %v3206, %v3207
      %v3209 = vsel %vm411, %v3158, 0.0
      %v3210 = vadd.f32 %v3208, %v3209
      %v3211 = vsel %vm411, %v3159, 0.0
      %v3212 = vadd.f32 %v3210, %v3211
      %v3213 = vsel %vm411, %v3160, 0.0
      %v3214 = vadd.f32 %v3212, %v3213
      %v3215 = vsel %vm411, %v3161, 0.0
      %v3216 = vadd.f32 %v3214, %v3215
      %v3217 = vsel %vm411, %v3162, 0.0
      %v3218 = vadd.f32 %v3216, %v3217
      %v3219 = vsel %vm411, %v3163, 0.0
      %v3220 = vadd.f32 %v3218, %v3219
      %v3221 = vsel %vm411, %v3164, 0.0
      %v3222 = vadd.f32 %v3220, %v3221
      %v3223 = vsel %vm411, %v3165, 0.0
      %v3224 = vadd.f32 %v3222, %v3223
      %v3225 = vsel %vm411, %v3166, 0.0
      %v3226 = vadd.f32 %v3224, %v3225
      %v3227 = vsel %vm411, %v3167, 0.0
      %v3228 = vadd.f32 %v3226, %v3227
      %v3229 = vsel %vm411, %v3168, 0.0
      %v3230 = vadd.f32 %v3228, %v3229
      %v3231 = vsel %vm411, %v3169, 0.0
      %v3232 = vadd.f32 %v3230, %v3231
      %v3233 = vrot.slane %v3232, 4
      %v3234 = vadd.f32 %v3232, %v3233
      %v3235 = vrot.slane %v3234, 2
      %v3236 = vadd.f32 %v3234, %v3235
      %v3237 = vrot.slane %v3236, 1
      %v3238 = vadd.f32 %v3236, %v3237
      %vm3239 = vcmask 1040384
      %v3240 = vsel %vm3239, %v3137, %v3238
      %3241 = vst.msk [vmem:[%s235] sm:$0x3] %vm414, %v3240
      %v3242 = vpack.c.bf16 %v3038, %v3037
      %v3243 = vpack.c.bf16 %v3040, %v3039
      %v3244 = vpack.c.bf16 %v3042, %v3041
      %v3245 = vpack.c.bf16 %v3044, %v3043
      %v3246 = vpack.c.bf16 %v3046, %v3045
      %v3247 = vpack.c.bf16 %v3048, %v3047
      %v3248 = vpack.c.bf16 %v3050, %v3049
      %v3249 = vpack.c.bf16 %v3052, %v3051
      %v3250 = vpack.c.bf16 %v3054, %v3053
      %v3251 = vpack.c.bf16 %v3056, %v3055
      %v3252 = vpack.c.bf16 %v3058, %v3057
      %v3253 = vpack.c.bf16 %v3060, %v3059
      %v3254 = vpack.c.bf16 %v3062, %v3061
      %v3255 = vpack.c.bf16 %v3064, %v3063
      %v3256 = vpack.c.bf16 %v3066, %v3065
      %v3257 = vpack.c.bf16 %v3068, %v3067
      %v3274 = vunpack.c.l.b16 %v3242
      %v3275 = vunpack.c.h.b16 %v3242
      %v3276 = vunpack.c.l.b16 %v3243
      %v3277 = vunpack.c.h.b16 %v3243
      %v3278 = vunpack.c.l.b16 %v3244
      %v3279 = vunpack.c.h.b16 %v3244
      %v3280 = vunpack.c.l.b16 %v3245
      %v3281 = vunpack.c.h.b16 %v3245
      %v3282 = vunpack.c.l.b16 %v3246
      %v3283 = vunpack.c.h.b16 %v3246
      %v3284 = vunpack.c.l.b16 %v3247
      %v3285 = vunpack.c.h.b16 %v3247
      %v3286 = vunpack.c.l.b16 %v3248
      %v3287 = vunpack.c.h.b16 %v3248
      %v3288 = vunpack.c.l.b16 %v3249
      %v3289 = vunpack.c.h.b16 %v3249
      %v3290 = vunpack.c.l.b16 %v3250
      %v3291 = vunpack.c.h.b16 %v3250
      %v3292 = vunpack.c.l.b16 %v3251
      %v3293 = vunpack.c.h.b16 %v3251
      %v3294 = vunpack.c.l.b16 %v3252
      %v3295 = vunpack.c.h.b16 %v3252
      %v3296 = vunpack.c.l.b16 %v3253
      %v3297 = vunpack.c.h.b16 %v3253
      %v3298 = vunpack.c.l.b16 %v3254
      %v3299 = vunpack.c.h.b16 %v3254
      %v3300 = vunpack.c.l.b16 %v3255
      %v3301 = vunpack.c.h.b16 %v3255
      %v3302 = vunpack.c.l.b16 %v3256
      %v3303 = vunpack.c.h.b16 %v3256
      %v3304 = vunpack.c.l.b16 %v3257
      %v3305 = vunpack.c.h.b16 %v3257
      %v3306 = vpack.c.b16 %v3274, %v3274
      %v3307 = vpack.c.b16 %v3275, %v3275
      %v3308 = vpack.c.b16 %v3276, %v3276
      %v3309 = vpack.c.b16 %v3277, %v3277
      %v3310 = vpack.c.b16 %v3278, %v3278
      %v3311 = vpack.c.b16 %v3279, %v3279
      %v3312 = vpack.c.b16 %v3280, %v3280
      %v3313 = vpack.c.b16 %v3281, %v3281
      %v3314 = vpack.c.b16 %v3282, %v3282
      %v3315 = vpack.c.b16 %v3283, %v3283
      %v3316 = vpack.c.b16 %v3284, %v3284
      %v3317 = vpack.c.b16 %v3285, %v3285
      %v3318 = vpack.c.b16 %v3286, %v3286
      %v3319 = vpack.c.b16 %v3287, %v3287
      %v3320 = vpack.c.b16 %v3288, %v3288
      %v3321 = vpack.c.b16 %v3289, %v3289
      %v3322 = vpack.c.b16 %v3290, %v3290
      %v3323 = vpack.c.b16 %v3291, %v3291
      %v3324 = vpack.c.b16 %v3292, %v3292
      %v3325 = vpack.c.b16 %v3293, %v3293
      %v3326 = vpack.c.b16 %v3294, %v3294
      %v3327 = vpack.c.b16 %v3295, %v3295
      %v3328 = vpack.c.b16 %v3296, %v3296
      %v3329 = vpack.c.b16 %v3297, %v3297
      %v3330 = vpack.c.b16 %v3298, %v3298
      %v3331 = vpack.c.b16 %v3299, %v3299
      %v3332 = vpack.c.b16 %v3300, %v3300
      %v3333 = vpack.c.b16 %v3301, %v3301
      %v3334 = vpack.c.b16 %v3302, %v3302
      %v3335 = vpack.c.b16 %v3303, %v3303
      %v3336 = vpack.c.b16 %v3304, %v3304
      %v3337 = vpack.c.b16 %v3305, %v3305
      %vm3370 = vcmask 27648
      %3371 = vst.msk [vmem:[%s231] sm:$0xf] %vm3370, %v3306
      %3372 = vst.msk [vmem:[%s231 + $0x4] sm:$0xf] %vm3370, %v3307
      %3373 = vst.msk [vmem:[%s231 + $0x8] sm:$0xf] %vm3370, %v3308
      %3374 = vst.msk [vmem:[%s231 + $0xc] sm:$0xf] %vm3370, %v3309
      %3375 = vst.msk [vmem:[%s231 + $0x10] sm:$0xf] %vm3370, %v3310
      %3376 = vst.msk [vmem:[%s231 + $0x14] sm:$0xf] %vm3370, %v3311
      %3377 = vst.msk [vmem:[%s231 + $0x18] sm:$0xf] %vm3370, %v3312
      %3378 = vst.msk [vmem:[%s231 + $0x1c] sm:$0xf] %vm3370, %v3313
      %3379 = vst.msk [vmem:[%s231 + $0x20] sm:$0xf] %vm3370, %v3314
      %3380 = vst.msk [vmem:[%s231 + $0x24] sm:$0xf] %vm3370, %v3315
      %3381 = vst.msk [vmem:[%s231 + $0x28] sm:$0xf] %vm3370, %v3316
      %3382 = vst.msk [vmem:[%s231 + $0x2c] sm:$0xf] %vm3370, %v3317
      %3383 = vst.msk [vmem:[%s231 + $0x30] sm:$0xf] %vm3370, %v3318
      %3384 = vst.msk [vmem:[%s231 + $0x34] sm:$0xf] %vm3370, %v3319
      %3385 = vst.msk [vmem:[%s231 + $0x38] sm:$0xf] %vm3370, %v3320
      %3386 = vst.msk [vmem:[%s231 + $0x3c] sm:$0xf] %vm3370, %v3321
      %3387 = vst.msk [vmem:[%s231 + $0x40] sm:$0xf] %vm3370, %v3322
      %3388 = vst.msk [vmem:[%s231 + $0x44] sm:$0xf] %vm3370, %v3323
      %3389 = vst.msk [vmem:[%s231 + $0x48] sm:$0xf] %vm3370, %v3324
      %3390 = vst.msk [vmem:[%s231 + $0x4c] sm:$0xf] %vm3370, %v3325
      %3391 = vst.msk [vmem:[%s231 + $0x50] sm:$0xf] %vm3370, %v3326
      %3392 = vst.msk [vmem:[%s231 + $0x54] sm:$0xf] %vm3370, %v3327
      %3393 = vst.msk [vmem:[%s231 + $0x58] sm:$0xf] %vm3370, %v3328
      %3394 = vst.msk [vmem:[%s231 + $0x5c] sm:$0xf] %vm3370, %v3329
      %3395 = vst.msk [vmem:[%s231 + $0x60] sm:$0xf] %vm3370, %v3330
      %3396 = vst.msk [vmem:[%s231 + $0x64] sm:$0xf] %vm3370, %v3331
      %3397 = vst.msk [vmem:[%s231 + $0x68] sm:$0xf] %vm3370, %v3332
      %3398 = vst.msk [vmem:[%s231 + $0x6c] sm:$0xf] %vm3370, %v3333
      %3399 = vst.msk [vmem:[%s231 + $0x70] sm:$0xf] %vm3370, %v3334
      %3400 = vst.msk [vmem:[%s231 + $0x74] sm:$0xf] %vm3370, %v3335
      %3401 = vst.msk [vmem:[%s231 + $0x78] sm:$0xf] %vm3370, %v3336
      %3402 = vst.msk [vmem:[%s231 + $0x7c] sm:$0xf] %vm3370, %v3337
      %p3403 = scmp.lt.s32.totalorder %s17, 1
      %s3404 = scalar_select %p3403, %s17, 1
      %s3405 = smul.addr %s3404, 32
      %s3406 = smul.addr %s3405, 4
      %s3407 = scalar_lea.vmem %s4, %s3406
      %p3408 = scmp.lt.s32.totalorder %s17, 1
      %s3409 = scalar_select %p3408, %s17, 1
      %s3410 = smul.addr %s3409, 2
      %s3411 = scalar_lea.vmem %s5, %s3410
      // Predicated region
      $region37: #{identity_block_forward.5} parent=35 // pred_check
        %p3412 = pneg %p124
      $region38: #{identity_block_forward.5} parent=35 // pred_check_branch
        %3414 = sbr.rel (%p3412) target = $region40
      $region39: #{identity_block_forward.5} parent=35 // pred_region
        _
      $region40: #{identity_block_forward.5} parent=35 // pred_fallthru
        _
      // Predicated region
      $region41: #{identity_block_forward.5} parent=35 // pred_check
        %p3415 = pneg %p150
      $region42: #{identity_block_forward.5} parent=35 // pred_check_branch
        %3417 = sbr.rel (%p3415) target = $region44
      $region43: #{identity_block_forward.5} parent=35 // pred_region
        _
      $region44: #{identity_block_forward.5} parent=35 // pred_fallthru
        _
    $region36: #{identity_block_forward.5} parent=5 // pred_fallthru
      _
    %p3418 = scmp.le.s32.totalorder 2, %s12
    // Predicated region
    $region45: #{identity_block_forward.5} parent=5 // pred_check
      %p3419 = pneg %p3418
    $region46: #{identity_block_forward.5} parent=5 // pred_check_branch
      %3421 = sbr.rel (%p3419) target = $region48
    $region47: #{identity_block_forward.5} parent=5 // pred_region
      %s3422 = ssub.s32 %s12, 2
      // Predicated region
      $region49: #{identity_block_forward.5} parent=47 // pred_check
        %p3423 = pneg %p130
      $region50: #{identity_block_forward.5} parent=47 // pred_check_branch
        %3425 = sbr.rel (%p3423) target = $region52
      $region51: #{identity_block_forward.5} parent=47 // pred_region
        %p3426 = scmp.lt.s32.totalorder %s18, 1
        %s3427 = scalar_select %p3426, %s18, 1
        %s3428 = smul.addr %s3427, 32
        %s3429 = smul.addr %s3428, 4
        %s3430 = scalar_lea.vmem %s4, %s3429
      $region52: #{identity_block_forward.5} parent=47 // pred_fallthru
        _
      // Predicated region
      $region53: #{identity_block_forward.5} parent=47 // pred_check
        %p3431 = pneg %p156
      $region54: #{identity_block_forward.5} parent=47 // pred_check_branch
        %3433 = sbr.rel (%p3431) target = $region56
      $region55: #{identity_block_forward.5} parent=47 // pred_region
        %p3434 = scmp.lt.s32.totalorder %s18, 1
        %s3435 = scalar_select %p3434, %s18, 1
        %s3436 = smul.addr %s3435, 2
        %s3437 = scalar_lea.vmem %s5, %s3436
      $region56: #{identity_block_forward.5} parent=47 // pred_fallthru
        _
    $region48: #{identity_block_forward.5} parent=5 // pred_fallthru
      _
  $region6: #{identity_block_forward.5} parent=0 // loop_footer
    %s16 = sadd.s32 1, %s12
  $region7: #{identity_block_forward.5} parent=0 // loop_footer_branch
    %11 = sbr.rel target = $region3
  $region8: #{identity_block_forward.5} parent=0 // loop_exit
    _

</llo_original>
